<compile_context>
chip_gen: v7x
topology: tpu7x:2x2x1
jax: 0.10.0
libtpu: 0.0.40
codegen_flags: <defaults>
</compile_context>

<pallas_src>
import jax
import jax.numpy as jnp
import numpy as np
from jax import lax
from jax.experimental import pallas as pl
from jax.experimental.pallas import tpu as pltpu


# ------------------------------ geometry constants ----------------------------
KS = 5                                   # conv kernel size (all convs, valid, stride 1)
# conv1: 28x28x1 -> 24x24x32        (kept at row stride 28; cols >= 24 are garbage)
# conv2: 24x24x32 -> 20x20x32 -> pool -> 10x10x32
# conv3: 10x10x32 ->  6x6x64 -> pool ->  3x3x64
TAP28 = (KS - 1) * 28 + (KS - 1)         # 116  max tap offset at row stride 28
TAP10 = (KS - 1) * 10 + (KS - 1)         # 44   max tap offset at row stride 10

LOUT3 = 6 * 10                           # 60   conv3 pre-pool flattened length
LIN3 = TAP10 + LOUT3                     # 104  conv3 input length (100 valid + 4 zero pad)
LOUT2 = 20 * 28                          # 560  conv2 pre-pool flattened length
LOUT1 = TAP28 + LOUT2                    # 676  conv1 output length (== conv2 input length)
LIN1 = TAP28 + LOUT1                     # 792  conv1 input length (784 pixels + 8 zero pad)

LS2 = (20 - 2) * 28 + 20 - 1             # 523  pool-window slice length for conv2
LS3 = (6 - 2) * 10 + 6 - 1               # 45   pool-window slice length for conv3


# ------------------------------- tiling helpers --------------------------------

def _batch_tile(n, cap=16):
    """Images per grid step for the conv kernels: largest divisor of n <= cap,
    preferring >= 2 grid steps so the 'parallel' axis can shard across cores."""
    divs = [t for t in range(1, min(n, cap) + 1) if n % t == 0]
    pref = [t for t in divs if n // t >= 2]
    return max(pref) if pref else max(divs)


def _row_tile(n, cap=1024):
    """Row tile for the fc head: whole batch if small, else a multiple-of-8 divisor."""
    if n <= cap:
        return n
    best = None
    for t in range(8, cap + 1, 8):
        if n % t == 0:
            best = t
    return best if best is not None else n


# -------------------------------- Pallas kernels -------------------------------

def _conv12_kernel(p_ref, w1_ref, b1_ref, w2_ref, b2_ref, s2_ref, o_ref):
    """Fused conv1(+ReLU) -> conv2(+bias) -> 2x2 maxpool -> ReLU, per image.

    p_ref : (bt, 32, LOUT1) bf16   conv1 im2col patches (25 taps + 7 zero rows)
    w1_ref: (32, 32)  bf16         conv1 weights, K padded 25 -> 32
    b1_ref: (32, 1)   f32
    w2_ref: (32, 800) bf16         conv2 weights, stacked K = 25 * 32
    b2_ref: (32, 1)   f32
    s2_ref: (LS2, LIN3) bf16       0/1 pool-selection matrix (last 4 cols all-zero pad)
    o_ref : (bt, 32, LIN3) bf16
    """
    def body(b, carry):
        # conv1: one MXU matmul over the stacked K=32 patch.
        z1 = jnp.dot(w1_ref[...], p_ref[b], preferred_element_type=jnp.float32)
        x1 = jnp.maximum(z1 + b1_ref[...], 0.0).astype(jnp.bfloat16)      # (32, 676)

        # conv2: build the (800, 560) patch from 25 static lane-offset slices
        # (sublane offsets are multiples of 32 -> aligned), then one matmul.
        taps = [x1[:, di * 28 + dj: di * 28 + dj + LOUT2]
                for di in range(KS) for dj in range(KS)]
        p2 = jnp.concatenate(taps, axis=0)                                # (800, 560)
        z2 = jnp.dot(w2_ref[...], p2, preferred_element_type=jnp.float32)
        z2 = z2 + b2_ref[...]                                             # (32, 560) f32

        # Fused 2x2 max-pool: max of 4 shifted windows (f32), then a 0/1
        # selection matmul that picks the even (h, w) anchors and compacts
        # away the invalid columns in one shot.
        m = jnp.maximum(jnp.maximum(z2[:, 0:LS2], z2[:, 1:1 + LS2]),
                        jnp.maximum(z2[:, 28:28 + LS2], z2[:, 29:29 + LS2]))
        pooled = jnp.dot(m.astype(jnp.bfloat16), s2_ref[...],
                         preferred_element_type=jnp.float32)              # (32, 104)
        o_ref[b] = jnp.maximum(pooled, 0.0).astype(o_ref.dtype)
        return carry

    lax.fori_loop(0, p_ref.shape[0], body, 0)


def _conv3_kernel(x_ref, w_ref, b_ref, s_ref, o_ref):
    """conv3(+bias) -> 2x2 maxpool -> ReLU, per image (channels-first flattened).

    x_ref: (bt, 32, LIN3) bf16; w_ref: (64, 800) bf16; b_ref: (64, 1) f32
    s_ref: (LS3, 9) bf16 0/1 selection matrix; o_ref: (bt, 64, 9) bf16
    """
    def body(b, carry):
        xb = x_ref[b]                                                     # (32, 104)
        taps = [xb[:, di * 10 + dj: di * 10 + dj + LOUT3]
                for di in range(KS) for dj in range(KS)]
        p = jnp.concatenate(taps, axis=0)                                 # (800, 60)
        z = jnp.dot(w_ref[...], p, preferred_element_type=jnp.float32)
        z = z + b_ref[...]                                                # (64, 60) f32
        m = jnp.maximum(jnp.maximum(z[:, 0:LS3], z[:, 1:1 + LS3]),
                        jnp.maximum(z[:, 10:10 + LS3], z[:, 11:11 + LS3]))
        pooled = jnp.dot(m.astype(jnp.bfloat16), s_ref[...],
                         preferred_element_type=jnp.float32)              # (64, 9)
        o_ref[b] = jnp.maximum(pooled, 0.0).astype(o_ref.dtype)
        return carry

    lax.fori_loop(0, x_ref.shape[0], body, 0)


def _fc_head_kernel(x_ref, w1_ref, b1_ref, w2_ref, b2_ref, o_ref):
    """Fused fc1 + ReLU + fc2 + log_softmax over a row (batch) tile.

    x_ref: (tm, 576) bf16; w1: (576, 256) bf16; b1: (1, 256) f32
    w2: (256, 10) bf16; b2: (1, 10) f32; o_ref: (tm, 10) f32
    """
    h = jnp.dot(x_ref[...], w1_ref[...], preferred_element_type=jnp.float32)
    h = jnp.maximum(h + b1_ref[...], 0.0).astype(jnp.bfloat16)
    z = jnp.dot(h, w2_ref[...], preferred_element_type=jnp.float32) + b2_ref[...]
    m = jnp.max(z, axis=-1, keepdims=True)
    lse = jnp.log(jnp.sum(jnp.exp(z - m), axis=-1, keepdims=True)) + m
    o_ref[...] = (z - lse).astype(o_ref.dtype)


# ------------------------------- pallas_call wrappers ---------------------------

def conv12(p1, w1, b1, w2, b2, s2):
    n = p1.shape[0]
    bt = _batch_tile(n)
    return pl.pallas_call(
        _conv12_kernel,
        out_shape=jax.ShapeDtypeStruct((n, 32, LIN3), jnp.bfloat16),
        grid=(n // bt,),
        in_specs=[pl.BlockSpec((bt, 32, LOUT1), lambda i: (i, 0, 0)),
                  pl.BlockSpec((32, 32), lambda i: (0, 0)),
                  pl.BlockSpec((32, 1), lambda i: (0, 0)),
                  pl.BlockSpec((32, 800), lambda i: (0, 0)),
                  pl.BlockSpec((32, 1), lambda i: (0, 0)),
                  pl.BlockSpec((LS2, LIN3), lambda i: (0, 0))],
        out_specs=pl.BlockSpec((bt, 32, LIN3), lambda i: (i, 0, 0)),
        compiler_params=pltpu.CompilerParams(dimension_semantics=("parallel",)),
    )(p1, w1, b1, w2, b2, s2)


def conv3(x, w, b, s):
    n = x.shape[0]
    bt = _batch_tile(n)
    return pl.pallas_call(
        _conv3_kernel,
        out_shape=jax.ShapeDtypeStruct((n, 64, 9), jnp.bfloat16),
        grid=(n // bt,),
        in_specs=[pl.BlockSpec((bt, 32, LIN3), lambda i: (i, 0, 0)),
                  pl.BlockSpec((64, 800), lambda i: (0, 0)),
                  pl.BlockSpec((64, 1), lambda i: (0, 0)),
                  pl.BlockSpec((LS3, 9), lambda i: (0, 0))],
        out_specs=pl.BlockSpec((bt, 64, 9), lambda i: (i, 0, 0)),
        compiler_params=pltpu.CompilerParams(dimension_semantics=("parallel",)),
    )(x, w, b, s)


def fc_head(x, w1, b1, w2, b2):
    n, k = x.shape
    tm = _row_tile(n)
    return pl.pallas_call(
        _fc_head_kernel,
        out_shape=jax.ShapeDtypeStruct((n, w2.shape[1]), jnp.float32),
        grid=(n // tm,),
        in_specs=[pl.BlockSpec((tm, k), lambda i: (i, 0)),
                  pl.BlockSpec(w1.shape, lambda i: (0, 0)),
                  pl.BlockSpec((1, w1.shape[1]), lambda i: (0, 0)),
                  pl.BlockSpec(w2.shape, lambda i: (0, 0)),
                  pl.BlockSpec((1, w2.shape[1]), lambda i: (0, 0))],
        out_specs=pl.BlockSpec((tm, w2.shape[1]), lambda i: (i, 0)),
        compiler_params=pltpu.CompilerParams(dimension_semantics=("parallel",)),
    )(x, w1, b1, w2, b2)


# -------------------------------- parameter prep --------------------------------

def _pool_select(ls, w_stride, hp, wp, out_cols):
    """0/1 selection matrix: column i*wp+j picks flattened position 2i*w_stride + 2j.
    Extra columns (out_cols > hp*wp) stay all-zero (padding for the next stage)."""
    s = np.zeros((ls, out_cols), np.float32)
    for i in range(hp):
        for j in range(wp):
            s[2 * i * w_stride + 2 * j, i * wp + j] = 1.0
    return jnp.asarray(s, jnp.bfloat16)


def init_params(key):
    """Deterministic synthetic parameters, PyTorch shape conventions (f32)."""
    ks = jax.random.split(key, 10)

    def uniform(k, shape, fan_in):
        bound = 1.0 / jnp.sqrt(float(fan_in))
        return jax.random.uniform(k, shape, jnp.float32, -bound, bound)

    return {
        "conv1_w": uniform(ks[0], (32, 1, 5, 5), 25),
        "conv1_b": uniform(ks[1], (32,), 25),
        "conv2_w": uniform(ks[2], (32, 32, 5, 5), 800),
        "conv2_b": uniform(ks[3], (32,), 800),
        "conv3_w": uniform(ks[4], (64, 32, 5, 5), 800),
        "conv3_b": uniform(ks[5], (64,), 800),
        "fc1_w": uniform(ks[6], (256, 576), 576),
        "fc1_b": uniform(ks[7], (256,), 576),
        "fc2_w": uniform(ks[8], (10, 256), 256),
        "fc2_b": uniform(ks[9], (10,), 256),
    }


def prepare_params(p):
    """One-time relayout into kernel-friendly shapes; no per-forward transposes."""
    def conv_mat(w):  # torch (O, C, kh, kw) -> (O, kh*kw*C), tap-major columns
        o, c, kh, kw = w.shape
        return jnp.transpose(w, (0, 2, 3, 1)).reshape(o, kh * kw * c).astype(jnp.bfloat16)

    w1 = jnp.pad(conv_mat(p["conv1_w"]), ((0, 0), (0, 32 - 25)))   # K 25 -> 32

    return {
        "conv1_w": w1,                                               # (32, 32)
        "conv1_b": p["conv1_b"].reshape(-1, 1).astype(jnp.float32),
        "conv2_w": conv_mat(p["conv2_w"]),                           # (32, 800)
        "conv2_b": p["conv2_b"].reshape(-1, 1).astype(jnp.float32),
        "conv3_w": conv_mat(p["conv3_w"]),                           # (64, 800)
        "conv3_b": p["conv3_b"].reshape(-1, 1).astype(jnp.float32),
        "fc1_w": p["fc1_w"].T.astype(jnp.bfloat16),                  # (576, 256)
        "fc1_b": p["fc1_b"].reshape(1, -1).astype(jnp.float32),
        "fc2_w": p["fc2_w"].T.astype(jnp.bfloat16),                  # (256, 10)
        "fc2_b": p["fc2_b"].reshape(1, -1).astype(jnp.float32),
        "pool_s2": _pool_select(LS2, 28, 10, 10, LIN3),              # (523, 104)
        "pool_s3": _pool_select(LS3, 10, 3, 3, 9),                   # (45, 9)
    }


# ------------------------------------ forward ------------------------------------

@jax.jit
def forward(params, x_nchw):
    n = x_nchw.shape[0]
    # NCHW (N,1,28,28) -> flattened (N,1,784) bf16, zero-padded to LIN1 so every
    # conv1 tap slice stays in bounds.
    x = x_nchw.reshape(n, 1, 28 * 28).astype(jnp.bfloat16)
    x = jnp.pad(x, ((0, 0), (0, 0), (0, LIN1 - 28 * 28)))

    # conv1 im2col in XLA (C_in == 1: 25 single-row taps, ~42 KiB/image); building it
    # in-kernel would need misaligned 1-row sublane concats for no measurable gain.
    taps = [x[:, :, di * 28 + dj: di * 28 + dj + LOUT1]
            for di in range(KS) for dj in range(KS)]
    p1 = jnp.concatenate(taps, axis=1)                         # (N, 25, LOUT1)
    p1 = jnp.pad(p1, ((0, 0), (0, 32 - 25), (0, 0)))           # K padded to 32

    # Kernel A: conv1 + ReLU + conv2 + 2x2 maxpool + ReLU  -> (N, 32, 104)
    x = conv12(p1, params["conv1_w"], params["conv1_b"],
               params["conv2_w"], params["conv2_b"], params["pool_s2"])

    # Kernel B: conv3 + 2x2 maxpool + ReLU                 -> (N, 64, 9)
    x = conv3(x, params["conv3_w"], params["conv3_b"], params["pool_s3"])

    # Channel-first flatten == PyTorch x.view(-1, 3*3*64); free reshape, no transpose.
    x = x.reshape(n, 64 * 9)

    # Kernel C: fc1 + ReLU + fc2 + log_softmax             -> (N, 10) f32
    return fc_head(x, params["fc1_w"], params["fc1_b"],
                   params["fc2_w"], params["fc2_b"])


# ------------------------------ pure-JAX f32 reference ----------------------------

def reference_forward(tp, x):
    def conv(x, w, b):
        y = lax.conv_general_dilated(x, w, (1, 1), "VALID",
                                     dimension_numbers=("NCHW", "OIHW", "NCHW"))
        return y + b.reshape(1, -1, 1, 1)

    def pool(x):
        return lax.reduce_window(x, -jnp.inf, lax.max,
                                 (1, 1, 2, 2), (1, 1, 2, 2), "VALID")

    x = jax.nn.relu(conv(x, tp["conv1_w"], tp["conv1_b"]))
    x = jax.nn.relu(pool(conv(x, tp["conv2_w"], tp["conv2_b"])))
    x = jax.nn.relu(pool(conv(x, tp["conv3_w"], tp["conv3_b"])))
    x = x.reshape(x.shape[0], -1)
    x = jax.nn.relu(x @ tp["fc1_w"].T + tp["fc1_b"])
    x = x @ tp["fc2_w"].T + tp["fc2_b"]
    return jax.nn.log_softmax(x, axis=-1)


# -------------------------------------- driver ------------------------------------

if __name__ == "__main__":
    key = jax.random.PRNGKey(0)
    k_x, k_p = jax.random.split(key)

    torch_params = init_params(k_p)           # PyTorch-layout f32 parameters
    params = prepare_params(torch_params)     # kernel-friendly bf16/f32 layout

    x = jax.random.normal(k_x, (2, 1, 28, 28), jnp.float32)

    out = jax.block_until_ready(forward(params, x))
    assert out.shape == (2, 10), out.shape

    # Correctness vs. a pure-JAX f32 reference of the PyTorch module
    # (bf16 activations/weights => ~1e-2 relative tolerance is expected).
    ref = reference_forward(torch_params, x)
    max_err = float(jnp.max(jnp.abs(out - ref)))
    assert max_err < 5e-2, f"max |err| vs f32 reference = {max_err}"

    # log_softmax rows must exponentiate-sum to 1.
    row_sums = jnp.sum(jnp.exp(out), axis=1)
    assert bool(jnp.all(jnp.abs(row_sums - 1.0) < 1e-3)), row_sums

    print("KERNEL_OK")
</pallas_src>

<mosaic_0001>
module attributes {stable_mosaic.version = 11 : i64} {
  func.func @_conv12_kernel(%arg0: i32, %arg1: memref<1x32x676xbf16, #tpu.memory_space<vmem>>, %arg2: memref<32x32xbf16, #tpu.memory_space<vmem>>, %arg3: memref<32x1xf32, #tpu.memory_space<vmem>>, %arg4: memref<32x800xbf16, #tpu.memory_space<vmem>>, %arg5: memref<32x1xf32, #tpu.memory_space<vmem>>, %arg6: memref<523x104xbf16, #tpu.memory_space<vmem>>, %arg7: memref<1x32x104xbf16, #tpu.memory_space<vmem>>) attributes {dimension_semantics = [#tpu.dimension_semantics<parallel>], iteration_bounds = array<i64: 2>, scalar_prefetch = 0 : i64, scratch_operands = 0 : i64, tpu.core_type = #tpu.core_type<tc>, window_params = [{transform_indices = @transform_0, window_bounds = array<i64: 1, 32, 676>}, {pipeline_mode = #tpu.pipeline_mode<synchronous>, transform_indices = @transform_1, window_bounds = array<i64: 32, 32>}, {pipeline_mode = #tpu.pipeline_mode<synchronous>, transform_indices = @transform_2, window_bounds = array<i64: 32, 1>}, {pipeline_mode = #tpu.pipeline_mode<synchronous>, transform_indices = @transform_3, window_bounds = array<i64: 32, 800>}, {pipeline_mode = #tpu.pipeline_mode<synchronous>, transform_indices = @transform_4, window_bounds = array<i64: 32, 1>}, {pipeline_mode = #tpu.pipeline_mode<synchronous>, transform_indices = @transform_5, window_bounds = array<i64: 523, 104>}, {transform_indices = @transform_6, window_bounds = array<i64: 1, 32, 104>}]} {
    %c0_i32 = arith.constant 0 : i32
    %c0 = arith.constant 0 : index
    %c0_0 = arith.constant 0 : index
    %0 = vector.load %arg2[%c0, %c0_0] : memref<32x32xbf16, #tpu.memory_space<vmem>>, vector<32x32xbf16>
    %1 = arith.index_cast %c0_i32 : i32 to index
    %c0_1 = arith.constant 0 : index
    %c0_2 = arith.constant 0 : index
    %2 = vector.load %arg1[%1, %c0_1, %c0_2] : memref<1x32x676xbf16, #tpu.memory_space<vmem>>, vector<1x32x676xbf16>
    %3 = vector.shape_cast %2 : vector<1x32x676xbf16> to vector<32x676xbf16>
    %cst = arith.constant dense<0.000000e+00> : vector<32x676xf32>
    %4 = tpu.matmul %0, %3, %cst {dimension_numbers = #tpu.dot_dimension_numbers<[1], [0], [0], [1], [0, 0, 1, 1], [], []>} : vector<32x32xbf16>, vector<32x676xbf16>, vector<32x676xf32> -> vector<32x676xf32>
    %c0_3 = arith.constant 0 : index
    %c0_4 = arith.constant 0 : index
    %5 = vector.load %arg3[%c0_3, %c0_4] : memref<32x1xf32, #tpu.memory_space<vmem>>, vector<32x1xf32>
    %6 = vector.broadcast %5 : vector<32x1xf32> to vector<32x676xf32>
    %7 = arith.addf %4, %6 : vector<32x676xf32>
    %cst_5 = arith.constant 0.000000e+00 : f32
    %8 = vector.broadcast %cst_5 : f32 to vector<32x676xf32>
    %9 = arith.maximumf %7, %8 : vector<32x676xf32>
    %10 = arith.truncf %9 : vector<32x676xf32> to vector<32x676xbf16>
    %11 = vector.extract_strided_slice %10 {offsets = [0, 0], sizes = [32, 560], strides = [1, 1]} : vector<32x676xbf16> to vector<32x560xbf16>
    %12 = vector.extract_strided_slice %10 {offsets = [0, 1], sizes = [32, 560], strides = [1, 1]} : vector<32x676xbf16> to vector<32x560xbf16>
    %13 = vector.extract_strided_slice %10 {offsets = [0, 2], sizes = [32, 560], strides = [1, 1]} : vector<32x676xbf16> to vector<32x560xbf16>
    %14 = vector.extract_strided_slice %10 {offsets = [0, 3], sizes = [32, 560], strides = [1, 1]} : vector<32x676xbf16> to vector<32x560xbf16>
    %15 = vector.extract_strided_slice %10 {offsets = [0, 4], sizes = [32, 560], strides = [1, 1]} : vector<32x676xbf16> to vector<32x560xbf16>
    %16 = vector.extract_strided_slice %10 {offsets = [0, 28], sizes = [32, 560], strides = [1, 1]} : vector<32x676xbf16> to vector<32x560xbf16>
    %17 = vector.extract_strided_slice %10 {offsets = [0, 29], sizes = [32, 560], strides = [1, 1]} : vector<32x676xbf16> to vector<32x560xbf16>
    %18 = vector.extract_strided_slice %10 {offsets = [0, 30], sizes = [32, 560], strides = [1, 1]} : vector<32x676xbf16> to vector<32x560xbf16>
    %19 = vector.extract_strided_slice %10 {offsets = [0, 31], sizes = [32, 560], strides = [1, 1]} : vector<32x676xbf16> to vector<32x560xbf16>
    %20 = vector.extract_strided_slice %10 {offsets = [0, 32], sizes = [32, 560], strides = [1, 1]} : vector<32x676xbf16> to vector<32x560xbf16>
    %21 = vector.extract_strided_slice %10 {offsets = [0, 56], sizes = [32, 560], strides = [1, 1]} : vector<32x676xbf16> to vector<32x560xbf16>
    %22 = vector.extract_strided_slice %10 {offsets = [0, 57], sizes = [32, 560], strides = [1, 1]} : vector<32x676xbf16> to vector<32x560xbf16>
    %23 = vector.extract_strided_slice %10 {offsets = [0, 58], sizes = [32, 560], strides = [1, 1]} : vector<32x676xbf16> to vector<32x560xbf16>
    %24 = vector.extract_strided_slice %10 {offsets = [0, 59], sizes = [32, 560], strides = [1, 1]} : vector<32x676xbf16> to vector<32x560xbf16>
    %25 = vector.extract_strided_slice %10 {offsets = [0, 60], sizes = [32, 560], strides = [1, 1]} : vector<32x676xbf16> to vector<32x560xbf16>
    %26 = vector.extract_strided_slice %10 {offsets = [0, 84], sizes = [32, 560], strides = [1, 1]} : vector<32x676xbf16> to vector<32x560xbf16>
    %27 = vector.extract_strided_slice %10 {offsets = [0, 85], sizes = [32, 560], strides = [1, 1]} : vector<32x676xbf16> to vector<32x560xbf16>
    %28 = vector.extract_strided_slice %10 {offsets = [0, 86], sizes = [32, 560], strides = [1, 1]} : vector<32x676xbf16> to vector<32x560xbf16>
    %29 = vector.extract_strided_slice %10 {offsets = [0, 87], sizes = [32, 560], strides = [1, 1]} : vector<32x676xbf16> to vector<32x560xbf16>
    %30 = vector.extract_strided_slice %10 {offsets = [0, 88], sizes = [32, 560], strides = [1, 1]} : vector<32x676xbf16> to vector<32x560xbf16>
    %31 = vector.extract_strided_slice %10 {offsets = [0, 112], sizes = [32, 560], strides = [1, 1]} : vector<32x676xbf16> to vector<32x560xbf16>
    %32 = vector.extract_strided_slice %10 {offsets = [0, 113], sizes = [32, 560], strides = [1, 1]} : vector<32x676xbf16> to vector<32x560xbf16>
    %33 = vector.extract_strided_slice %10 {offsets = [0, 114], sizes = [32, 560], strides = [1, 1]} : vector<32x676xbf16> to vector<32x560xbf16>
    %34 = vector.extract_strided_slice %10 {offsets = [0, 115], sizes = [32, 560], strides = [1, 1]} : vector<32x676xbf16> to vector<32x560xbf16>
    %35 = vector.extract_strided_slice %10 {offsets = [0, 116], sizes = [32, 560], strides = [1, 1]} : vector<32x676xbf16> to vector<32x560xbf16>
    %36 = tpu.concatenate %11, %12, %13, %14, %15, %16, %17, %18, %19, %20, %21, %22, %23, %24, %25, %26 in 0 : vector<32x560xbf16>, vector<32x560xbf16>, vector<32x560xbf16>, vector<32x560xbf16>, vector<32x560xbf16>, vector<32x560xbf16>, vector<32x560xbf16>, vector<32x560xbf16>, vector<32x560xbf16>, vector<32x560xbf16>, vector<32x560xbf16>, vector<32x560xbf16>, vector<32x560xbf16>, vector<32x560xbf16>, vector<32x560xbf16>, vector<32x560xbf16> -> vector<512x560xbf16>
    %37 = tpu.concatenate %27, %28, %29, %30, %31, %32, %33, %34, %35 in 0 : vector<32x560xbf16>, vector<32x560xbf16>, vector<32x560xbf16>, vector<32x560xbf16>, vector<32x560xbf16>, vector<32x560xbf16>, vector<32x560xbf16>, vector<32x560xbf16>, vector<32x560xbf16> -> vector<288x560xbf16>
    %38 = tpu.concatenate %36, %37 in 0 : vector<512x560xbf16>, vector<288x560xbf16> -> vector<800x560xbf16>
    %c0_6 = arith.constant 0 : index
    %c0_7 = arith.constant 0 : index
    %39 = vector.load %arg4[%c0_6, %c0_7] : memref<32x800xbf16, #tpu.memory_space<vmem>>, vector<32x800xbf16>
    %cst_8 = arith.constant dense<0.000000e+00> : vector<32x560xf32>
    %40 = tpu.matmul %39, %38, %cst_8 {dimension_numbers = #tpu.dot_dimension_numbers<[1], [0], [0], [1], [0, 0, 1, 1], [], []>} : vector<32x800xbf16>, vector<800x560xbf16>, vector<32x560xf32> -> vector<32x560xf32>
    %c0_9 = arith.constant 0 : index
    %c0_10 = arith.constant 0 : index
    %41 = vector.load %arg5[%c0_9, %c0_10] : memref<32x1xf32, #tpu.memory_space<vmem>>, vector<32x1xf32>
    %42 = vector.broadcast %41 : vector<32x1xf32> to vector<32x560xf32>
    %43 = arith.addf %40, %42 : vector<32x560xf32>
    %44 = vector.extract_strided_slice %43 {offsets = [0, 0], sizes = [32, 523], strides = [1, 1]} : vector<32x560xf32> to vector<32x523xf32>
    %45 = vector.extract_strided_slice %43 {offsets = [0, 1], sizes = [32, 523], strides = [1, 1]} : vector<32x560xf32> to vector<32x523xf32>
    %46 = arith.maximumf %44, %45 : vector<32x523xf32>
    %47 = vector.extract_strided_slice %43 {offsets = [0, 28], sizes = [32, 523], strides = [1, 1]} : vector<32x560xf32> to vector<32x523xf32>
    %48 = vector.extract_strided_slice %43 {offsets = [0, 29], sizes = [32, 523], strides = [1, 1]} : vector<32x560xf32> to vector<32x523xf32>
    %49 = arith.maximumf %47, %48 : vector<32x523xf32>
    %50 = arith.maximumf %46, %49 : vector<32x523xf32>
    %51 = arith.truncf %50 : vector<32x523xf32> to vector<32x523xbf16>
    %c0_11 = arith.constant 0 : index
    %c0_12 = arith.constant 0 : index
    %52 = vector.load %arg6[%c0_11, %c0_12] : memref<523x104xbf16, #tpu.memory_space<vmem>>, vector<523x104xbf16>
    %cst_13 = arith.constant dense<0.000000e+00> : vector<32x104xf32>
    %53 = tpu.matmul %51, %52, %cst_13 {dimension_numbers = #tpu.dot_dimension_numbers<[1], [0], [0], [1], [0, 0, 1, 1], [], []>} : vector<32x523xbf16>, vector<523x104xbf16>, vector<32x104xf32> -> vector<32x104xf32>
    %cst_14 = arith.constant 0.000000e+00 : f32
    %54 = vector.broadcast %cst_14 : f32 to vector<32x104xf32>
    %55 = arith.maximumf %53, %54 : vector<32x104xf32>
    %56 = arith.truncf %55 : vector<32x104xf32> to vector<32x104xbf16>
    %57 = arith.index_cast %c0_i32 : i32 to index
    %c0_15 = arith.constant 0 : index
    %c0_16 = arith.constant 0 : index
    %58 = vector.load %arg7[%57, %c0_15, %c0_16] : memref<1x32x104xbf16, #tpu.memory_space<vmem>>, vector<1x32x104xbf16>
    %59 = vector.shape_cast %58 : vector<1x32x104xbf16> to vector<32x104xbf16>
    %60 = vector.shape_cast %56 : vector<32x104xbf16> to vector<1x32x104xbf16>
    tpu.vector_store %arg7[%57, %c0_15, %c0_16], %60 {strides = array<i32>} : memref<1x32x104xbf16, #tpu.memory_space<vmem>>, vector<1x32x104xbf16>,
    %c1_i32 = arith.constant 1 : i32
    return
  }
  func.func @transform_0(%arg0: i32) -> (i32, i32, i32) {
    %c0_i32 = arith.constant 0 : i32
    %c0_i32_0 = arith.constant 0 : i32
    %c0_i32_1 = arith.constant 0 : i32
    return %arg0, %c0_i32, %c0_i32_0 : i32, i32, i32
  }
  func.func @transform_1(%arg0: i32) -> (i32, i32) {
    %c0_i32 = arith.constant 0 : i32
    %c0_i32_0 = arith.constant 0 : i32
    %c0_i32_1 = arith.constant 0 : i32
    return %c0_i32, %c0_i32_0 : i32, i32
  }
  func.func @transform_2(%arg0: i32) -> (i32, i32) {
    %c0_i32 = arith.constant 0 : i32
    %c0_i32_0 = arith.constant 0 : i32
    %c0_i32_1 = arith.constant 0 : i32
    return %c0_i32, %c0_i32_0 : i32, i32
  }
  func.func @transform_3(%arg0: i32) -> (i32, i32) {
    %c0_i32 = arith.constant 0 : i32
    %c0_i32_0 = arith.constant 0 : i32
    %c0_i32_1 = arith.constant 0 : i32
    return %c0_i32, %c0_i32_0 : i32, i32
  }
  func.func @transform_4(%arg0: i32) -> (i32, i32) {
    %c0_i32 = arith.constant 0 : i32
    %c0_i32_0 = arith.constant 0 : i32
    %c0_i32_1 = arith.constant 0 : i32
    return %c0_i32, %c0_i32_0 : i32, i32
  }
  func.func @transform_5(%arg0: i32) -> (i32, i32) {
    %c0_i32 = arith.constant 0 : i32
    %c0_i32_0 = arith.constant 0 : i32
    %c0_i32_1 = arith.constant 0 : i32
    return %c0_i32, %c0_i32_0 : i32, i32
  }
  func.func @transform_6(%arg0: i32) -> (i32, i32, i32) {
    %c0_i32 = arith.constant 0 : i32
    %c0_i32_0 = arith.constant 0 : i32
    %c0_i32_1 = arith.constant 0 : i32
    return %arg0, %c0_i32, %c0_i32_0 : i32, i32, i32
  }
}

module attributes {stable_mosaic.version = 11 : i64} {
  func.func @_conv3_kernel(%arg0: i32, %arg1: memref<1x32x104xbf16, #tpu.memory_space<vmem>>, %arg2: memref<64x800xbf16, #tpu.memory_space<vmem>>, %arg3: memref<64x1xf32, #tpu.memory_space<vmem>>, %arg4: memref<45x9xbf16, #tpu.memory_space<vmem>>, %arg5: memref<1x64x9xbf16, #tpu.memory_space<vmem>>) attributes {dimension_semantics = [#tpu.dimension_semantics<parallel>], iteration_bounds = array<i64: 2>, scalar_prefetch = 0 : i64, scratch_operands = 0 : i64, tpu.core_type = #tpu.core_type<tc>, window_params = [{transform_indices = @transform_0, window_bounds = array<i64: 1, 32, 104>}, {pipeline_mode = #tpu.pipeline_mode<synchronous>, transform_indices = @transform_1, window_bounds = array<i64: 64, 800>}, {pipeline_mode = #tpu.pipeline_mode<synchronous>, transform_indices = @transform_2, window_bounds = array<i64: 64, 1>}, {pipeline_mode = #tpu.pipeline_mode<synchronous>, transform_indices = @transform_3, window_bounds = array<i64: 45, 9>}, {transform_indices = @transform_4, window_bounds = array<i64: 1, 64, 9>}]} {
    %c0_i32 = arith.constant 0 : i32
    %0 = arith.index_cast %c0_i32 : i32 to index
    %c0 = arith.constant 0 : index
    %c0_0 = arith.constant 0 : index
    %1 = vector.load %arg1[%0, %c0, %c0_0] : memref<1x32x104xbf16, #tpu.memory_space<vmem>>, vector<1x32x104xbf16>
    %2 = vector.shape_cast %1 : vector<1x32x104xbf16> to vector<32x104xbf16>
    %3 = vector.extract_strided_slice %2 {offsets = [0, 0], sizes = [32, 60], strides = [1, 1]} : vector<32x104xbf16> to vector<32x60xbf16>
    %4 = vector.extract_strided_slice %2 {offsets = [0, 1], sizes = [32, 60], strides = [1, 1]} : vector<32x104xbf16> to vector<32x60xbf16>
    %5 = vector.extract_strided_slice %2 {offsets = [0, 2], sizes = [32, 60], strides = [1, 1]} : vector<32x104xbf16> to vector<32x60xbf16>
    %6 = vector.extract_strided_slice %2 {offsets = [0, 3], sizes = [32, 60], strides = [1, 1]} : vector<32x104xbf16> to vector<32x60xbf16>
    %7 = vector.extract_strided_slice %2 {offsets = [0, 4], sizes = [32, 60], strides = [1, 1]} : vector<32x104xbf16> to vector<32x60xbf16>
    %8 = vector.extract_strided_slice %2 {offsets = [0, 10], sizes = [32, 60], strides = [1, 1]} : vector<32x104xbf16> to vector<32x60xbf16>
    %9 = vector.extract_strided_slice %2 {offsets = [0, 11], sizes = [32, 60], strides = [1, 1]} : vector<32x104xbf16> to vector<32x60xbf16>
    %10 = vector.extract_strided_slice %2 {offsets = [0, 12], sizes = [32, 60], strides = [1, 1]} : vector<32x104xbf16> to vector<32x60xbf16>
    %11 = vector.extract_strided_slice %2 {offsets = [0, 13], sizes = [32, 60], strides = [1, 1]} : vector<32x104xbf16> to vector<32x60xbf16>
    %12 = vector.extract_strided_slice %2 {offsets = [0, 14], sizes = [32, 60], strides = [1, 1]} : vector<32x104xbf16> to vector<32x60xbf16>
    %13 = vector.extract_strided_slice %2 {offsets = [0, 20], sizes = [32, 60], strides = [1, 1]} : vector<32x104xbf16> to vector<32x60xbf16>
    %14 = vector.extract_strided_slice %2 {offsets = [0, 21], sizes = [32, 60], strides = [1, 1]} : vector<32x104xbf16> to vector<32x60xbf16>
    %15 = vector.extract_strided_slice %2 {offsets = [0, 22], sizes = [32, 60], strides = [1, 1]} : vector<32x104xbf16> to vector<32x60xbf16>
    %16 = vector.extract_strided_slice %2 {offsets = [0, 23], sizes = [32, 60], strides = [1, 1]} : vector<32x104xbf16> to vector<32x60xbf16>
    %17 = vector.extract_strided_slice %2 {offsets = [0, 24], sizes = [32, 60], strides = [1, 1]} : vector<32x104xbf16> to vector<32x60xbf16>
    %18 = vector.extract_strided_slice %2 {offsets = [0, 30], sizes = [32, 60], strides = [1, 1]} : vector<32x104xbf16> to vector<32x60xbf16>
    %19 = vector.extract_strided_slice %2 {offsets = [0, 31], sizes = [32, 60], strides = [1, 1]} : vector<32x104xbf16> to vector<32x60xbf16>
    %20 = vector.extract_strided_slice %2 {offsets = [0, 32], sizes = [32, 60], strides = [1, 1]} : vector<32x104xbf16> to vector<32x60xbf16>
    %21 = vector.extract_strided_slice %2 {offsets = [0, 33], sizes = [32, 60], strides = [1, 1]} : vector<32x104xbf16> to vector<32x60xbf16>
    %22 = vector.extract_strided_slice %2 {offsets = [0, 34], sizes = [32, 60], strides = [1, 1]} : vector<32x104xbf16> to vector<32x60xbf16>
    %23 = vector.extract_strided_slice %2 {offsets = [0, 40], sizes = [32, 60], strides = [1, 1]} : vector<32x104xbf16> to vector<32x60xbf16>
    %24 = vector.extract_strided_slice %2 {offsets = [0, 41], sizes = [32, 60], strides = [1, 1]} : vector<32x104xbf16> to vector<32x60xbf16>
    %25 = vector.extract_strided_slice %2 {offsets = [0, 42], sizes = [32, 60], strides = [1, 1]} : vector<32x104xbf16> to vector<32x60xbf16>
    %26 = vector.extract_strided_slice %2 {offsets = [0, 43], sizes = [32, 60], strides = [1, 1]} : vector<32x104xbf16> to vector<32x60xbf16>
    %27 = vector.extract_strided_slice %2 {offsets = [0, 44], sizes = [32, 60], strides = [1, 1]} : vector<32x104xbf16> to vector<32x60xbf16>
    %28 = tpu.concatenate %3, %4, %5, %6, %7, %8, %9, %10, %11, %12, %13, %14, %15, %16, %17, %18 in 0 : vector<32x60xbf16>, vector<32x60xbf16>, vector<32x60xbf16>, vector<32x60xbf16>, vector<32x60xbf16>, vector<32x60xbf16>, vector<32x60xbf16>, vector<32x60xbf16>, vector<32x60xbf16>, vector<32x60xbf16>, vector<32x60xbf16>, vector<32x60xbf16>, vector<32x60xbf16>, vector<32x60xbf16>, vector<32x60xbf16>, vector<32x60xbf16> -> vector<512x60xbf16>
    %29 = tpu.concatenate %19, %20, %21, %22, %23, %24, %25, %26, %27 in 0 : vector<32x60xbf16>, vector<32x60xbf16>, vector<32x60xbf16>, vector<32x60xbf16>, vector<32x60xbf16>, vector<32x60xbf16>, vector<32x60xbf16>, vector<32x60xbf16>, vector<32x60xbf16> -> vector<288x60xbf16>
    %30 = tpu.concatenate %28, %29 in 0 : vector<512x60xbf16>, vector<288x60xbf16> -> vector<800x60xbf16>
    %c0_1 = arith.constant 0 : index
    %c0_2 = arith.constant 0 : index
    %31 = vector.load %arg2[%c0_1, %c0_2] : memref<64x800xbf16, #tpu.memory_space<vmem>>, vector<64x800xbf16>
    %cst = arith.constant dense<0.000000e+00> : vector<64x60xf32>
    %32 = tpu.matmul %31, %30, %cst {dimension_numbers = #tpu.dot_dimension_numbers<[1], [0], [0], [1], [0, 0, 1, 1], [], []>} : vector<64x800xbf16>, vector<800x60xbf16>, vector<64x60xf32> -> vector<64x60xf32>
    %c0_3 = arith.constant 0 : index
    %c0_4 = arith.constant 0 : index
    %33 = vector.load %arg3[%c0_3, %c0_4] : memref<64x1xf32, #tpu.memory_space<vmem>>, vector<64x1xf32>
    %34 = vector.broadcast %33 : vector<64x1xf32> to vector<64x60xf32>
    %35 = arith.addf %32, %34 : vector<64x60xf32>
    %36 = vector.extract_strided_slice %35 {offsets = [0, 0], sizes = [64, 45], strides = [1, 1]} : vector<64x60xf32> to vector<64x45xf32>
    %37 = vector.extract_strided_slice %35 {offsets = [0, 1], sizes = [64, 45], strides = [1, 1]} : vector<64x60xf32> to vector<64x45xf32>
    %38 = arith.maximumf %36, %37 : vector<64x45xf32>
    %39 = vector.extract_strided_slice %35 {offsets = [0, 10], sizes = [64, 45], strides = [1, 1]} : vector<64x60xf32> to vector<64x45xf32>
    %40 = vector.extract_strided_slice %35 {offsets = [0, 11], sizes = [64, 45], strides = [1, 1]} : vector<64x60xf32> to vector<64x45xf32>
    %41 = arith.maximumf %39, %40 : vector<64x45xf32>
    %42 = arith.maximumf %38, %41 : vector<64x45xf32>
    %43 = arith.truncf %42 : vector<64x45xf32> to vector<64x45xbf16>
    %c0_5 = arith.constant 0 : index
    %c0_6 = arith.constant 0 : index
    %44 = vector.load %arg4[%c0_5, %c0_6] : memref<45x9xbf16, #tpu.memory_space<vmem>>, vector<45x9xbf16>
    %cst_7 = arith.constant dense<0.000000e+00> : vector<64x9xf32>
    %45 = tpu.matmul %43, %44, %cst_7 {dimension_numbers = #tpu.dot_dimension_numbers<[1], [0], [0], [1], [0, 0, 1, 1], [], []>} : vector<64x45xbf16>, vector<45x9xbf16>, vector<64x9xf32> -> vector<64x9xf32>
    %cst_8 = arith.constant 0.000000e+00 : f32
    %46 = vector.broadcast %cst_8 : f32 to vector<64x9xf32>
    %47 = arith.maximumf %45, %46 : vector<64x9xf32>
    %48 = arith.truncf %47 : vector<64x9xf32> to vector<64x9xbf16>
    %49 = arith.index_cast %c0_i32 : i32 to index
    %c0_9 = arith.constant 0 : index
    %c0_10 = arith.constant 0 : index
    %50 = vector.load %arg5[%49, %c0_9, %c0_10] : memref<1x64x9xbf16, #tpu.memory_space<vmem>>, vector<1x64x9xbf16>
    %51 = vector.shape_cast %50 : vector<1x64x9xbf16> to vector<64x9xbf16>
    %52 = vector.shape_cast %48 : vector<64x9xbf16> to vector<1x64x9xbf16>
    tpu.vector_store %arg5[%49, %c0_9, %c0_10], %52 {strides = array<i32>} : memref<1x64x9xbf16, #tpu.memory_space<vmem>>, vector<1x64x9xbf16>,
    %c1_i32 = arith.constant 1 : i32
    return
  }
  func.func @transform_0(%arg0: i32) -> (i32, i32, i32) {
    %c0_i32 = arith.constant 0 : i32
    %c0_i32_0 = arith.constant 0 : i32
    %c0_i32_1 = arith.constant 0 : i32
    return %arg0, %c0_i32, %c0_i32_0 : i32, i32, i32
  }
  func.func @transform_1(%arg0: i32) -> (i32, i32) {
    %c0_i32 = arith.constant 0 : i32
    %c0_i32_0 = arith.constant 0 : i32
    %c0_i32_1 = arith.constant 0 : i32
    return %c0_i32, %c0_i32_0 : i32, i32
  }
  func.func @transform_2(%arg0: i32) -> (i32, i32) {
    %c0_i32 = arith.constant 0 : i32
    %c0_i32_0 = arith.constant 0 : i32
    %c0_i32_1 = arith.constant 0 : i32
    return %c0_i32, %c0_i32_0 : i32, i32
  }
  func.func @transform_3(%arg0: i32) -> (i32, i32) {
    %c0_i32 = arith.constant 0 : i32
    %c0_i32_0 = arith.constant 0 : i32
    %c0_i32_1 = arith.constant 0 : i32
    return %c0_i32, %c0_i32_0 : i32, i32
  }
  func.func @transform_4(%arg0: i32) -> (i32, i32, i32) {
    %c0_i32 = arith.constant 0 : i32
    %c0_i32_0 = arith.constant 0 : i32
    %c0_i32_1 = arith.constant 0 : i32
    return %arg0, %c0_i32, %c0_i32_0 : i32, i32, i32
  }
}

module attributes {stable_mosaic.version = 11 : i64} {
  func.func @_fc_head_kernel(%arg0: i32, %arg1: memref<2x576xbf16, #tpu.memory_space<vmem>>, %arg2: memref<576x256xbf16, #tpu.memory_space<vmem>>, %arg3: memref<1x256xf32, #tpu.memory_space<vmem>>, %arg4: memref<256x10xbf16, #tpu.memory_space<vmem>>, %arg5: memref<1x10xf32, #tpu.memory_space<vmem>>, %arg6: memref<2x10xf32, #tpu.memory_space<vmem>>) attributes {dimension_semantics = [#tpu.dimension_semantics<parallel>], iteration_bounds = array<i64: 1>, scalar_prefetch = 0 : i64, scratch_operands = 0 : i64, tpu.core_type = #tpu.core_type<tc>, window_params = [{transform_indices = @transform_0, window_bounds = array<i64: 2, 576>}, {pipeline_mode = #tpu.pipeline_mode<synchronous>, transform_indices = @transform_1, window_bounds = array<i64: 576, 256>}, {pipeline_mode = #tpu.pipeline_mode<synchronous>, transform_indices = @transform_2, window_bounds = array<i64: 1, 256>}, {pipeline_mode = #tpu.pipeline_mode<synchronous>, transform_indices = @transform_3, window_bounds = array<i64: 256, 10>}, {pipeline_mode = #tpu.pipeline_mode<synchronous>, transform_indices = @transform_4, window_bounds = array<i64: 1, 10>}, {transform_indices = @transform_5, window_bounds = array<i64: 2, 10>}]} {
    %c0 = arith.constant 0 : index
    %c0_0 = arith.constant 0 : index
    %0 = vector.load %arg1[%c0, %c0_0] : memref<2x576xbf16, #tpu.memory_space<vmem>>, vector<2x576xbf16>
    %c0_1 = arith.constant 0 : index
    %c0_2 = arith.constant 0 : index
    %1 = vector.load %arg2[%c0_1, %c0_2] : memref<576x256xbf16, #tpu.memory_space<vmem>>, vector<576x256xbf16>
    %cst = arith.constant dense<0.000000e+00> : vector<2x256xf32>
    %2 = tpu.matmul %0, %1, %cst {dimension_numbers = #tpu.dot_dimension_numbers<[1], [0], [0], [1], [0, 0, 1, 1], [], []>} : vector<2x576xbf16>, vector<576x256xbf16>, vector<2x256xf32> -> vector<2x256xf32>
    %c0_3 = arith.constant 0 : index
    %c0_4 = arith.constant 0 : index
    %3 = vector.load %arg3[%c0_3, %c0_4] : memref<1x256xf32, #tpu.memory_space<vmem>>, vector<1x256xf32>
    %4 = vector.broadcast %3 : vector<1x256xf32> to vector<2x256xf32>
    %5 = arith.addf %2, %4 : vector<2x256xf32>
    %cst_5 = arith.constant 0.000000e+00 : f32
    %6 = vector.broadcast %cst_5 : f32 to vector<2x256xf32>
    %7 = arith.maximumf %5, %6 : vector<2x256xf32>
    %8 = arith.truncf %7 : vector<2x256xf32> to vector<2x256xbf16>
    %c0_6 = arith.constant 0 : index
    %c0_7 = arith.constant 0 : index
    %9 = vector.load %arg4[%c0_6, %c0_7] : memref<256x10xbf16, #tpu.memory_space<vmem>>, vector<256x10xbf16>
    %cst_8 = arith.constant dense<0.000000e+00> : vector<2x10xf32>
    %10 = tpu.matmul %8, %9, %cst_8 {dimension_numbers = #tpu.dot_dimension_numbers<[1], [0], [0], [1], [0, 0, 1, 1], [], []>} : vector<2x256xbf16>, vector<256x10xbf16>, vector<2x10xf32> -> vector<2x10xf32>
    %c0_9 = arith.constant 0 : index
    %c0_10 = arith.constant 0 : index
    %11 = vector.load %arg5[%c0_9, %c0_10] : memref<1x10xf32, #tpu.memory_space<vmem>>, vector<1x10xf32>
    %12 = vector.broadcast %11 : vector<1x10xf32> to vector<2x10xf32>
    %13 = arith.addf %10, %12 : vector<2x10xf32>
    %cst_11 = arith.constant dense<0xFF800000> : vector<2xf32>
    %14 = vector.multi_reduction <maximumf>, %13, %cst_11 [1] : vector<2x10xf32> to vector<2xf32>
    %15 = vector.shape_cast %14 : vector<2xf32> to vector<2x1xf32>
    %16 = vector.broadcast %15 : vector<2x1xf32> to vector<2x10xf32>
    %17 = arith.subf %13, %16 : vector<2x10xf32>
    %18 = math.exp %17 : vector<2x10xf32>
    %cst_12 = arith.constant dense<0.000000e+00> : vector<2xf32>
    %19 = vector.multi_reduction <add>, %18, %cst_12 [1] : vector<2x10xf32> to vector<2xf32>
    %20 = vector.shape_cast %19 : vector<2xf32> to vector<2x1xf32>
    %21 = math.log %20 : vector<2x1xf32>
    %22 = arith.addf %21, %15 : vector<2x1xf32>
    %23 = vector.broadcast %22 : vector<2x1xf32> to vector<2x10xf32>
    %24 = arith.subf %13, %23 : vector<2x10xf32>
    %c0_13 = arith.constant 0 : index
    %c0_14 = arith.constant 0 : index
    %25 = vector.load %arg6[%c0_13, %c0_14] : memref<2x10xf32, #tpu.memory_space<vmem>>, vector<2x10xf32>
    tpu.vector_store %arg6[%c0_13, %c0_14], %24 {strides = array<i32>} : memref<2x10xf32, #tpu.memory_space<vmem>>, vector<2x10xf32>,
    return
  }
  func.func @transform_0(%arg0: i32) -> (i32, i32) {
    %c0_i32 = arith.constant 0 : i32
    %c0_i32_0 = arith.constant 0 : i32
    return %arg0, %c0_i32 : i32, i32
  }
  func.func @transform_1(%arg0: i32) -> (i32, i32) {
    %c0_i32 = arith.constant 0 : i32
    %c0_i32_0 = arith.constant 0 : i32
    %c0_i32_1 = arith.constant 0 : i32
    return %c0_i32, %c0_i32_0 : i32, i32
  }
  func.func @transform_2(%arg0: i32) -> (i32, i32) {
    %c0_i32 = arith.constant 0 : i32
    %c0_i32_0 = arith.constant 0 : i32
    %c0_i32_1 = arith.constant 0 : i32
    return %c0_i32, %c0_i32_0 : i32, i32
  }
  func.func @transform_3(%arg0: i32) -> (i32, i32) {
    %c0_i32 = arith.constant 0 : i32
    %c0_i32_0 = arith.constant 0 : i32
    %c0_i32_1 = arith.constant 0 : i32
    return %c0_i32, %c0_i32_0 : i32, i32
  }
  func.func @transform_4(%arg0: i32) -> (i32, i32) {
    %c0_i32 = arith.constant 0 : i32
    %c0_i32_0 = arith.constant 0 : i32
    %c0_i32_1 = arith.constant 0 : i32
    return %c0_i32, %c0_i32_0 : i32, i32
  }
  func.func @transform_5(%arg0: i32) -> (i32, i32) {
    %c0_i32 = arith.constant 0 : i32
    %c0_i32_0 = arith.constant 0 : i32
    return %arg0, %c0_i32 : i32, i32
  }
}

</mosaic_0001>

<llo_original>
// kernel: forward.4
$region0: #{forward.4}
  #allocation0 [shape = 'u32[]', space=smem, size = 0x4, offset = 0x4, fixed_abs, tag = 'smem constant byte address 0x4 - core index']
  #allocation1 [shape = 'u32[144,128]{1,0:T(1,128)}', space=vmem, size = 0x12000, scoped, tag = 'internal scratch']
  %s0 = inlined_call_operand.vmem [shape: bf16[2,32,104], index: 0, kind: input, shape index: {}]
  %s1 = inlined_call_operand.vmem [shape: bf16[64,800], index: 1, kind: input, shape index: {}]
  %s2 = inlined_call_operand.vmem [shape: f32[64,1], index: 2, kind: input, shape index: {}]
  %s3 = inlined_call_operand.vmem [shape: bf16[45,9], index: 3, kind: input, shape index: {}]
  %s4 = inlined_call_operand.vmem [shape: bf16[2,64,9], index: 4, kind: output, shape index: {}]
  %s5 = sld [smem:[#allocation0]]
  $region49: #{forward.4} parent=0
    _
  %s7 = ssub.s32 1, %s5
  %s8 = scalar_select 0, %s7, %s5
  loop: start=0, step=1, limit=4
  $region2: #{forward.4} parent=0 // loop_pre_header
    _
  $region3: #{forward.4} parent=0 // loop_header
    %s10 = sphi 0, %s14
    %p11 = scmp.ge.s32.totalorder %s10, 4
    %s20 = sphi 0, %s22
    %s23 = sphi 0, %s20
    %s24 = sphi 0, %s23
    %s40 = sphi 0, %s24
    %s44 = sphi 0, %s44
    %s46 = sphi 0, %s44
    %s47 = sphi 0, %s46
    %s61 = sphi 0, %s47
    %s65 = sphi 0, %s65
    %s67 = sphi 0, %s65
    %s68 = sphi 0, %s67
    %s82 = sphi 0, %s68
    %s86 = sphi 0, %s86
    %s88 = sphi 0, %s86
    %s89 = sphi 0, %s88
    %s103 = sphi 0, %s89
    %s109 = sphi 0, %s111
    %s112 = sphi 0, %s109
    %s113 = sphi 0, %s112
    %s129 = sphi 0, %s113
  $region4: #{forward.4} parent=0 // loop_header_branch
    %13 = sbr.rel (%p11) target = $region8
  $region5: #{forward.4} parent=0 // loop_body
    %s15 = ssub.s32 %s10, 1
    %s16 = ssub.s32 %s10, 2
    %s17 = sadd.s32 %s10, 1
    %s18 = ssub.s32 %s10, %s17
    %p19 = scmp.eq.s32.totalorder %s18, 0
    %s21 = sadd.s32 %s20, 1
    %s22 = scalar_select %p19, %s20, %s21
    %p25 = pneg %p19
    %p26 = scmp.eq.s32.totalorder %s10, 1
    %p27 = por %p25, %p26
    %p28 = scmp.ne.s32.totalorder %s20, %s23
    %p29 = scmp.eq.s32.totalorder %s10, 0
    %p30 = por %p28, %p29
    %p31 = scmp.ne.s32.totalorder %s20, %s23
    %p32 = scmp.eq.s32.totalorder %s15, 1
    %p33 = por %p31, %p32
    %p34 = scmp.ne.s32.totalorder %s23, %s24
    %p35 = scmp.eq.s32.totalorder %s15, 0
    %p36 = por %p34, %p35
    %p37 = scmp.ne.s32.totalorder %s23, %s24
    %p38 = scmp.eq.s32.totalorder %s16, 1
    %p39 = por %p37, %p38
    %p41 = scmp.ne.s32.totalorder %s24, %s40
    %p42 = scmp.eq.s32.totalorder %s16, 0
    %p43 = por %p41, %p42
    %s45 = sadd.s32 %s44, 1
    %p48 = scmp.eq.s32.totalorder %s10, 1
    %p49 = scmp.ne.s32.totalorder %s44, %s46
    %p50 = scmp.eq.s32.totalorder %s10, 0
    %p51 = por %p49, %p50
    %p52 = scmp.ne.s32.totalorder %s44, %s46
    %p53 = scmp.eq.s32.totalorder %s15, 1
    %p54 = por %p52, %p53
    %p55 = scmp.ne.s32.totalorder %s46, %s47
    %p56 = scmp.eq.s32.totalorder %s15, 0
    %p57 = por %p55, %p56
    %p58 = scmp.ne.s32.totalorder %s46, %s47
    %p59 = scmp.eq.s32.totalorder %s16, 1
    %p60 = por %p58, %p59
    %p62 = scmp.ne.s32.totalorder %s47, %s61
    %p63 = scmp.eq.s32.totalorder %s16, 0
    %p64 = por %p62, %p63
    %s66 = sadd.s32 %s65, 1
    %p69 = scmp.eq.s32.totalorder %s10, 1
    %p70 = scmp.ne.s32.totalorder %s65, %s67
    %p71 = scmp.eq.s32.totalorder %s10, 0
    %p72 = por %p70, %p71
    %p73 = scmp.ne.s32.totalorder %s65, %s67
    %p74 = scmp.eq.s32.totalorder %s15, 1
    %p75 = por %p73, %p74
    %p76 = scmp.ne.s32.totalorder %s67, %s68
    %p77 = scmp.eq.s32.totalorder %s15, 0
    %p78 = por %p76, %p77
    %p79 = scmp.ne.s32.totalorder %s67, %s68
    %p80 = scmp.eq.s32.totalorder %s16, 1
    %p81 = por %p79, %p80
    %p83 = scmp.ne.s32.totalorder %s68, %s82
    %p84 = scmp.eq.s32.totalorder %s16, 0
    %p85 = por %p83, %p84
    %s87 = sadd.s32 %s86, 1
    %p90 = scmp.eq.s32.totalorder %s10, 1
    %p91 = scmp.ne.s32.totalorder %s86, %s88
    %p92 = scmp.eq.s32.totalorder %s10, 0
    %p93 = por %p91, %p92
    %p94 = scmp.ne.s32.totalorder %s86, %s88
    %p95 = scmp.eq.s32.totalorder %s15, 1
    %p96 = por %p94, %p95
    %p97 = scmp.ne.s32.totalorder %s88, %s89
    %p98 = scmp.eq.s32.totalorder %s15, 0
    %p99 = por %p97, %p98
    %p100 = scmp.ne.s32.totalorder %s88, %s89
    %p101 = scmp.eq.s32.totalorder %s16, 1
    %p102 = por %p100, %p101
    %p104 = scmp.ne.s32.totalorder %s89, %s103
    %p105 = scmp.eq.s32.totalorder %s16, 0
    %p106 = por %p104, %p105
    %s107 = ssub.s32 %s10, %s17
    %p108 = scmp.eq.s32.totalorder %s107, 0
    %s110 = sadd.s32 %s109, 1
    %s111 = scalar_select %p108, %s109, %s110
    %p114 = pneg %p108
    %p115 = scmp.eq.s32.totalorder %s10, 1
    %p116 = por %p114, %p115
    %p117 = scmp.ne.s32.totalorder %s109, %s112
    %p118 = scmp.eq.s32.totalorder %s10, 0
    %p119 = por %p117, %p118
    %p120 = scmp.ne.s32.totalorder %s109, %s112
    %p121 = scmp.eq.s32.totalorder %s15, 1
    %p122 = por %p120, %p121
    %p123 = scmp.ne.s32.totalorder %s112, %s113
    %p124 = scmp.eq.s32.totalorder %s15, 0
    %p125 = por %p123, %p124
    %p126 = scmp.ne.s32.totalorder %s112, %s113
    %p127 = scmp.eq.s32.totalorder %s16, 1
    %p128 = por %p126, %p127
    %p130 = scmp.ne.s32.totalorder %s113, %s129
    %p131 = scmp.eq.s32.totalorder %s16, 0
    %p132 = por %p130, %p131
    %p133 = scmp.le.s32.totalorder 1, %s10
    %p134 = scmp.lt.s32.totalorder %s10, 3
    %p135 = pnand %p133, %p134
    %p136 = pneg %p135
    // Predicated region
    $region9: #{forward.4} parent=5 // pred_check
      _
    $region10: #{forward.4} parent=5 // pred_check_branch
      %138 = sbr.rel (%p135) target = $region12
    $region11: #{forward.4} parent=5 // pred_region
      %s139 = ssub.s32 %s10, 1
      // Predicated region
      $region13: #{forward.4} parent=11 // pred_check
        %p140 = pneg %p57
      $region14: #{forward.4} parent=11 // pred_check_branch
        %142 = sbr.rel (%p140) target = $region16
      $region15: #{forward.4} parent=11 // pred_region
        _
      $region16: #{forward.4} parent=11 // pred_fallthru
        _
      // Predicated region
      $region17: #{forward.4} parent=11 // pred_check
        %p143 = pneg %p78
      $region18: #{forward.4} parent=11 // pred_check_branch
        %145 = sbr.rel (%p143) target = $region20
      $region19: #{forward.4} parent=11 // pred_region
        _
      $region20: #{forward.4} parent=11 // pred_fallthru
        _
      // Predicated region
      $region21: #{forward.4} parent=11 // pred_check
        %p146 = pneg %p99
      $region22: #{forward.4} parent=11 // pred_check_branch
        %148 = sbr.rel (%p146) target = $region24
      $region23: #{forward.4} parent=11 // pred_region
        _
      $region24: #{forward.4} parent=11 // pred_fallthru
        _
    $region12: #{forward.4} parent=5 // pred_fallthru
      _
    %p149 = scmp.lt.s32.totalorder %s10, 2
    // Predicated region
    $region25: #{forward.4} parent=5 // pred_check
      %p150 = pneg %p149
    $region26: #{forward.4} parent=5 // pred_check_branch
      %152 = sbr.rel (%p150) target = $region28
    $region27: #{forward.4} parent=5 // pred_region
      // Predicated region
      $region29: #{forward.4} parent=27 // pred_check
        %p153 = pneg %p30
      $region30: #{forward.4} parent=27 // pred_check_branch
        %155 = sbr.rel (%p153) target = $region32
      $region31: #{forward.4} parent=27 // pred_region
        %p156 = scmp.lt.s32.totalorder %s10, 1
        %s157 = scalar_select %p156, %s10, 1
        %s158 = smul.addr %s157, 4
        %s159 = smul.addr %s158, 4
        %s160 = scalar_lea.vmem %s0, %s159
      $region32: #{forward.4} parent=27 // pred_fallthru
        _
    $region28: #{forward.4} parent=5 // pred_fallthru
      _
    %p161 = scmp.le.s32.totalorder 1, %s10
    %p162 = scmp.lt.s32.totalorder %s10, 3
    %p163 = pnand %p161, %p162
    %p164 = pneg %p163
    // Predicated region
    $region33: #{forward.4} parent=5 // pred_check
      _
    $region34: #{forward.4} parent=5 // pred_check_branch
      %166 = sbr.rel (%p163) target = $region36
    $region35: #{forward.4} parent=5 // pred_region
      %s167 = ssub.s32 %s10, 1
      %p168 = scmp.lt.s32.totalorder %s15, 1
      %s169 = scalar_select %p168, %s15, 1
      %s170 = smul.addr %s169, 4
      %s171 = smul.addr %s170, 4
      %s172 = scalar_lea.vmem %s0, %s171
      %p173 = pneg %p36
      %p174 = pneg %p33
      %p175 = pneg %p57
      %p176 = pneg %p54
      %p177 = pneg %p78
      %p178 = pneg %p75
      %p179 = pneg %p99
      %p180 = pneg %p96
      %p181 = pneg %p125
      %p182 = pneg %p122
      %p183 = scmp.lt.s32.totalorder %s15, 1
      %s184 = scalar_select %p183, %s15, 1
      %s185 = smul.addr %s184, 8
      %s186 = smul.addr %s185, 4
      %s187 = scalar_lea.vmem %s4, %s186
      %p188 = scmp.lt.s32.totalorder %s15, 1
      %s189 = scalar_select %p188, %s15, 1
      %s190 = smul.addr %s189, 4
      %s191 = smul.addr %s190, 4
      %s192 = scalar_lea.vmem %s0, %s191
      %p193 = scmp.lt.s32.totalorder %s15, 1
      %s194 = scalar_select %p193, %s15, 1
      %s195 = smul.addr %s194, 8
      %s196 = smul.addr %s195, 4
      %s197 = scalar_lea.vmem %s4, %s196
      %v199 = vld [vmem:[%s192] sm:$0xf]
      %v200 = vld [vmem:[%s192 + $0x4] sm:$0xf]
      %v201 = vld [vmem:[%s192 + $0x8] sm:$0xf]
      %v202 = vld [vmem:[%s192 + $0xc] sm:$0xf]
      %v207 = vunpack.c.l.b16 %v199
      %v208 = vunpack.c.l.b16 %v200
      %v209 = vunpack.c.l.b16 %v201
      %v210 = vunpack.c.l.b16 %v202
      %v211 = vpack.c.b16 %v208, %v207
      %v212 = vpack.c.b16 %v210, %v209
      %215 = vrot.lane.b32.xlu0 %v211, 127
      %v216 = vpop.permute.xlu0 %215
      %217 = vrot.lane.b32.xlu0 %v212, 127
      %v218 = vpop.permute.xlu0 %217
      %221 = vrot.lane.b32.xlu0 %v211, 126
      %v222 = vpop.permute.xlu0 %221
      %223 = vrot.lane.b32.xlu0 %v212, 126
      %v224 = vpop.permute.xlu0 %223
      %227 = vrot.lane.b32.xlu0 %v211, 125
      %v228 = vpop.permute.xlu0 %227
      %229 = vrot.lane.b32.xlu0 %v212, 125
      %v230 = vpop.permute.xlu0 %229
      %233 = vrot.lane.b32.xlu0 %v211, 124
      %v234 = vpop.permute.xlu0 %233
      %235 = vrot.lane.b32.xlu0 %v212, 124
      %v236 = vpop.permute.xlu0 %235
      %239 = vrot.lane.b32.xlu0 %v211, 118
      %v240 = vpop.permute.xlu0 %239
      %241 = vrot.lane.b32.xlu0 %v212, 118
      %v242 = vpop.permute.xlu0 %241
      %245 = vrot.lane.b32.xlu0 %v211, 117
      %v246 = vpop.permute.xlu0 %245
      %247 = vrot.lane.b32.xlu0 %v212, 117
      %v248 = vpop.permute.xlu0 %247
      %251 = vrot.lane.b32.xlu0 %v211, 116
      %v252 = vpop.permute.xlu0 %251
      %253 = vrot.lane.b32.xlu0 %v212, 116
      %v254 = vpop.permute.xlu0 %253
      %257 = vrot.lane.b32.xlu0 %v211, 115
      %v258 = vpop.permute.xlu0 %257
      %259 = vrot.lane.b32.xlu0 %v212, 115
      %v260 = vpop.permute.xlu0 %259
      %263 = vrot.lane.b32.xlu0 %v211, 114
      %v264 = vpop.permute.xlu0 %263
      %265 = vrot.lane.b32.xlu0 %v212, 114
      %v266 = vpop.permute.xlu0 %265
      %269 = vrot.lane.b32.xlu0 %v211, 108
      %v270 = vpop.permute.xlu0 %269
      %271 = vrot.lane.b32.xlu0 %v212, 108
      %v272 = vpop.permute.xlu0 %271
      %275 = vrot.lane.b32.xlu0 %v211, 107
      %v276 = vpop.permute.xlu0 %275
      %277 = vrot.lane.b32.xlu0 %v212, 107
      %v278 = vpop.permute.xlu0 %277
      %281 = vrot.lane.b32.xlu0 %v211, 106
      %v282 = vpop.permute.xlu0 %281
      %283 = vrot.lane.b32.xlu0 %v212, 106
      %v284 = vpop.permute.xlu0 %283
      %287 = vrot.lane.b32.xlu0 %v211, 105
      %v288 = vpop.permute.xlu0 %287
      %289 = vrot.lane.b32.xlu0 %v212, 105
      %v290 = vpop.permute.xlu0 %289
      %293 = vrot.lane.b32.xlu0 %v211, 104
      %v294 = vpop.permute.xlu0 %293
      %295 = vrot.lane.b32.xlu0 %v212, 104
      %v296 = vpop.permute.xlu0 %295
      %299 = vrot.lane.b32.xlu0 %v211, 98
      %v300 = vpop.permute.xlu0 %299
      %301 = vrot.lane.b32.xlu0 %v212, 98
      %v302 = vpop.permute.xlu0 %301
      %305 = vrot.lane.b32.xlu0 %v211, 119
      %v306 = vpop.permute.xlu0 %305
      %307 = vrot.lane.b32.xlu0 %v212, 119
      %v308 = vpop.permute.xlu0 %307
      %309 = vrot.lane.b32.xlu0 %v211, 97
      %v310 = vpop.permute.xlu0 %309
      %311 = vrot.lane.b32.xlu0 %v212, 97
      %v312 = vpop.permute.xlu0 %311
      %313 = vrot.lane.b32.xlu0 %v216, 97
      %v314 = vpop.permute.xlu0 %313
      %315 = vrot.lane.b32.xlu0 %v218, 97
      %v316 = vpop.permute.xlu0 %315
      %317 = vrot.lane.b32.xlu0 %v222, 97
      %v318 = vpop.permute.xlu0 %317
      %319 = vrot.lane.b32.xlu0 %v224, 97
      %v320 = vpop.permute.xlu0 %319
      %321 = vrot.lane.b32.xlu0 %v228, 97
      %v322 = vpop.permute.xlu0 %321
      %323 = vrot.lane.b32.xlu0 %v230, 97
      %v324 = vpop.permute.xlu0 %323
      %325 = vrot.lane.b32.xlu0 %v306, 97
      %v326 = vpop.permute.xlu0 %325
      %327 = vrot.lane.b32.xlu0 %v308, 97
      %v328 = vpop.permute.xlu0 %327
      %329 = vrot.lane.b32.xlu0 %v240, 97
      %v330 = vpop.permute.xlu0 %329
      %331 = vrot.lane.b32.xlu0 %v242, 97
      %v332 = vpop.permute.xlu0 %331
      %333 = vrot.lane.b32.xlu0 %v246, 97
      %v334 = vpop.permute.xlu0 %333
      %335 = vrot.lane.b32.xlu0 %v248, 97
      %v336 = vpop.permute.xlu0 %335
      %337 = vrot.lane.b32.xlu0 %v252, 97
      %v338 = vpop.permute.xlu0 %337
      %339 = vrot.lane.b32.xlu0 %v254, 97
      %v340 = vpop.permute.xlu0 %339
      %341 = vrot.lane.b32.xlu0 %v258, 97
      %v342 = vpop.permute.xlu0 %341
      %343 = vrot.lane.b32.xlu0 %v260, 97
      %v344 = vpop.permute.xlu0 %343
      %v363 = vld [vmem:[%s1] sm:$0xff]
      %v364 = vld [vmem:[%s1 + $0x8] sm:$0xff]
      %v365 = vld [vmem:[%s1 + $0x10] sm:$0xff]
      %v366 = vld [vmem:[%s1 + $0x18] sm:$0xf]
      %v367 = vld [vmem:[%s1 + $0x1c] sm:$0xff]
      %v368 = vld [vmem:[%s1 + $0x24] sm:$0xff]
      %v369 = vld [vmem:[%s1 + $0x2c] sm:$0xff]
      %v370 = vld [vmem:[%s1 + $0x34] sm:$0xf]
      %v371 = vld [vmem:[%s1 + $0x38] sm:$0xff]
      %v372 = vld [vmem:[%s1 + $0x40] sm:$0xff]
      %v373 = vld [vmem:[%s1 + $0x48] sm:$0xff]
      %v374 = vld [vmem:[%s1 + $0x50] sm:$0xf]
      %v375 = vld [vmem:[%s1 + $0x54] sm:$0xff]
      %v376 = vld [vmem:[%s1 + $0x5c] sm:$0xff]
      %v377 = vld [vmem:[%s1 + $0x64] sm:$0xff]
      %v378 = vld [vmem:[%s1 + $0x6c] sm:$0xf]
      %v379 = vld [vmem:[%s1 + $0x70] sm:$0xff]
      %v380 = vld [vmem:[%s1 + $0x78] sm:$0xff]
      %v381 = vld [vmem:[%s1 + $0x80] sm:$0xff]
      %v382 = vld [vmem:[%s1 + $0x88] sm:$0xf]
      %v383 = vld [vmem:[%s1 + $0x8c] sm:$0xff]
      %v384 = vld [vmem:[%s1 + $0x94] sm:$0xff]
      %v385 = vld [vmem:[%s1 + $0x9c] sm:$0xff]
      %v386 = vld [vmem:[%s1 + $0xa4] sm:$0xf]
      %v387 = vld [vmem:[%s1 + $0xa8] sm:$0xff]
      %v388 = vld [vmem:[%s1 + $0xb0] sm:$0xff]
      %v389 = vld [vmem:[%s1 + $0xb8] sm:$0xff]
      %v390 = vld [vmem:[%s1 + $0xc0] sm:$0xf]
      %v391 = vld [vmem:[%s1 + $0xc4] sm:$0xff]
      %v392 = vld [vmem:[%s1 + $0xcc] sm:$0xff]
      %v393 = vld [vmem:[%s1 + $0xd4] sm:$0xff]
      %v394 = vld [vmem:[%s1 + $0xdc] sm:$0xf]
      %v395 = vld [vmem:[%s2] sm:$0xff]
      %v396 = vld [vmem:[%s2 + $0x8] sm:$0xff]
      %v397 = vld [vmem:[%s2 + $0x10] sm:$0xff]
      %v398 = vld [vmem:[%s2 + $0x18] sm:$0xff]
      %v399 = vld [vmem:[%s2 + $0x20] sm:$0xff]
      %v400 = vld [vmem:[%s2 + $0x28] sm:$0xff]
      %v401 = vld [vmem:[%s2 + $0x30] sm:$0xff]
      %v402 = vld [vmem:[%s2 + $0x38] sm:$0xff]
      %404 = vset.pattern.permute.xlu0 0
      %405 = vperm.xlu0 %404, %v395
      %v406 = vpop.permute.xlu0 %405
      %409 = vset.pattern.permute.xlu0 0
      %410 = vperm.xlu0 %409, %v396
      %v411 = vpop.permute.xlu0 %410
      %414 = vset.pattern.permute.xlu0 0
      %415 = vperm.xlu0 %414, %v397
      %v416 = vpop.permute.xlu0 %415
      %419 = vset.pattern.permute.xlu0 0
      %420 = vperm.xlu0 %419, %v398
      %v421 = vpop.permute.xlu0 %420
      %424 = vset.pattern.permute.xlu0 0
      %425 = vperm.xlu0 %424, %v399
      %v426 = vpop.permute.xlu0 %425
      %429 = vset.pattern.permute.xlu0 0
      %430 = vperm.xlu0 %429, %v400
      %v431 = vpop.permute.xlu0 %430
      %434 = vset.pattern.permute.xlu0 0
      %435 = vperm.xlu0 %434, %v401
      %v436 = vpop.permute.xlu0 %435
      %439 = vset.pattern.permute.xlu0 0
      %440 = vperm.xlu0 %439, %v402
      %v441 = vpop.permute.xlu0 %440
      %v475 = vunpack.c.l.b16 %v363
      %v476 = vunpack.c.h.b16 %v363
      %v477 = vunpack.c.l.b16 %v364
      %v478 = vunpack.c.h.b16 %v364
      %v479 = vunpack.c.l.b16 %v365
      %v480 = vunpack.c.h.b16 %v365
      %v481 = vunpack.c.l.b16 %v366
      %v482 = vunpack.c.l.b16 %v367
      %v483 = vunpack.c.h.b16 %v367
      %v484 = vunpack.c.l.b16 %v368
      %v485 = vunpack.c.h.b16 %v368
      %v486 = vunpack.c.l.b16 %v369
      %v487 = vunpack.c.h.b16 %v369
      %v488 = vunpack.c.l.b16 %v370
      %v489 = vunpack.c.l.b16 %v371
      %v490 = vunpack.c.h.b16 %v371
      %v491 = vunpack.c.l.b16 %v372
      %v492 = vunpack.c.h.b16 %v372
      %v493 = vunpack.c.l.b16 %v373
      %v494 = vunpack.c.h.b16 %v373
      %v495 = vunpack.c.l.b16 %v374
      %v496 = vunpack.c.l.b16 %v375
      %v497 = vunpack.c.h.b16 %v375
      %v498 = vunpack.c.l.b16 %v376
      %v499 = vunpack.c.h.b16 %v376
      %v500 = vunpack.c.l.b16 %v377
      %v501 = vunpack.c.h.b16 %v377
      %v502 = vunpack.c.l.b16 %v378
      %v503 = vunpack.c.l.b16 %v379
      %v504 = vunpack.c.h.b16 %v379
      %v505 = vunpack.c.l.b16 %v380
      %v506 = vunpack.c.h.b16 %v380
      %v507 = vunpack.c.l.b16 %v381
      %v508 = vunpack.c.h.b16 %v381
      %v509 = vunpack.c.l.b16 %v382
      %v510 = vunpack.c.l.b16 %v383
      %v511 = vunpack.c.h.b16 %v383
      %v512 = vunpack.c.l.b16 %v384
      %v513 = vunpack.c.h.b16 %v384
      %v514 = vunpack.c.l.b16 %v385
      %v515 = vunpack.c.h.b16 %v385
      %v516 = vunpack.c.l.b16 %v386
      %v517 = vunpack.c.l.b16 %v387
      %v518 = vunpack.c.h.b16 %v387
      %v519 = vunpack.c.l.b16 %v388
      %v520 = vunpack.c.h.b16 %v388
      %v521 = vunpack.c.l.b16 %v389
      %v522 = vunpack.c.h.b16 %v389
      %v523 = vunpack.c.l.b16 %v390
      %v524 = vunpack.c.l.b16 %v391
      %v525 = vunpack.c.h.b16 %v391
      %v526 = vunpack.c.l.b16 %v392
      %v527 = vunpack.c.h.b16 %v392
      %v528 = vunpack.c.l.b16 %v393
      %v529 = vunpack.c.h.b16 %v393
      %v530 = vunpack.c.l.b16 %v394
      %v531 = vpack.c.b16 %v482, %v475
      %v532 = vpack.c.b16 %v483, %v476
      %v533 = vpack.c.b16 %v484, %v477
      %v534 = vpack.c.b16 %v485, %v478
      %v535 = vpack.c.b16 %v486, %v479
      %v536 = vpack.c.b16 %v487, %v480
      %v537 = vpack.c.b16 %v488, %v481
      %v538 = vpack.c.b16 %v496, %v489
      %v539 = vpack.c.b16 %v497, %v490
      %v540 = vpack.c.b16 %v498, %v491
      %v541 = vpack.c.b16 %v499, %v492
      %v542 = vpack.c.b16 %v500, %v493
      %v543 = vpack.c.b16 %v501, %v494
      %v544 = vpack.c.b16 %v502, %v495
      %v545 = vpack.c.b16 %v510, %v503
      %v546 = vpack.c.b16 %v511, %v504
      %v547 = vpack.c.b16 %v512, %v505
      %v548 = vpack.c.b16 %v513, %v506
      %v549 = vpack.c.b16 %v514, %v507
      %v550 = vpack.c.b16 %v515, %v508
      %v551 = vpack.c.b16 %v516, %v509
      %v552 = vpack.c.b16 %v524, %v517
      %v553 = vpack.c.b16 %v525, %v518
      %v554 = vpack.c.b16 %v526, %v519
      %v555 = vpack.c.b16 %v527, %v520
      %v556 = vpack.c.b16 %v528, %v521
      %v557 = vpack.c.b16 %v529, %v522
      %v558 = vpack.c.b16 %v530, %v523
      %vm583 = vcmask 261120
      %v585 = vsel %vm583, %v537, 0
      %v588 = vsel %vm583, %v544, 0
      %v591 = vsel %vm583, %v551, 0
      %v594 = vsel %vm583, %v558, 0
      %596 = vmatprep.subr.bf16.mxu0 0
      %597 = vmatpush1.bf16.msra.mxu0 %v211
      %598 = vmatprep.subr.bf16.mxu0 0
      %599 = vmatpush1.bf16.msra.mxu0 %v212
      %600 = vmatprep.subr.bf16.mxu0 0
      %601 = vmatpush1.bf16.msra.mxu0 %v216
      %602 = vmatprep.subr.bf16.mxu0 0
      %603 = vmatpush1.bf16.msra.mxu0 %v218
      %604 = vmatprep.subr.bf16.mxu0 0
      %605 = vmatpush1.bf16.msra.mxu0 %v222
      %606 = vmatprep.subr.bf16.mxu0 0
      %607 = vmatpush1.bf16.msra.mxu0 %v224
      %608 = vmatprep.subr.bf16.mxu0 0
      %609 = vmatpush1.bf16.msra.mxu0 %v228
      %610 = vmatprep.subr.bf16.mxu0 0
      %611 = vmatpush1.bf16.msra.mxu0 %v230
      %612 = vmatprep.subr.bf16.mxu0 0
      %613 = vmatpush1.bf16.msra.mxu0 %v234
      %614 = vmatprep.subr.bf16.mxu0 0
      %615 = vmatpush1.bf16.msra.mxu0 %v236
      %616 = vmatprep.subr.bf16.mxu0 0
      %617 = vmatpush1.bf16.msra.mxu0 %v240
      %618 = vmatprep.subr.bf16.mxu0 0
      %619 = vmatpush1.bf16.msra.mxu0 %v242
      %620 = vmatprep.subr.bf16.mxu0 0
      %621 = vmatpush1.bf16.msra.mxu0 %v246
      %622 = vmatprep.subr.bf16.mxu0 0
      %623 = vmatpush1.bf16.msra.mxu0 %v248
      %624 = vmatprep.subr.bf16.mxu0 0
      %625 = vmatpush1.bf16.msra.mxu0 %v252
      %626 = vmatprep.subr.bf16.mxu0 0
      %627 = vmatpush1.bf16.msra.mxu0 %v254
      %628 = vmatprep.mubr.bf16.mxu0 %v532
      %629 = vmatmul.mubr.bf16.gmra.mrb[0].mxu0 %v531
      %v630 = vpop.f32.mrb[0].mxu0
      %v631 = vadd.f32 %v406, %v630
      %v632 = vpop.f32.mrb[0].mxu0
      %v633 = vpop.f32.mrb[0].mxu0
      %v634 = vadd.f32 %v411, %v633
      %v635 = vpop.f32.mrb[0].mxu0
      %636 = vmatprep.mubr.bf16.mxu0 %v539
      %637 = vmatmul.mubr.bf16.gmra.mrb[0].mxu0 %v538
      %v638 = vpop.f32.mrb[0].mxu0
      %v639 = vadd.f32 %v416, %v638
      %v640 = vpop.f32.mrb[0].mxu0
      %v641 = vpop.f32.mrb[0].mxu0
      %v642 = vadd.f32 %v421, %v641
      %v643 = vpop.f32.mrb[0].mxu0
      %644 = vmatprep.mubr.bf16.mxu0 %v546
      %645 = vmatmul.mubr.bf16.gmra.mrb[0].mxu0 %v545
      %v646 = vpop.f32.mrb[0].mxu0
      %v647 = vadd.f32 %v426, %v646
      %v648 = vpop.f32.mrb[0].mxu0
      %v649 = vpop.f32.mrb[0].mxu0
      %v650 = vadd.f32 %v431, %v649
      %v651 = vpop.f32.mrb[0].mxu0
      %652 = vmatprep.mubr.bf16.mxu0 %v553
      %653 = vmatmul.mubr.bf16.gmra.mrb[0].mxu0 %v552
      %v654 = vpop.f32.mrb[0].mxu0
      %v655 = vadd.f32 %v436, %v654
      %v656 = vpop.f32.mrb[0].mxu0
      %v657 = vpop.f32.mrb[0].mxu0
      %v658 = vadd.f32 %v441, %v657
      %v659 = vpop.f32.mrb[0].mxu0
      %660 = vdwg.mxu0
      %661 = vmatprep.subr.bf16.mxu0 0
      %662 = vmatpush1.bf16.msra.mxu0 %v258
      %663 = vmatprep.subr.bf16.mxu0 0
      %664 = vmatpush1.bf16.msra.mxu0 %v260
      %665 = vmatprep.subr.bf16.mxu0 0
      %666 = vmatpush1.bf16.msra.mxu0 %v264
      %667 = vmatprep.subr.bf16.mxu0 0
      %668 = vmatpush1.bf16.msra.mxu0 %v266
      %669 = vmatprep.subr.bf16.mxu0 0
      %670 = vmatpush1.bf16.msra.mxu0 %v270
      %671 = vmatprep.subr.bf16.mxu0 0
      %672 = vmatpush1.bf16.msra.mxu0 %v272
      %673 = vmatprep.subr.bf16.mxu0 0
      %674 = vmatpush1.bf16.msra.mxu0 %v276
      %675 = vmatprep.subr.bf16.mxu0 0
      %676 = vmatpush1.bf16.msra.mxu0 %v278
      %677 = vmatprep.subr.bf16.mxu0 0
      %678 = vmatpush1.bf16.msra.mxu0 %v282
      %679 = vmatprep.subr.bf16.mxu0 0
      %680 = vmatpush1.bf16.msra.mxu0 %v284
      %681 = vmatprep.subr.bf16.mxu0 0
      %682 = vmatpush1.bf16.msra.mxu0 %v288
      %683 = vmatprep.subr.bf16.mxu0 0
      %684 = vmatpush1.bf16.msra.mxu0 %v290
      %685 = vmatprep.subr.bf16.mxu0 0
      %686 = vmatpush1.bf16.msra.mxu0 %v294
      %687 = vmatprep.subr.bf16.mxu0 0
      %688 = vmatpush1.bf16.msra.mxu0 %v296
      %689 = vmatprep.subr.bf16.mxu0 0
      %690 = vmatpush1.bf16.msra.mxu0 %v300
      %691 = vmatprep.subr.bf16.mxu0 0
      %692 = vmatpush1.bf16.msra.mxu0 %v302
      %693 = vmatprep.mubr.bf16.mxu0 %v534
      %694 = vmatmul.mubr.bf16.gmra.mrb[0].mxu0 %v533
      %v695 = vpop.f32.mrb[0].mxu0
      %v696 = vadd.f32 %v631, %v695
      %v697 = vpop.f32.mrb[0].mxu0
      %v698 = vpop.f32.mrb[0].mxu0
      %v699 = vadd.f32 %v634, %v698
      %v700 = vpop.f32.mrb[0].mxu0
      %701 = vmatprep.mubr.bf16.mxu0 %v541
      %702 = vmatmul.mubr.bf16.gmra.mrb[0].mxu0 %v540
      %v703 = vpop.f32.mrb[0].mxu0
      %v704 = vadd.f32 %v639, %v703
      %v705 = vpop.f32.mrb[0].mxu0
      %v706 = vpop.f32.mrb[0].mxu0
      %v707 = vadd.f32 %v642, %v706
      %v708 = vpop.f32.mrb[0].mxu0
      %709 = vmatprep.mubr.bf16.mxu0 %v548
      %710 = vmatmul.mubr.bf16.gmra.mrb[0].mxu0 %v547
      %v711 = vpop.f32.mrb[0].mxu0
      %v712 = vadd.f32 %v647, %v711
      %v713 = vpop.f32.mrb[0].mxu0
      %v714 = vpop.f32.mrb[0].mxu0
      %v715 = vadd.f32 %v650, %v714
      %v716 = vpop.f32.mrb[0].mxu0
      %717 = vmatprep.mubr.bf16.mxu0 %v555
      %718 = vmatmul.mubr.bf16.gmra.mrb[0].mxu0 %v554
      %v719 = vpop.f32.mrb[0].mxu0
      %v720 = vadd.f32 %v655, %v719
      %v721 = vpop.f32.mrb[0].mxu0
      %v722 = vpop.f32.mrb[0].mxu0
      %v723 = vadd.f32 %v658, %v722
      %v724 = vpop.f32.mrb[0].mxu0
      %725 = vdwg.mxu0
      %726 = vmatprep.subr.bf16.mxu0 0
      %727 = vmatpush1.bf16.msra.mxu0 %v310
      %728 = vmatprep.subr.bf16.mxu0 0
      %729 = vmatpush1.bf16.msra.mxu0 %v312
      %730 = vmatprep.subr.bf16.mxu0 0
      %731 = vmatpush1.bf16.msra.mxu0 %v314
      %732 = vmatprep.subr.bf16.mxu0 0
      %733 = vmatpush1.bf16.msra.mxu0 %v316
      %734 = vmatprep.subr.bf16.mxu0 0
      %735 = vmatpush1.bf16.msra.mxu0 %v318
      %736 = vmatprep.subr.bf16.mxu0 0
      %737 = vmatpush1.bf16.msra.mxu0 %v320
      %738 = vmatprep.subr.bf16.mxu0 0
      %739 = vmatpush1.bf16.msra.mxu0 %v322
      %740 = vmatprep.subr.bf16.mxu0 0
      %741 = vmatpush1.bf16.msra.mxu0 %v324
      %742 = vmatprep.subr.bf16.mxu0 0
      %743 = vmatpush1.bf16.msra.mxu0 %v326
      %744 = vmatprep.subr.bf16.mxu0 0
      %745 = vmatpush1.bf16.msra.mxu0 %v328
      %746 = vmatprep.subr.bf16.mxu0 0
      %747 = vmatpush1.bf16.msra.mxu0 %v330
      %748 = vmatprep.subr.bf16.mxu0 0
      %749 = vmatpush1.bf16.msra.mxu0 %v332
      %750 = vmatprep.subr.bf16.mxu0 0
      %751 = vmatpush1.bf16.msra.mxu0 %v334
      %752 = vmatprep.subr.bf16.mxu0 0
      %753 = vmatpush1.bf16.msra.mxu0 %v336
      %754 = vmatprep.subr.bf16.mxu0 0
      %755 = vmatpush1.bf16.msra.mxu0 %v338
      %756 = vmatprep.subr.bf16.mxu0 0
      %757 = vmatpush1.bf16.msra.mxu0 %v340
      %758 = vmatprep.mubr.bf16.mxu0 %v536
      %759 = vmatmul.mubr.bf16.gmra.mrb[0].mxu0 %v535
      %v760 = vpop.f32.mrb[0].mxu0
      %v761 = vadd.f32 %v696, %v760
      %v762 = vpop.f32.mrb[0].mxu0
      %v763 = vpop.f32.mrb[0].mxu0
      %v764 = vadd.f32 %v699, %v763
      %v765 = vpop.f32.mrb[0].mxu0
      %766 = vmatprep.mubr.bf16.mxu0 %v543
      %767 = vmatmul.mubr.bf16.gmra.mrb[0].mxu0 %v542
      %v768 = vpop.f32.mrb[0].mxu0
      %v769 = vadd.f32 %v704, %v768
      %v770 = vpop.f32.mrb[0].mxu0
      %v771 = vpop.f32.mrb[0].mxu0
      %v772 = vadd.f32 %v707, %v771
      %v773 = vpop.f32.mrb[0].mxu0
      %774 = vmatprep.mubr.bf16.mxu0 %v550
      %775 = vmatmul.mubr.bf16.gmra.mrb[0].mxu0 %v549
      %v776 = vpop.f32.mrb[0].mxu0
      %v777 = vadd.f32 %v712, %v776
      %v778 = vpop.f32.mrb[0].mxu0
      %v779 = vpop.f32.mrb[0].mxu0
      %v780 = vadd.f32 %v715, %v779
      %v781 = vpop.f32.mrb[0].mxu0
      %782 = vmatprep.mubr.bf16.mxu0 %v557
      %783 = vmatmul.mubr.bf16.gmra.mrb[0].mxu0 %v556
      %v784 = vpop.f32.mrb[0].mxu0
      %v785 = vadd.f32 %v720, %v784
      %v786 = vpop.f32.mrb[0].mxu0
      %v787 = vpop.f32.mrb[0].mxu0
      %v788 = vadd.f32 %v723, %v787
      %v789 = vpop.f32.mrb[0].mxu0
      %790 = vdwg.mxu0
      %791 = vmatprep.subr.bf16.mxu0 0
      %792 = vmatpush1.bf16.msra.mxu0 %v342
      %793 = vmatprep.subr.bf16.mxu0 0
      %794 = vmatpush1.bf16.msra.mxu0 %v344
      %795 = vmatprep.subr.bf16.mxu0 0
      %796 = vmatpush1.bf16.msra.mxu0 0
      %797 = vmatprep.subr.bf16.mxu0 0
      %798 = vmatpush1.bf16.msra.mxu0 0
      %799 = vmatprep.subr.bf16.mxu0 0
      %800 = vmatpush1.bf16.msra.mxu0 0
      %801 = vmatprep.subr.bf16.mxu0 0
      %802 = vmatpush1.bf16.msra.mxu0 0
      %803 = vmatprep.subr.bf16.mxu0 0
      %804 = vmatpush1.bf16.msra.mxu0 0
      %805 = vmatprep.subr.bf16.mxu0 0
      %806 = vmatpush1.bf16.msra.mxu0 0
      %807 = vmatprep.subr.bf16.mxu0 0
      %808 = vmatpush1.bf16.msra.mxu0 0
      %809 = vmatprep.subr.bf16.mxu0 0
      %810 = vmatpush1.bf16.msra.mxu0 0
      %811 = vmatprep.subr.bf16.mxu0 0
      %812 = vmatpush1.bf16.msra.mxu0 0
      %813 = vmatprep.subr.bf16.mxu0 0
      %814 = vmatpush1.bf16.msra.mxu0 0
      %815 = vmatprep.subr.bf16.mxu0 0
      %816 = vmatpush1.bf16.msra.mxu0 0
      %817 = vmatprep.subr.bf16.mxu0 0
      %818 = vmatpush1.bf16.msra.mxu0 0
      %819 = vmatprep.subr.bf16.mxu0 0
      %820 = vmatpush1.bf16.msra.mxu0 0
      %821 = vmatprep.subr.bf16.mxu0 0
      %822 = vmatpush1.bf16.msra.mxu0 0
      %823 = vmatprep.mubr.bf16.mxu0 0
      %824 = vmatmul.mubr.bf16.gmra.mrb[0].mxu0 %v585
      %v825 = vpop.f32.mrb[0].mxu0
      %v826 = vadd.f32 %v761, %v825
      %v827 = vpop.f32.mrb[0].mxu0
      %v828 = vpop.f32.mrb[0].mxu0
      %v829 = vadd.f32 %v764, %v828
      %v830 = vpop.f32.mrb[0].mxu0
      %831 = vmatprep.mubr.bf16.mxu0 0
      %832 = vmatmul.mubr.bf16.gmra.mrb[0].mxu0 %v588
      %v833 = vpop.f32.mrb[0].mxu0
      %v834 = vadd.f32 %v769, %v833
      %v835 = vpop.f32.mrb[0].mxu0
      %v836 = vpop.f32.mrb[0].mxu0
      %v837 = vadd.f32 %v772, %v836
      %v838 = vpop.f32.mrb[0].mxu0
      %839 = vmatprep.mubr.bf16.mxu0 0
      %840 = vmatmul.mubr.bf16.gmra.mrb[0].mxu0 %v591
      %v841 = vpop.f32.mrb[0].mxu0
      %v842 = vadd.f32 %v777, %v841
      %v843 = vpop.f32.mrb[0].mxu0
      %v844 = vpop.f32.mrb[0].mxu0
      %v845 = vadd.f32 %v780, %v844
      %v846 = vpop.f32.mrb[0].mxu0
      %847 = vmatprep.mubr.bf16.mxu0 0
      %848 = vmatmul.mubr.bf16.gmra.mrb[0].mxu0 %v594
      %v849 = vpop.f32.mrb[0].mxu0
      %v850 = vadd.f32 %v785, %v849
      %v851 = vpop.f32.mrb[0].mxu0
      %v852 = vpop.f32.mrb[0].mxu0
      %v853 = vadd.f32 %v788, %v852
      %v854 = vpop.f32.mrb[0].mxu0
      %855 = vdwg.mxu0
      %864 = vrot.lane.b32.xlu0 %v826, 127
      %v865 = vpop.permute.xlu0 %864
      %866 = vrot.lane.b32.xlu0 %v829, 127
      %v867 = vpop.permute.xlu0 %866
      %868 = vrot.lane.b32.xlu0 %v834, 127
      %v869 = vpop.permute.xlu0 %868
      %870 = vrot.lane.b32.xlu0 %v837, 127
      %v871 = vpop.permute.xlu0 %870
      %872 = vrot.lane.b32.xlu0 %v842, 127
      %v873 = vpop.permute.xlu0 %872
      %874 = vrot.lane.b32.xlu0 %v845, 127
      %v875 = vpop.permute.xlu0 %874
      %876 = vrot.lane.b32.xlu0 %v850, 127
      %v877 = vpop.permute.xlu0 %876
      %878 = vrot.lane.b32.xlu0 %v853, 127
      %v879 = vpop.permute.xlu0 %878
      %v888 = vmax.f32 %v826, %v865
      %v889 = vmax.f32 %v829, %v867
      %v890 = vmax.f32 %v834, %v869
      %v891 = vmax.f32 %v837, %v871
      %v892 = vmax.f32 %v842, %v873
      %v893 = vmax.f32 %v845, %v875
      %v894 = vmax.f32 %v850, %v877
      %v895 = vmax.f32 %v853, %v879
      %904 = vrot.lane.b32.xlu0 %v888, 118
      %v905 = vpop.permute.xlu0 %904
      %906 = vrot.lane.b32.xlu0 %v889, 118
      %v907 = vpop.permute.xlu0 %906
      %908 = vrot.lane.b32.xlu0 %v890, 118
      %v909 = vpop.permute.xlu0 %908
      %910 = vrot.lane.b32.xlu0 %v891, 118
      %v911 = vpop.permute.xlu0 %910
      %912 = vrot.lane.b32.xlu0 %v892, 118
      %v913 = vpop.permute.xlu0 %912
      %914 = vrot.lane.b32.xlu0 %v893, 118
      %v915 = vpop.permute.xlu0 %914
      %916 = vrot.lane.b32.xlu0 %v894, 118
      %v917 = vpop.permute.xlu0 %916
      %918 = vrot.lane.b32.xlu0 %v895, 118
      %v919 = vpop.permute.xlu0 %918
      %v928 = vmax.f32 %v888, %v905
      %v929 = vmax.f32 %v889, %v907
      %v930 = vmax.f32 %v890, %v909
      %v931 = vmax.f32 %v891, %v911
      %v932 = vmax.f32 %v892, %v913
      %v933 = vmax.f32 %v893, %v915
      %v934 = vmax.f32 %v894, %v917
      %v935 = vmax.f32 %v895, %v919
      %v936 = vpack.c.bf16 %v929, %v928
      %v937 = vpack.c.bf16 %v931, %v930
      %v938 = vpack.c.bf16 %v933, %v932
      %v939 = vpack.c.bf16 %v935, %v934
      %v940 = vld [vmem:[%s3] sm:$0xf]
      %v941 = vld [vmem:[%s3 + $0x4] sm:$0xf]
      %v942 = vld [vmem:[%s3 + $0x8] sm:$0xf]
      %v943 = vld [vmem:[%s3 + $0xc] sm:$0xf]
      %v944 = vld [vmem:[%s3 + $0x10] sm:$0xf]
      %v945 = vld [vmem:[%s3 + $0x14] sm:$0x7]
      %v952 = vunpack.c.l.b16 %v940
      %v953 = vunpack.c.l.b16 %v941
      %v954 = vunpack.c.l.b16 %v942
      %v955 = vunpack.c.l.b16 %v943
      %v956 = vunpack.c.l.b16 %v944
      %v957 = vunpack.c.l.b16 %v945
      %v958 = vpack.c.b16 %v953, %v952
      %v959 = vpack.c.b16 %v955, %v954
      %v960 = vpack.c.b16 %v957, %v956
      %vm963 = vcmask 367616
      %v965 = vsel %vm963, %v936, 0
      %v968 = vsel %vm963, %v937, 0
      %v971 = vsel %vm963, %v938, 0
      %v974 = vsel %vm963, %v939, 0
      %vm976 = vcmask 1045504
      %vm977 = vcmask 1046528
      %v978 = vsel %vm976, 4294967295, 65535
      %v979 = vsel %vm977, %v978, 0
      %v981 = vand.u32 %v960, %v979
      %983 = vmatprep.subr.bf16.mxu0 0
      %984 = vmatpush1.bf16.msra.mxu0 %v958
      %985 = vmatprep.subr.bf16.mxu0 0
      %986 = vmatpush1.bf16.msra.mxu0 %v959
      %987 = vmatprep.subr.bf16.mxu0 0
      %988 = vmatpush1.bf16.msra.mxu0 %v981
      %989 = vmatprep.subr.bf16.mxu0 0
      %990 = vmatpush1.bf16.msra.mxu0 0
      %991 = vmatprep.subr.bf16.mxu0 0
      %992 = vmatpush1.bf16.msra.mxu0 0
      %993 = vmatprep.subr.bf16.mxu0 0
      %994 = vmatpush1.bf16.msra.mxu0 0
      %995 = vmatprep.subr.bf16.mxu0 0
      %996 = vmatpush1.bf16.msra.mxu0 0
      %997 = vmatprep.subr.bf16.mxu0 0
      %998 = vmatpush1.bf16.msra.mxu0 0
      %999 = vmatprep.subr.bf16.mxu0 0
      %1000 = vmatpush1.bf16.msra.mxu0 0
      %1001 = vmatprep.subr.bf16.mxu0 0
      %1002 = vmatpush1.bf16.msra.mxu0 0
      %1003 = vmatprep.subr.bf16.mxu0 0
      %1004 = vmatpush1.bf16.msra.mxu0 0
      %1005 = vmatprep.subr.bf16.mxu0 0
      %1006 = vmatpush1.bf16.msra.mxu0 0
      %1007 = vmatprep.subr.bf16.mxu0 0
      %1008 = vmatpush1.bf16.msra.mxu0 0
      %1009 = vmatprep.subr.bf16.mxu0 0
      %1010 = vmatpush1.bf16.msra.mxu0 0
      %1011 = vmatprep.subr.bf16.mxu0 0
      %1012 = vmatpush1.bf16.msra.mxu0 0
      %1013 = vmatprep.subr.bf16.mxu0 0
      %1014 = vmatpush1.bf16.msra.mxu0 0
      %1015 = vmatprep.mubr.bf16.mxu0 0
      %1016 = vmatmul.mubr.bf16.gmra.mrb[0].mxu0 %v965
      %v1017 = vpop.f32.mrb[0].mxu0
      %v1018 = vadd.f32 0.0, %v1017
      %v1019 = vpop.f32.mrb[0].mxu0
      %v1020 = vpop.f32.mrb[0].mxu0
      %v1021 = vadd.f32 0.0, %v1020
      %v1022 = vpop.f32.mrb[0].mxu0
      %1023 = vmatprep.mubr.bf16.mxu0 0
      %1024 = vmatmul.mubr.bf16.gmra.mrb[0].mxu0 %v968
      %v1025 = vpop.f32.mrb[0].mxu0
      %v1026 = vadd.f32 0.0, %v1025
      %v1027 = vpop.f32.mrb[0].mxu0
      %v1028 = vpop.f32.mrb[0].mxu0
      %v1029 = vadd.f32 0.0, %v1028
      %v1030 = vpop.f32.mrb[0].mxu0
      %1031 = vmatprep.mubr.bf16.mxu0 0
      %1032 = vmatmul.mubr.bf16.gmra.mrb[0].mxu0 %v971
      %v1033 = vpop.f32.mrb[0].mxu0
      %v1034 = vadd.f32 0.0, %v1033
      %v1035 = vpop.f32.mrb[0].mxu0
      %v1036 = vpop.f32.mrb[0].mxu0
      %v1037 = vadd.f32 0.0, %v1036
      %v1038 = vpop.f32.mrb[0].mxu0
      %1039 = vmatprep.mubr.bf16.mxu0 0
      %1040 = vmatmul.mubr.bf16.gmra.mrb[0].mxu0 %v974
      %v1041 = vpop.f32.mrb[0].mxu0
      %v1042 = vadd.f32 0.0, %v1041
      %v1043 = vpop.f32.mrb[0].mxu0
      %v1044 = vpop.f32.mrb[0].mxu0
      %v1045 = vadd.f32 0.0, %v1044
      %v1046 = vpop.f32.mrb[0].mxu0
      %1047 = vdwg.mxu0
      %v1048 = vmax.f32 %v1018, 0.0
      %v1049 = vmax.f32 %v1021, 0.0
      %v1050 = vmax.f32 %v1026, 0.0
      %v1051 = vmax.f32 %v1029, 0.0
      %v1052 = vmax.f32 %v1034, 0.0
      %v1053 = vmax.f32 %v1037, 0.0
      %v1054 = vmax.f32 %v1042, 0.0
      %v1055 = vmax.f32 %v1045, 0.0
      %v1056 = vpack.c.bf16 %v1049, %v1048
      %v1057 = vpack.c.bf16 %v1051, %v1050
      %v1058 = vpack.c.bf16 %v1053, %v1052
      %v1059 = vpack.c.bf16 %v1055, %v1054
      %v1064 = vunpack.c.l.b16 %v1056
      %v1065 = vunpack.c.h.b16 %v1056
      %v1066 = vunpack.c.l.b16 %v1057
      %v1067 = vunpack.c.h.b16 %v1057
      %v1068 = vunpack.c.l.b16 %v1058
      %v1069 = vunpack.c.h.b16 %v1058
      %v1070 = vunpack.c.l.b16 %v1059
      %v1071 = vunpack.c.h.b16 %v1059
      %v1072 = vpack.c.b16 %v1064, %v1064
      %v1073 = vpack.c.b16 %v1065, %v1065
      %v1074 = vpack.c.b16 %v1066, %v1066
      %v1075 = vpack.c.b16 %v1067, %v1067
      %v1076 = vpack.c.b16 %v1068, %v1068
      %v1077 = vpack.c.b16 %v1069, %v1069
      %v1078 = vpack.c.b16 %v1070, %v1070
      %v1079 = vpack.c.b16 %v1071, %v1071
      %vm1088 = vcmask 68608
      %1089 = vst.msk [vmem:[%s197] sm:$0xf] %vm1088, %v1072
      %1090 = vst.msk [vmem:[%s197 + $0x4] sm:$0xf] %vm1088, %v1073
      %1091 = vst.msk [vmem:[%s197 + $0x8] sm:$0xf] %vm1088, %v1074
      %1092 = vst.msk [vmem:[%s197 + $0xc] sm:$0xf] %vm1088, %v1075
      %1093 = vst.msk [vmem:[%s197 + $0x10] sm:$0xf] %vm1088, %v1076
      %1094 = vst.msk [vmem:[%s197 + $0x14] sm:$0xf] %vm1088, %v1077
      %1095 = vst.msk [vmem:[%s197 + $0x18] sm:$0xf] %vm1088, %v1078
      %1096 = vst.msk [vmem:[%s197 + $0x1c] sm:$0xf] %vm1088, %v1079
      %p1097 = scmp.lt.s32.totalorder %s15, 1
      %s1098 = scalar_select %p1097, %s15, 1
      %s1099 = smul.addr %s1098, 8
      %s1100 = smul.addr %s1099, 4
      %s1101 = scalar_lea.vmem %s4, %s1100
      // Predicated region
      $region37: #{forward.4} parent=35 // pred_check
        %p1102 = pneg %p122
      $region38: #{forward.4} parent=35 // pred_check_branch
        %1104 = sbr.rel (%p1102) target = $region40
      $region39: #{forward.4} parent=35 // pred_region
        _
      $region40: #{forward.4} parent=35 // pred_fallthru
        _
    $region36: #{forward.4} parent=5 // pred_fallthru
      _
    %p1105 = scmp.le.s32.totalorder 2, %s10
    // Predicated region
    $region41: #{forward.4} parent=5 // pred_check
      %p1106 = pneg %p1105
    $region42: #{forward.4} parent=5 // pred_check_branch
      %1108 = sbr.rel (%p1106) target = $region44
    $region43: #{forward.4} parent=5 // pred_region
      %s1109 = ssub.s32 %s10, 2
      // Predicated region
      $region45: #{forward.4} parent=43 // pred_check
        %p1110 = pneg %p128
      $region46: #{forward.4} parent=43 // pred_check_branch
        %1112 = sbr.rel (%p1110) target = $region48
      $region47: #{forward.4} parent=43 // pred_region
        %p1113 = scmp.lt.s32.totalorder %s16, 1
        %s1114 = scalar_select %p1113, %s16, 1
        %s1115 = smul.addr %s1114, 8
        %s1116 = smul.addr %s1115, 4
        %s1117 = scalar_lea.vmem %s4, %s1116
      $region48: #{forward.4} parent=43 // pred_fallthru
        _
    $region44: #{forward.4} parent=5 // pred_fallthru
      _
  $region6: #{forward.4} parent=0 // loop_footer
    %s14 = sadd.s32 1, %s10
  $region7: #{forward.4} parent=0 // loop_footer_branch
    %9 = sbr.rel target = $region3
  $region8: #{forward.4} parent=0 // loop_exit
    _

// kernel: forward.3
$region0: #{forward.3}
  #allocation0 [shape = 'u32[]', space=smem, size = 0x4, offset = 0x4, fixed_abs, tag = 'smem constant byte address 0x4 - core index']
  #allocation1 [shape = 'u32[144,128]{1,0:T(1,128)}', space=vmem, size = 0x12000, scoped, tag = 'internal scratch']
  %s0 = inlined_call_operand.vmem [shape: bf16[2,32,676], index: 0, kind: input, shape index: {}]
  %s1 = inlined_call_operand.vmem [shape: bf16[32,32], index: 1, kind: input, shape index: {}]
  %s2 = inlined_call_operand.vmem [shape: f32[32,1], index: 2, kind: input, shape index: {}]
  %s3 = inlined_call_operand.vmem [shape: bf16[32,800], index: 3, kind: input, shape index: {}]
  %s4 = inlined_call_operand.vmem [shape: f32[32,1], index: 4, kind: input, shape index: {}]
  %s5 = inlined_call_operand.vmem [shape: bf16[523,104], index: 5, kind: input, shape index: {}]
  %s6 = inlined_call_operand.vmem [shape: bf16[2,32,104], index: 6, kind: output, shape index: {}]
  %s7 = sld [smem:[#allocation0]]
  $region57: #{forward.3} parent=0
    _
  %s9 = ssub.s32 1, %s7
  %s10 = scalar_select 0, %s9, %s7
  loop: start=0, step=1, limit=4
  $region2: #{forward.3} parent=0 // loop_pre_header
    _
  $region3: #{forward.3} parent=0 // loop_header
    %s12 = sphi 0, %s16
    %p13 = scmp.ge.s32.totalorder %s12, 4
    %s22 = sphi 0, %s24
    %s25 = sphi 0, %s22
    %s26 = sphi 0, %s25
    %s42 = sphi 0, %s26
    %s46 = sphi 0, %s46
    %s48 = sphi 0, %s46
    %s49 = sphi 0, %s48
    %s63 = sphi 0, %s49
    %s67 = sphi 0, %s67
    %s69 = sphi 0, %s67
    %s70 = sphi 0, %s69
    %s84 = sphi 0, %s70
    %s88 = sphi 0, %s88
    %s90 = sphi 0, %s88
    %s91 = sphi 0, %s90
    %s105 = sphi 0, %s91
    %s109 = sphi 0, %s109
    %s111 = sphi 0, %s109
    %s112 = sphi 0, %s111
    %s126 = sphi 0, %s112
    %s130 = sphi 0, %s130
    %s132 = sphi 0, %s130
    %s133 = sphi 0, %s132
    %s147 = sphi 0, %s133
    %s153 = sphi 0, %s155
    %s156 = sphi 0, %s153
    %s157 = sphi 0, %s156
    %s173 = sphi 0, %s157
  $region4: #{forward.3} parent=0 // loop_header_branch
    %15 = sbr.rel (%p13) target = $region8
  $region5: #{forward.3} parent=0 // loop_body
    %s17 = ssub.s32 %s12, 1
    %s18 = ssub.s32 %s12, 2
    %s19 = sadd.s32 %s12, 1
    %s20 = ssub.s32 %s12, %s19
    %p21 = scmp.eq.s32.totalorder %s20, 0
    %s23 = sadd.s32 %s22, 1
    %s24 = scalar_select %p21, %s22, %s23
    %p27 = pneg %p21
    %p28 = scmp.eq.s32.totalorder %s12, 1
    %p29 = por %p27, %p28
    %p30 = scmp.ne.s32.totalorder %s22, %s25
    %p31 = scmp.eq.s32.totalorder %s12, 0
    %p32 = por %p30, %p31
    %p33 = scmp.ne.s32.totalorder %s22, %s25
    %p34 = scmp.eq.s32.totalorder %s17, 1
    %p35 = por %p33, %p34
    %p36 = scmp.ne.s32.totalorder %s25, %s26
    %p37 = scmp.eq.s32.totalorder %s17, 0
    %p38 = por %p36, %p37
    %p39 = scmp.ne.s32.totalorder %s25, %s26
    %p40 = scmp.eq.s32.totalorder %s18, 1
    %p41 = por %p39, %p40
    %p43 = scmp.ne.s32.totalorder %s26, %s42
    %p44 = scmp.eq.s32.totalorder %s18, 0
    %p45 = por %p43, %p44
    %s47 = sadd.s32 %s46, 1
    %p50 = scmp.eq.s32.totalorder %s12, 1
    %p51 = scmp.ne.s32.totalorder %s46, %s48
    %p52 = scmp.eq.s32.totalorder %s12, 0
    %p53 = por %p51, %p52
    %p54 = scmp.ne.s32.totalorder %s46, %s48
    %p55 = scmp.eq.s32.totalorder %s17, 1
    %p56 = por %p54, %p55
    %p57 = scmp.ne.s32.totalorder %s48, %s49
    %p58 = scmp.eq.s32.totalorder %s17, 0
    %p59 = por %p57, %p58
    %p60 = scmp.ne.s32.totalorder %s48, %s49
    %p61 = scmp.eq.s32.totalorder %s18, 1
    %p62 = por %p60, %p61
    %p64 = scmp.ne.s32.totalorder %s49, %s63
    %p65 = scmp.eq.s32.totalorder %s18, 0
    %p66 = por %p64, %p65
    %s68 = sadd.s32 %s67, 1
    %p71 = scmp.eq.s32.totalorder %s12, 1
    %p72 = scmp.ne.s32.totalorder %s67, %s69
    %p73 = scmp.eq.s32.totalorder %s12, 0
    %p74 = por %p72, %p73
    %p75 = scmp.ne.s32.totalorder %s67, %s69
    %p76 = scmp.eq.s32.totalorder %s17, 1
    %p77 = por %p75, %p76
    %p78 = scmp.ne.s32.totalorder %s69, %s70
    %p79 = scmp.eq.s32.totalorder %s17, 0
    %p80 = por %p78, %p79
    %p81 = scmp.ne.s32.totalorder %s69, %s70
    %p82 = scmp.eq.s32.totalorder %s18, 1
    %p83 = por %p81, %p82
    %p85 = scmp.ne.s32.totalorder %s70, %s84
    %p86 = scmp.eq.s32.totalorder %s18, 0
    %p87 = por %p85, %p86
    %s89 = sadd.s32 %s88, 1
    %p92 = scmp.eq.s32.totalorder %s12, 1
    %p93 = scmp.ne.s32.totalorder %s88, %s90
    %p94 = scmp.eq.s32.totalorder %s12, 0
    %p95 = por %p93, %p94
    %p96 = scmp.ne.s32.totalorder %s88, %s90
    %p97 = scmp.eq.s32.totalorder %s17, 1
    %p98 = por %p96, %p97
    %p99 = scmp.ne.s32.totalorder %s90, %s91
    %p100 = scmp.eq.s32.totalorder %s17, 0
    %p101 = por %p99, %p100
    %p102 = scmp.ne.s32.totalorder %s90, %s91
    %p103 = scmp.eq.s32.totalorder %s18, 1
    %p104 = por %p102, %p103
    %p106 = scmp.ne.s32.totalorder %s91, %s105
    %p107 = scmp.eq.s32.totalorder %s18, 0
    %p108 = por %p106, %p107
    %s110 = sadd.s32 %s109, 1
    %p113 = scmp.eq.s32.totalorder %s12, 1
    %p114 = scmp.ne.s32.totalorder %s109, %s111
    %p115 = scmp.eq.s32.totalorder %s12, 0
    %p116 = por %p114, %p115
    %p117 = scmp.ne.s32.totalorder %s109, %s111
    %p118 = scmp.eq.s32.totalorder %s17, 1
    %p119 = por %p117, %p118
    %p120 = scmp.ne.s32.totalorder %s111, %s112
    %p121 = scmp.eq.s32.totalorder %s17, 0
    %p122 = por %p120, %p121
    %p123 = scmp.ne.s32.totalorder %s111, %s112
    %p124 = scmp.eq.s32.totalorder %s18, 1
    %p125 = por %p123, %p124
    %p127 = scmp.ne.s32.totalorder %s112, %s126
    %p128 = scmp.eq.s32.totalorder %s18, 0
    %p129 = por %p127, %p128
    %s131 = sadd.s32 %s130, 1
    %p134 = scmp.eq.s32.totalorder %s12, 1
    %p135 = scmp.ne.s32.totalorder %s130, %s132
    %p136 = scmp.eq.s32.totalorder %s12, 0
    %p137 = por %p135, %p136
    %p138 = scmp.ne.s32.totalorder %s130, %s132
    %p139 = scmp.eq.s32.totalorder %s17, 1
    %p140 = por %p138, %p139
    %p141 = scmp.ne.s32.totalorder %s132, %s133
    %p142 = scmp.eq.s32.totalorder %s17, 0
    %p143 = por %p141, %p142
    %p144 = scmp.ne.s32.totalorder %s132, %s133
    %p145 = scmp.eq.s32.totalorder %s18, 1
    %p146 = por %p144, %p145
    %p148 = scmp.ne.s32.totalorder %s133, %s147
    %p149 = scmp.eq.s32.totalorder %s18, 0
    %p150 = por %p148, %p149
    %s151 = ssub.s32 %s12, %s19
    %p152 = scmp.eq.s32.totalorder %s151, 0
    %s154 = sadd.s32 %s153, 1
    %s155 = scalar_select %p152, %s153, %s154
    %p158 = pneg %p152
    %p159 = scmp.eq.s32.totalorder %s12, 1
    %p160 = por %p158, %p159
    %p161 = scmp.ne.s32.totalorder %s153, %s156
    %p162 = scmp.eq.s32.totalorder %s12, 0
    %p163 = por %p161, %p162
    %p164 = scmp.ne.s32.totalorder %s153, %s156
    %p165 = scmp.eq.s32.totalorder %s17, 1
    %p166 = por %p164, %p165
    %p167 = scmp.ne.s32.totalorder %s156, %s157
    %p168 = scmp.eq.s32.totalorder %s17, 0
    %p169 = por %p167, %p168
    %p170 = scmp.ne.s32.totalorder %s156, %s157
    %p171 = scmp.eq.s32.totalorder %s18, 1
    %p172 = por %p170, %p171
    %p174 = scmp.ne.s32.totalorder %s157, %s173
    %p175 = scmp.eq.s32.totalorder %s18, 0
    %p176 = por %p174, %p175
    %p177 = scmp.le.s32.totalorder 1, %s12
    %p178 = scmp.lt.s32.totalorder %s12, 3
    %p179 = pnand %p177, %p178
    %p180 = pneg %p179
    // Predicated region
    $region9: #{forward.3} parent=5 // pred_check
      _
    $region10: #{forward.3} parent=5 // pred_check_branch
      %182 = sbr.rel (%p179) target = $region12
    $region11: #{forward.3} parent=5 // pred_region
      %s183 = ssub.s32 %s12, 1
      // Predicated region
      $region13: #{forward.3} parent=11 // pred_check
        %p184 = pneg %p59
      $region14: #{forward.3} parent=11 // pred_check_branch
        %186 = sbr.rel (%p184) target = $region16
      $region15: #{forward.3} parent=11 // pred_region
        _
      $region16: #{forward.3} parent=11 // pred_fallthru
        _
      // Predicated region
      $region17: #{forward.3} parent=11 // pred_check
        %p187 = pneg %p80
      $region18: #{forward.3} parent=11 // pred_check_branch
        %189 = sbr.rel (%p187) target = $region20
      $region19: #{forward.3} parent=11 // pred_region
        _
      $region20: #{forward.3} parent=11 // pred_fallthru
        _
      // Predicated region
      $region21: #{forward.3} parent=11 // pred_check
        %p190 = pneg %p101
      $region22: #{forward.3} parent=11 // pred_check_branch
        %192 = sbr.rel (%p190) target = $region24
      $region23: #{forward.3} parent=11 // pred_region
        _
      $region24: #{forward.3} parent=11 // pred_fallthru
        _
      // Predicated region
      $region25: #{forward.3} parent=11 // pred_check
        %p193 = pneg %p122
      $region26: #{forward.3} parent=11 // pred_check_branch
        %195 = sbr.rel (%p193) target = $region28
      $region27: #{forward.3} parent=11 // pred_region
        _
      $region28: #{forward.3} parent=11 // pred_fallthru
        _
      // Predicated region
      $region29: #{forward.3} parent=11 // pred_check
        %p196 = pneg %p143
      $region30: #{forward.3} parent=11 // pred_check_branch
        %198 = sbr.rel (%p196) target = $region32
      $region31: #{forward.3} parent=11 // pred_region
        _
      $region32: #{forward.3} parent=11 // pred_fallthru
        _
    $region12: #{forward.3} parent=5 // pred_fallthru
      _
    %p199 = scmp.lt.s32.totalorder %s12, 2
    // Predicated region
    $region33: #{forward.3} parent=5 // pred_check
      %p200 = pneg %p199
    $region34: #{forward.3} parent=5 // pred_check_branch
      %202 = sbr.rel (%p200) target = $region36
    $region35: #{forward.3} parent=5 // pred_region
      // Predicated region
      $region37: #{forward.3} parent=35 // pred_check
        %p203 = pneg %p32
      $region38: #{forward.3} parent=35 // pred_check_branch
        %205 = sbr.rel (%p203) target = $region40
      $region39: #{forward.3} parent=35 // pred_region
        %p206 = scmp.lt.s32.totalorder %s12, 1
        %s207 = scalar_select %p206, %s12, 1
        %s208 = smul.addr %s207, 24
        %s209 = smul.addr %s208, 4
        %s210 = scalar_lea.vmem %s0, %s209
      $region40: #{forward.3} parent=35 // pred_fallthru
        _
    $region36: #{forward.3} parent=5 // pred_fallthru
      _
    %p211 = scmp.le.s32.totalorder 1, %s12
    %p212 = scmp.lt.s32.totalorder %s12, 3
    %p213 = pnand %p211, %p212
    %p214 = pneg %p213
    // Predicated region
    $region41: #{forward.3} parent=5 // pred_check
      _
    $region42: #{forward.3} parent=5 // pred_check_branch
      %216 = sbr.rel (%p213) target = $region44
    $region43: #{forward.3} parent=5 // pred_region
      %s217 = ssub.s32 %s12, 1
      %p218 = scmp.lt.s32.totalorder %s17, 1
      %s219 = scalar_select %p218, %s17, 1
      %s220 = smul.addr %s219, 24
      %s221 = smul.addr %s220, 4
      %s222 = scalar_lea.vmem %s0, %s221
      %p223 = pneg %p38
      %p224 = pneg %p35
      %p225 = pneg %p59
      %p226 = pneg %p56
      %p227 = pneg %p80
      %p228 = pneg %p77
      %p229 = pneg %p101
      %p230 = pneg %p98
      %p231 = pneg %p122
      %p232 = pneg %p119
      %p233 = pneg %p143
      %p234 = pneg %p140
      %p235 = pneg %p169
      %p236 = pneg %p166
      %p237 = scmp.lt.s32.totalorder %s17, 1
      %s238 = scalar_select %p237, %s17, 1
      %s239 = smul.addr %s238, 4
      %s240 = smul.addr %s239, 4
      %s241 = scalar_lea.vmem %s6, %s240
      %p242 = scmp.lt.s32.totalorder %s17, 1
      %s243 = scalar_select %p242, %s17, 1
      %s244 = smul.addr %s243, 24
      %s245 = smul.addr %s244, 4
      %s246 = scalar_lea.vmem %s0, %s245
      %p247 = scmp.lt.s32.totalorder %s17, 1
      %s248 = scalar_select %p247, %s17, 1
      %s249 = smul.addr %s248, 4
      %s250 = smul.addr %s249, 4
      %s251 = scalar_lea.vmem %s6, %s250
      %v253 = vld [vmem:[%s1] sm:$0xf]
      %v254 = vld [vmem:[%s1 + $0x4] sm:$0xf]
      %v255 = vld [vmem:[%s1 + $0x8] sm:$0xf]
      %v256 = vld [vmem:[%s1 + $0xc] sm:$0xf]
      %v257 = vld [vmem:[%s246] sm:$0xff]
      %v258 = vld [vmem:[%s246 + $0x8] sm:$0xff]
      %v259 = vld [vmem:[%s246 + $0x10] sm:$0xff]
      %v260 = vld [vmem:[%s246 + $0x18] sm:$0xff]
      %v261 = vld [vmem:[%s246 + $0x20] sm:$0xff]
      %v262 = vld [vmem:[%s246 + $0x28] sm:$0xff]
      %v263 = vld [vmem:[%s246 + $0x30] sm:$0xff]
      %v264 = vld [vmem:[%s246 + $0x38] sm:$0xff]
      %v265 = vld [vmem:[%s246 + $0x40] sm:$0xff]
      %v266 = vld [vmem:[%s246 + $0x48] sm:$0xff]
      %v267 = vld [vmem:[%s246 + $0x50] sm:$0xff]
      %v268 = vld [vmem:[%s246 + $0x58] sm:$0xff]
      %v269 = vld [vmem:[%s2] sm:$0xff]
      %v270 = vld [vmem:[%s2 + $0x8] sm:$0xff]
      %v271 = vld [vmem:[%s2 + $0x10] sm:$0xff]
      %v272 = vld [vmem:[%s2 + $0x18] sm:$0xff]
      %274 = vset.pattern.permute.xlu0 0
      %275 = vperm.xlu0 %274, %v269
      %v276 = vpop.permute.xlu0 %275
      %279 = vset.pattern.permute.xlu0 0
      %280 = vperm.xlu0 %279, %v270
      %v281 = vpop.permute.xlu0 %280
      %284 = vset.pattern.permute.xlu0 0
      %285 = vperm.xlu0 %284, %v271
      %v286 = vpop.permute.xlu0 %285
      %289 = vset.pattern.permute.xlu0 0
      %290 = vperm.xlu0 %289, %v272
      %v291 = vpop.permute.xlu0 %290
      %v297 = vunpack.c.l.b16 %v253
      %v298 = vunpack.c.l.b16 %v254
      %v299 = vunpack.c.l.b16 %v255
      %v300 = vunpack.c.l.b16 %v256
      %v301 = vpack.c.b16 %v298, %v297
      %v302 = vpack.c.b16 %v300, %v299
      %v315 = vunpack.c.l.b16 %v257
      %v316 = vunpack.c.h.b16 %v257
      %v317 = vunpack.c.l.b16 %v258
      %v318 = vunpack.c.h.b16 %v258
      %v319 = vunpack.c.l.b16 %v259
      %v320 = vunpack.c.h.b16 %v259
      %v321 = vunpack.c.l.b16 %v260
      %v322 = vunpack.c.h.b16 %v260
      %v323 = vunpack.c.l.b16 %v261
      %v324 = vunpack.c.h.b16 %v261
      %v325 = vunpack.c.l.b16 %v262
      %v326 = vunpack.c.h.b16 %v262
      %v327 = vunpack.c.l.b16 %v263
      %v328 = vunpack.c.h.b16 %v263
      %v329 = vunpack.c.l.b16 %v264
      %v330 = vunpack.c.h.b16 %v264
      %v331 = vunpack.c.l.b16 %v265
      %v332 = vunpack.c.h.b16 %v265
      %v333 = vunpack.c.l.b16 %v266
      %v334 = vunpack.c.h.b16 %v266
      %v335 = vunpack.c.l.b16 %v267
      %v336 = vunpack.c.h.b16 %v267
      %v337 = vunpack.c.l.b16 %v268
      %v338 = vunpack.c.h.b16 %v268
      %v339 = vpack.c.b16 %v321, %v315
      %v340 = vpack.c.b16 %v322, %v316
      %v341 = vpack.c.b16 %v323, %v317
      %v342 = vpack.c.b16 %v324, %v318
      %v343 = vpack.c.b16 %v325, %v319
      %v344 = vpack.c.b16 %v326, %v320
      %v345 = vpack.c.b16 %v333, %v327
      %v346 = vpack.c.b16 %v334, %v328
      %v347 = vpack.c.b16 %v335, %v329
      %v348 = vpack.c.b16 %v336, %v330
      %v349 = vpack.c.b16 %v337, %v331
      %v350 = vpack.c.b16 %v338, %v332
      %vm363 = vcmask 261120
      %v365 = vsel %vm363, %v301, 0
      %v368 = vsel %vm363, %v302, 0
      %370 = vmatprep.subr.bf16.mxu0 %v340
      %371 = vmatpush1.bf16.msra.mxu0 %v339
      %372 = vmatprep.subr.bf16.mxu0 %v346
      %373 = vmatpush1.bf16.msra.mxu0 %v345
      %374 = vmatprep.subr.bf16.mxu0 0
      %375 = vmatpush1.bf16.msra.mxu0 0
      %376 = vmatprep.subr.bf16.mxu0 0
      %377 = vmatpush1.bf16.msra.mxu0 0
      %378 = vmatprep.subr.bf16.mxu0 0
      %379 = vmatpush1.bf16.msra.mxu0 0
      %380 = vmatprep.subr.bf16.mxu0 0
      %381 = vmatpush1.bf16.msra.mxu0 0
      %382 = vmatprep.subr.bf16.mxu0 0
      %383 = vmatpush1.bf16.msra.mxu0 0
      %384 = vmatprep.subr.bf16.mxu0 0
      %385 = vmatpush1.bf16.msra.mxu0 0
      %386 = vmatprep.subr.bf16.mxu0 0
      %387 = vmatpush1.bf16.msra.mxu0 0
      %388 = vmatprep.subr.bf16.mxu0 0
      %389 = vmatpush1.bf16.msra.mxu0 0
      %390 = vmatprep.subr.bf16.mxu0 0
      %391 = vmatpush1.bf16.msra.mxu0 0
      %392 = vmatprep.subr.bf16.mxu0 0
      %393 = vmatpush1.bf16.msra.mxu0 0
      %394 = vmatprep.subr.bf16.mxu0 0
      %395 = vmatpush1.bf16.msra.mxu0 0
      %396 = vmatprep.subr.bf16.mxu0 0
      %397 = vmatpush1.bf16.msra.mxu0 0
      %398 = vmatprep.subr.bf16.mxu0 0
      %399 = vmatpush1.bf16.msra.mxu0 0
      %400 = vmatprep.subr.bf16.mxu0 0
      %401 = vmatpush1.bf16.msra.mxu0 0
      %402 = vmatprep.mubr.bf16.mxu0 0
      %403 = vmatmul.mubr.bf16.gmra.mrb[0].mxu0 %v365
      %v404 = vpop.f32.mrb[0].mxu0
      %v405 = vadd.f32 %v276, %v404
      %v406 = vpop.f32.mrb[0].mxu0
      %v407 = vadd.f32 %v276, %v406
      %v408 = vpop.f32.mrb[0].mxu0
      %v409 = vadd.f32 %v281, %v408
      %v410 = vpop.f32.mrb[0].mxu0
      %v411 = vadd.f32 %v281, %v410
      %412 = vmatprep.mubr.bf16.mxu0 0
      %413 = vmatmul.mubr.bf16.gmra.mrb[0].mxu0 %v368
      %v414 = vpop.f32.mrb[0].mxu0
      %v415 = vadd.f32 %v286, %v414
      %v416 = vpop.f32.mrb[0].mxu0
      %v417 = vadd.f32 %v286, %v416
      %v418 = vpop.f32.mrb[0].mxu0
      %v419 = vadd.f32 %v291, %v418
      %v420 = vpop.f32.mrb[0].mxu0
      %v421 = vadd.f32 %v291, %v420
      %422 = vdwg.mxu0
      %423 = vmatprep.subr.bf16.mxu0 %v342
      %424 = vmatpush1.bf16.msra.mxu0 %v341
      %425 = vmatprep.subr.bf16.mxu0 %v348
      %426 = vmatpush1.bf16.msra.mxu0 %v347
      %427 = vmatprep.subr.bf16.mxu0 0
      %428 = vmatpush1.bf16.msra.mxu0 0
      %429 = vmatprep.subr.bf16.mxu0 0
      %430 = vmatpush1.bf16.msra.mxu0 0
      %431 = vmatprep.subr.bf16.mxu0 0
      %432 = vmatpush1.bf16.msra.mxu0 0
      %433 = vmatprep.subr.bf16.mxu0 0
      %434 = vmatpush1.bf16.msra.mxu0 0
      %435 = vmatprep.subr.bf16.mxu0 0
      %436 = vmatpush1.bf16.msra.mxu0 0
      %437 = vmatprep.subr.bf16.mxu0 0
      %438 = vmatpush1.bf16.msra.mxu0 0
      %439 = vmatprep.subr.bf16.mxu0 0
      %440 = vmatpush1.bf16.msra.mxu0 0
      %441 = vmatprep.subr.bf16.mxu0 0
      %442 = vmatpush1.bf16.msra.mxu0 0
      %443 = vmatprep.subr.bf16.mxu0 0
      %444 = vmatpush1.bf16.msra.mxu0 0
      %445 = vmatprep.subr.bf16.mxu0 0
      %446 = vmatpush1.bf16.msra.mxu0 0
      %447 = vmatprep.subr.bf16.mxu0 0
      %448 = vmatpush1.bf16.msra.mxu0 0
      %449 = vmatprep.subr.bf16.mxu0 0
      %450 = vmatpush1.bf16.msra.mxu0 0
      %451 = vmatprep.subr.bf16.mxu0 0
      %452 = vmatpush1.bf16.msra.mxu0 0
      %453 = vmatprep.subr.bf16.mxu0 0
      %454 = vmatpush1.bf16.msra.mxu0 0
      %455 = vmatprep.mubr.bf16.mxu0 0
      %456 = vmatmul.mubr.bf16.gmra.mrb[0].mxu0 %v365
      %v457 = vpop.f32.mrb[0].mxu0
      %v458 = vadd.f32 %v276, %v457
      %v459 = vpop.f32.mrb[0].mxu0
      %v460 = vadd.f32 %v276, %v459
      %v461 = vpop.f32.mrb[0].mxu0
      %v462 = vadd.f32 %v281, %v461
      %v463 = vpop.f32.mrb[0].mxu0
      %v464 = vadd.f32 %v281, %v463
      %465 = vmatprep.mubr.bf16.mxu0 0
      %466 = vmatmul.mubr.bf16.gmra.mrb[0].mxu0 %v368
      %v467 = vpop.f32.mrb[0].mxu0
      %v468 = vadd.f32 %v286, %v467
      %v469 = vpop.f32.mrb[0].mxu0
      %v470 = vadd.f32 %v286, %v469
      %v471 = vpop.f32.mrb[0].mxu0
      %v472 = vadd.f32 %v291, %v471
      %v473 = vpop.f32.mrb[0].mxu0
      %v474 = vadd.f32 %v291, %v473
      %475 = vdwg.mxu0
      %476 = vmatprep.subr.bf16.mxu0 %v344
      %477 = vmatpush1.bf16.msra.mxu0 %v343
      %478 = vmatprep.subr.bf16.mxu0 %v350
      %479 = vmatpush1.bf16.msra.mxu0 %v349
      %480 = vmatprep.subr.bf16.mxu0 0
      %481 = vmatpush1.bf16.msra.mxu0 0
      %482 = vmatprep.subr.bf16.mxu0 0
      %483 = vmatpush1.bf16.msra.mxu0 0
      %484 = vmatprep.subr.bf16.mxu0 0
      %485 = vmatpush1.bf16.msra.mxu0 0
      %486 = vmatprep.subr.bf16.mxu0 0
      %487 = vmatpush1.bf16.msra.mxu0 0
      %488 = vmatprep.subr.bf16.mxu0 0
      %489 = vmatpush1.bf16.msra.mxu0 0
      %490 = vmatprep.subr.bf16.mxu0 0
      %491 = vmatpush1.bf16.msra.mxu0 0
      %492 = vmatprep.subr.bf16.mxu0 0
      %493 = vmatpush1.bf16.msra.mxu0 0
      %494 = vmatprep.subr.bf16.mxu0 0
      %495 = vmatpush1.bf16.msra.mxu0 0
      %496 = vmatprep.subr.bf16.mxu0 0
      %497 = vmatpush1.bf16.msra.mxu0 0
      %498 = vmatprep.subr.bf16.mxu0 0
      %499 = vmatpush1.bf16.msra.mxu0 0
      %500 = vmatprep.subr.bf16.mxu0 0
      %501 = vmatpush1.bf16.msra.mxu0 0
      %502 = vmatprep.subr.bf16.mxu0 0
      %503 = vmatpush1.bf16.msra.mxu0 0
      %504 = vmatprep.subr.bf16.mxu0 0
      %505 = vmatpush1.bf16.msra.mxu0 0
      %506 = vmatprep.subr.bf16.mxu0 0
      %507 = vmatpush1.bf16.msra.mxu0 0
      %508 = vmatprep.mubr.bf16.mxu0 0
      %509 = vmatmul.mubr.bf16.gmra.mrb[0].mxu0 %v365
      %v510 = vpop.f32.mrb[0].mxu0
      %v511 = vadd.f32 %v276, %v510
      %v512 = vpop.f32.mrb[0].mxu0
      %v513 = vadd.f32 %v276, %v512
      %v514 = vpop.f32.mrb[0].mxu0
      %v515 = vadd.f32 %v281, %v514
      %v516 = vpop.f32.mrb[0].mxu0
      %v517 = vadd.f32 %v281, %v516
      %518 = vmatprep.mubr.bf16.mxu0 0
      %519 = vmatmul.mubr.bf16.gmra.mrb[0].mxu0 %v368
      %v520 = vpop.f32.mrb[0].mxu0
      %v521 = vadd.f32 %v286, %v520
      %v522 = vpop.f32.mrb[0].mxu0
      %v523 = vadd.f32 %v286, %v522
      %v524 = vpop.f32.mrb[0].mxu0
      %v525 = vadd.f32 %v291, %v524
      %v526 = vpop.f32.mrb[0].mxu0
      %v527 = vadd.f32 %v291, %v526
      %528 = vdwg.mxu0
      %v529 = vmax.f32 %v405, 0.0
      %v530 = vmax.f32 %v407, 0.0
      %v531 = vmax.f32 %v458, 0.0
      %v532 = vmax.f32 %v460, 0.0
      %v533 = vmax.f32 %v511, 0.0
      %v534 = vmax.f32 %v513, 0.0
      %v535 = vmax.f32 %v409, 0.0
      %v536 = vmax.f32 %v411, 0.0
      %v537 = vmax.f32 %v462, 0.0
      %v538 = vmax.f32 %v464, 0.0
      %v539 = vmax.f32 %v515, 0.0
      %v540 = vmax.f32 %v517, 0.0
      %v541 = vmax.f32 %v415, 0.0
      %v542 = vmax.f32 %v417, 0.0
      %v543 = vmax.f32 %v468, 0.0
      %v544 = vmax.f32 %v470, 0.0
      %v545 = vmax.f32 %v521, 0.0
      %v546 = vmax.f32 %v523, 0.0
      %v547 = vmax.f32 %v419, 0.0
      %v548 = vmax.f32 %v421, 0.0
      %v549 = vmax.f32 %v472, 0.0
      %v550 = vmax.f32 %v474, 0.0
      %v551 = vmax.f32 %v525, 0.0
      %v552 = vmax.f32 %v527, 0.0
      %v553 = vpack.c.bf16 %v535, %v529
      %v554 = vpack.c.bf16 %v536, %v530
      %v555 = vpack.c.bf16 %v537, %v531
      %v556 = vpack.c.bf16 %v538, %v532
      %v557 = vpack.c.bf16 %v539, %v533
      %v558 = vpack.c.bf16 %v540, %v534
      %v559 = vpack.c.bf16 %v547, %v541
      %v560 = vpack.c.bf16 %v548, %v542
      %v561 = vpack.c.bf16 %v549, %v543
      %v562 = vpack.c.bf16 %v550, %v544
      %v563 = vpack.c.bf16 %v551, %v545
      %v564 = vpack.c.bf16 %v552, %v546
      %575 = vrot.lane.b32.xlu0 %v553, 127
      %v576 = vpop.permute.xlu0 %575
      %577 = vrot.lane.b32.xlu0 %v554, 127
      %v578 = vpop.permute.xlu0 %577
      %579 = vrot.lane.b32.xlu0 %v555, 127
      %v580 = vpop.permute.xlu0 %579
      %581 = vrot.lane.b32.xlu0 %v556, 127
      %v582 = vpop.permute.xlu0 %581
      %583 = vrot.lane.b32.xlu0 %v557, 127
      %v584 = vpop.permute.xlu0 %583
      %585 = vrot.lane.b32.xlu0 %v559, 127
      %v586 = vpop.permute.xlu0 %585
      %587 = vrot.lane.b32.xlu0 %v560, 127
      %v588 = vpop.permute.xlu0 %587
      %589 = vrot.lane.b32.xlu0 %v561, 127
      %v590 = vpop.permute.xlu0 %589
      %591 = vrot.lane.b32.xlu0 %v562, 127
      %v592 = vpop.permute.xlu0 %591
      %593 = vrot.lane.b32.xlu0 %v563, 127
      %v594 = vpop.permute.xlu0 %593
      %vm595 = vcmask 1039360
      %v596 = vsel %vm595, %v576, %v578
      %v597 = vsel %vm595, %v578, %v580
      %v598 = vsel %vm595, %v580, %v582
      %v599 = vsel %vm595, %v582, %v584
      %v600 = vsel %vm595, %v586, %v588
      %v601 = vsel %vm595, %v588, %v590
      %v602 = vsel %vm595, %v590, %v592
      %v603 = vsel %vm595, %v592, %v594
      %614 = vrot.lane.b32.xlu0 %v553, 126
      %v615 = vpop.permute.xlu0 %614
      %616 = vrot.lane.b32.xlu0 %v554, 126
      %v617 = vpop.permute.xlu0 %616
      %618 = vrot.lane.b32.xlu0 %v555, 126
      %v619 = vpop.permute.xlu0 %618
      %620 = vrot.lane.b32.xlu0 %v556, 126
      %v621 = vpop.permute.xlu0 %620
      %622 = vrot.lane.b32.xlu0 %v557, 126
      %v623 = vpop.permute.xlu0 %622
      %624 = vrot.lane.b32.xlu0 %v559, 126
      %v625 = vpop.permute.xlu0 %624
      %626 = vrot.lane.b32.xlu0 %v560, 126
      %v627 = vpop.permute.xlu0 %626
      %628 = vrot.lane.b32.xlu0 %v561, 126
      %v629 = vpop.permute.xlu0 %628
      %630 = vrot.lane.b32.xlu0 %v562, 126
      %v631 = vpop.permute.xlu0 %630
      %632 = vrot.lane.b32.xlu0 %v563, 126
      %v633 = vpop.permute.xlu0 %632
      %vm634 = vcmask 1031168
      %v635 = vsel %vm634, %v615, %v617
      %v636 = vsel %vm634, %v617, %v619
      %v637 = vsel %vm634, %v619, %v621
      %v638 = vsel %vm634, %v621, %v623
      %v639 = vsel %vm634, %v625, %v627
      %v640 = vsel %vm634, %v627, %v629
      %v641 = vsel %vm634, %v629, %v631
      %v642 = vsel %vm634, %v631, %v633
      %653 = vrot.lane.b32.xlu0 %v553, 125
      %v654 = vpop.permute.xlu0 %653
      %655 = vrot.lane.b32.xlu0 %v554, 125
      %v656 = vpop.permute.xlu0 %655
      %657 = vrot.lane.b32.xlu0 %v555, 125
      %v658 = vpop.permute.xlu0 %657
      %659 = vrot.lane.b32.xlu0 %v556, 125
      %v660 = vpop.permute.xlu0 %659
      %661 = vrot.lane.b32.xlu0 %v557, 125
      %v662 = vpop.permute.xlu0 %661
      %663 = vrot.lane.b32.xlu0 %v559, 125
      %v664 = vpop.permute.xlu0 %663
      %665 = vrot.lane.b32.xlu0 %v560, 125
      %v666 = vpop.permute.xlu0 %665
      %667 = vrot.lane.b32.xlu0 %v561, 125
      %v668 = vpop.permute.xlu0 %667
      %669 = vrot.lane.b32.xlu0 %v562, 125
      %v670 = vpop.permute.xlu0 %669
      %671 = vrot.lane.b32.xlu0 %v563, 125
      %v672 = vpop.permute.xlu0 %671
      %vm673 = vcmask 1022976
      %v674 = vsel %vm673, %v654, %v656
      %v675 = vsel %vm673, %v656, %v658
      %v676 = vsel %vm673, %v658, %v660
      %v677 = vsel %vm673, %v660, %v662
      %v678 = vsel %vm673, %v664, %v666
      %v679 = vsel %vm673, %v666, %v668
      %v680 = vsel %vm673, %v668, %v670
      %v681 = vsel %vm673, %v670, %v672
      %692 = vrot.lane.b32.xlu0 %v553, 124
      %v693 = vpop.permute.xlu0 %692
      %694 = vrot.lane.b32.xlu0 %v554, 124
      %v695 = vpop.permute.xlu0 %694
      %696 = vrot.lane.b32.xlu0 %v555, 124
      %v697 = vpop.permute.xlu0 %696
      %698 = vrot.lane.b32.xlu0 %v556, 124
      %v699 = vpop.permute.xlu0 %698
      %700 = vrot.lane.b32.xlu0 %v557, 124
      %v701 = vpop.permute.xlu0 %700
      %702 = vrot.lane.b32.xlu0 %v559, 124
      %v703 = vpop.permute.xlu0 %702
      %704 = vrot.lane.b32.xlu0 %v560, 124
      %v705 = vpop.permute.xlu0 %704
      %706 = vrot.lane.b32.xlu0 %v561, 124
      %v707 = vpop.permute.xlu0 %706
      %708 = vrot.lane.b32.xlu0 %v562, 124
      %v709 = vpop.permute.xlu0 %708
      %710 = vrot.lane.b32.xlu0 %v563, 124
      %v711 = vpop.permute.xlu0 %710
      %vm712 = vcmask 1014784
      %v713 = vsel %vm712, %v693, %v695
      %v714 = vsel %vm712, %v695, %v697
      %v715 = vsel %vm712, %v697, %v699
      %v716 = vsel %vm712, %v699, %v701
      %v717 = vsel %vm712, %v703, %v705
      %v718 = vsel %vm712, %v705, %v707
      %v719 = vsel %vm712, %v707, %v709
      %v720 = vsel %vm712, %v709, %v711
      %731 = vrot.lane.b32.xlu0 %v553, 100
      %v732 = vpop.permute.xlu0 %731
      %733 = vrot.lane.b32.xlu0 %v554, 100
      %v734 = vpop.permute.xlu0 %733
      %735 = vrot.lane.b32.xlu0 %v555, 100
      %v736 = vpop.permute.xlu0 %735
      %737 = vrot.lane.b32.xlu0 %v556, 100
      %v738 = vpop.permute.xlu0 %737
      %739 = vrot.lane.b32.xlu0 %v557, 100
      %v740 = vpop.permute.xlu0 %739
      %741 = vrot.lane.b32.xlu0 %v559, 100
      %v742 = vpop.permute.xlu0 %741
      %743 = vrot.lane.b32.xlu0 %v560, 100
      %v744 = vpop.permute.xlu0 %743
      %745 = vrot.lane.b32.xlu0 %v561, 100
      %v746 = vpop.permute.xlu0 %745
      %747 = vrot.lane.b32.xlu0 %v562, 100
      %v748 = vpop.permute.xlu0 %747
      %749 = vrot.lane.b32.xlu0 %v563, 100
      %v750 = vpop.permute.xlu0 %749
      %vm751 = vcmask 818176
      %v752 = vsel %vm751, %v732, %v734
      %v753 = vsel %vm751, %v734, %v736
      %v754 = vsel %vm751, %v736, %v738
      %v755 = vsel %vm751, %v738, %v740
      %v756 = vsel %vm751, %v742, %v744
      %v757 = vsel %vm751, %v744, %v746
      %v758 = vsel %vm751, %v746, %v748
      %v759 = vsel %vm751, %v748, %v750
      %770 = vrot.lane.b32.xlu0 %v553, 99
      %v771 = vpop.permute.xlu0 %770
      %772 = vrot.lane.b32.xlu0 %v554, 99
      %v773 = vpop.permute.xlu0 %772
      %774 = vrot.lane.b32.xlu0 %v555, 99
      %v775 = vpop.permute.xlu0 %774
      %776 = vrot.lane.b32.xlu0 %v556, 99
      %v777 = vpop.permute.xlu0 %776
      %778 = vrot.lane.b32.xlu0 %v557, 99
      %v779 = vpop.permute.xlu0 %778
      %780 = vrot.lane.b32.xlu0 %v559, 99
      %v781 = vpop.permute.xlu0 %780
      %782 = vrot.lane.b32.xlu0 %v560, 99
      %v783 = vpop.permute.xlu0 %782
      %784 = vrot.lane.b32.xlu0 %v561, 99
      %v785 = vpop.permute.xlu0 %784
      %786 = vrot.lane.b32.xlu0 %v562, 99
      %v787 = vpop.permute.xlu0 %786
      %788 = vrot.lane.b32.xlu0 %v563, 99
      %v789 = vpop.permute.xlu0 %788
      %vm790 = vcmask 809984
      %v791 = vsel %vm790, %v771, %v773
      %v792 = vsel %vm790, %v773, %v775
      %v793 = vsel %vm790, %v775, %v777
      %v794 = vsel %vm790, %v777, %v779
      %v795 = vsel %vm790, %v781, %v783
      %v796 = vsel %vm790, %v783, %v785
      %v797 = vsel %vm790, %v785, %v787
      %v798 = vsel %vm790, %v787, %v789
      %809 = vrot.lane.b32.xlu0 %v553, 98
      %v810 = vpop.permute.xlu0 %809
      %811 = vrot.lane.b32.xlu0 %v554, 98
      %v812 = vpop.permute.xlu0 %811
      %813 = vrot.lane.b32.xlu0 %v555, 98
      %v814 = vpop.permute.xlu0 %813
      %815 = vrot.lane.b32.xlu0 %v556, 98
      %v816 = vpop.permute.xlu0 %815
      %817 = vrot.lane.b32.xlu0 %v557, 98
      %v818 = vpop.permute.xlu0 %817
      %819 = vrot.lane.b32.xlu0 %v559, 98
      %v820 = vpop.permute.xlu0 %819
      %821 = vrot.lane.b32.xlu0 %v560, 98
      %v822 = vpop.permute.xlu0 %821
      %823 = vrot.lane.b32.xlu0 %v561, 98
      %v824 = vpop.permute.xlu0 %823
      %825 = vrot.lane.b32.xlu0 %v562, 98
      %v826 = vpop.permute.xlu0 %825
      %827 = vrot.lane.b32.xlu0 %v563, 98
      %v828 = vpop.permute.xlu0 %827
      %vm829 = vcmask 801792
      %v830 = vsel %vm829, %v810, %v812
      %v831 = vsel %vm829, %v812, %v814
      %v832 = vsel %vm829, %v814, %v816
      %v833 = vsel %vm829, %v816, %v818
      %v834 = vsel %vm829, %v820, %v822
      %v835 = vsel %vm829, %v822, %v824
      %v836 = vsel %vm829, %v824, %v826
      %v837 = vsel %vm829, %v826, %v828
      %848 = vrot.lane.b32.xlu0 %v553, 97
      %v849 = vpop.permute.xlu0 %848
      %850 = vrot.lane.b32.xlu0 %v554, 97
      %v851 = vpop.permute.xlu0 %850
      %852 = vrot.lane.b32.xlu0 %v555, 97
      %v853 = vpop.permute.xlu0 %852
      %854 = vrot.lane.b32.xlu0 %v556, 97
      %v855 = vpop.permute.xlu0 %854
      %856 = vrot.lane.b32.xlu0 %v557, 97
      %v857 = vpop.permute.xlu0 %856
      %858 = vrot.lane.b32.xlu0 %v559, 97
      %v859 = vpop.permute.xlu0 %858
      %860 = vrot.lane.b32.xlu0 %v560, 97
      %v861 = vpop.permute.xlu0 %860
      %862 = vrot.lane.b32.xlu0 %v561, 97
      %v863 = vpop.permute.xlu0 %862
      %864 = vrot.lane.b32.xlu0 %v562, 97
      %v865 = vpop.permute.xlu0 %864
      %866 = vrot.lane.b32.xlu0 %v563, 97
      %v867 = vpop.permute.xlu0 %866
      %vm868 = vcmask 793600
      %v869 = vsel %vm868, %v849, %v851
      %v870 = vsel %vm868, %v851, %v853
      %v871 = vsel %vm868, %v853, %v855
      %v872 = vsel %vm868, %v855, %v857
      %v873 = vsel %vm868, %v859, %v861
      %v874 = vsel %vm868, %v861, %v863
      %v875 = vsel %vm868, %v863, %v865
      %v876 = vsel %vm868, %v865, %v867
      %887 = vrot.lane.b32.xlu0 %v553, 96
      %v888 = vpop.permute.xlu0 %887
      %889 = vrot.lane.b32.xlu0 %v554, 96
      %v890 = vpop.permute.xlu0 %889
      %891 = vrot.lane.b32.xlu0 %v555, 96
      %v892 = vpop.permute.xlu0 %891
      %893 = vrot.lane.b32.xlu0 %v556, 96
      %v894 = vpop.permute.xlu0 %893
      %895 = vrot.lane.b32.xlu0 %v557, 96
      %v896 = vpop.permute.xlu0 %895
      %897 = vrot.lane.b32.xlu0 %v559, 96
      %v898 = vpop.permute.xlu0 %897
      %899 = vrot.lane.b32.xlu0 %v560, 96
      %v900 = vpop.permute.xlu0 %899
      %901 = vrot.lane.b32.xlu0 %v561, 96
      %v902 = vpop.permute.xlu0 %901
      %903 = vrot.lane.b32.xlu0 %v562, 96
      %v904 = vpop.permute.xlu0 %903
      %905 = vrot.lane.b32.xlu0 %v563, 96
      %v906 = vpop.permute.xlu0 %905
      %vm907 = vcmask 785408
      %v908 = vsel %vm907, %v888, %v890
      %v909 = vsel %vm907, %v890, %v892
      %v910 = vsel %vm907, %v892, %v894
      %v911 = vsel %vm907, %v894, %v896
      %v912 = vsel %vm907, %v898, %v900
      %v913 = vsel %vm907, %v900, %v902
      %v914 = vsel %vm907, %v902, %v904
      %v915 = vsel %vm907, %v904, %v906
      %926 = vrot.lane.b32.xlu0 %v553, 72
      %v927 = vpop.permute.xlu0 %926
      %928 = vrot.lane.b32.xlu0 %v554, 72
      %v929 = vpop.permute.xlu0 %928
      %930 = vrot.lane.b32.xlu0 %v555, 72
      %v931 = vpop.permute.xlu0 %930
      %932 = vrot.lane.b32.xlu0 %v556, 72
      %v933 = vpop.permute.xlu0 %932
      %934 = vrot.lane.b32.xlu0 %v557, 72
      %v935 = vpop.permute.xlu0 %934
      %936 = vrot.lane.b32.xlu0 %v559, 72
      %v937 = vpop.permute.xlu0 %936
      %938 = vrot.lane.b32.xlu0 %v560, 72
      %v939 = vpop.permute.xlu0 %938
      %940 = vrot.lane.b32.xlu0 %v561, 72
      %v941 = vpop.permute.xlu0 %940
      %942 = vrot.lane.b32.xlu0 %v562, 72
      %v943 = vpop.permute.xlu0 %942
      %944 = vrot.lane.b32.xlu0 %v563, 72
      %v945 = vpop.permute.xlu0 %944
      %vm946 = vcmask 588800
      %v947 = vsel %vm946, %v927, %v929
      %v948 = vsel %vm946, %v929, %v931
      %v949 = vsel %vm946, %v931, %v933
      %v950 = vsel %vm946, %v933, %v935
      %v951 = vsel %vm946, %v937, %v939
      %v952 = vsel %vm946, %v939, %v941
      %v953 = vsel %vm946, %v941, %v943
      %v954 = vsel %vm946, %v943, %v945
      %965 = vrot.lane.b32.xlu0 %v553, 71
      %v966 = vpop.permute.xlu0 %965
      %967 = vrot.lane.b32.xlu0 %v554, 71
      %v968 = vpop.permute.xlu0 %967
      %969 = vrot.lane.b32.xlu0 %v555, 71
      %v970 = vpop.permute.xlu0 %969
      %971 = vrot.lane.b32.xlu0 %v556, 71
      %v972 = vpop.permute.xlu0 %971
      %973 = vrot.lane.b32.xlu0 %v557, 71
      %v974 = vpop.permute.xlu0 %973
      %975 = vrot.lane.b32.xlu0 %v559, 71
      %v976 = vpop.permute.xlu0 %975
      %977 = vrot.lane.b32.xlu0 %v560, 71
      %v978 = vpop.permute.xlu0 %977
      %979 = vrot.lane.b32.xlu0 %v561, 71
      %v980 = vpop.permute.xlu0 %979
      %981 = vrot.lane.b32.xlu0 %v562, 71
      %v982 = vpop.permute.xlu0 %981
      %983 = vrot.lane.b32.xlu0 %v563, 71
      %v984 = vpop.permute.xlu0 %983
      %vm985 = vcmask 580608
      %v986 = vsel %vm985, %v966, %v968
      %v987 = vsel %vm985, %v968, %v970
      %v988 = vsel %vm985, %v970, %v972
      %v989 = vsel %vm985, %v972, %v974
      %v990 = vsel %vm985, %v976, %v978
      %v991 = vsel %vm985, %v978, %v980
      %v992 = vsel %vm985, %v980, %v982
      %v993 = vsel %vm985, %v982, %v984
      %1004 = vrot.lane.b32.xlu0 %v553, 70
      %v1005 = vpop.permute.xlu0 %1004
      %1006 = vrot.lane.b32.xlu0 %v554, 70
      %v1007 = vpop.permute.xlu0 %1006
      %1008 = vrot.lane.b32.xlu0 %v555, 70
      %v1009 = vpop.permute.xlu0 %1008
      %1010 = vrot.lane.b32.xlu0 %v556, 70
      %v1011 = vpop.permute.xlu0 %1010
      %1012 = vrot.lane.b32.xlu0 %v557, 70
      %v1013 = vpop.permute.xlu0 %1012
      %1014 = vrot.lane.b32.xlu0 %v559, 70
      %v1015 = vpop.permute.xlu0 %1014
      %1016 = vrot.lane.b32.xlu0 %v560, 70
      %v1017 = vpop.permute.xlu0 %1016
      %1018 = vrot.lane.b32.xlu0 %v561, 70
      %v1019 = vpop.permute.xlu0 %1018
      %1020 = vrot.lane.b32.xlu0 %v562, 70
      %v1021 = vpop.permute.xlu0 %1020
      %1022 = vrot.lane.b32.xlu0 %v563, 70
      %v1023 = vpop.permute.xlu0 %1022
      %vm1024 = vcmask 572416
      %v1025 = vsel %vm1024, %v1005, %v1007
      %v1026 = vsel %vm1024, %v1007, %v1009
      %v1027 = vsel %vm1024, %v1009, %v1011
      %v1028 = vsel %vm1024, %v1011, %v1013
      %v1029 = vsel %vm1024, %v1015, %v1017
      %v1030 = vsel %vm1024, %v1017, %v1019
      %v1031 = vsel %vm1024, %v1019, %v1021
      %v1032 = vsel %vm1024, %v1021, %v1023
      %1043 = vrot.lane.b32.xlu0 %v553, 69
      %v1044 = vpop.permute.xlu0 %1043
      %1045 = vrot.lane.b32.xlu0 %v554, 69
      %v1046 = vpop.permute.xlu0 %1045
      %1047 = vrot.lane.b32.xlu0 %v555, 69
      %v1048 = vpop.permute.xlu0 %1047
      %1049 = vrot.lane.b32.xlu0 %v556, 69
      %v1050 = vpop.permute.xlu0 %1049
      %1051 = vrot.lane.b32.xlu0 %v557, 69
      %v1052 = vpop.permute.xlu0 %1051
      %1053 = vrot.lane.b32.xlu0 %v559, 69
      %v1054 = vpop.permute.xlu0 %1053
      %1055 = vrot.lane.b32.xlu0 %v560, 69
      %v1056 = vpop.permute.xlu0 %1055
      %1057 = vrot.lane.b32.xlu0 %v561, 69
      %v1058 = vpop.permute.xlu0 %1057
      %1059 = vrot.lane.b32.xlu0 %v562, 69
      %v1060 = vpop.permute.xlu0 %1059
      %1061 = vrot.lane.b32.xlu0 %v563, 69
      %v1062 = vpop.permute.xlu0 %1061
      %vm1063 = vcmask 564224
      %v1064 = vsel %vm1063, %v1044, %v1046
      %v1065 = vsel %vm1063, %v1046, %v1048
      %v1066 = vsel %vm1063, %v1048, %v1050
      %v1067 = vsel %vm1063, %v1050, %v1052
      %v1068 = vsel %vm1063, %v1054, %v1056
      %v1069 = vsel %vm1063, %v1056, %v1058
      %v1070 = vsel %vm1063, %v1058, %v1060
      %v1071 = vsel %vm1063, %v1060, %v1062
      %1082 = vrot.lane.b32.xlu0 %v553, 68
      %v1083 = vpop.permute.xlu0 %1082
      %1084 = vrot.lane.b32.xlu0 %v554, 68
      %v1085 = vpop.permute.xlu0 %1084
      %1086 = vrot.lane.b32.xlu0 %v555, 68
      %v1087 = vpop.permute.xlu0 %1086
      %1088 = vrot.lane.b32.xlu0 %v556, 68
      %v1089 = vpop.permute.xlu0 %1088
      %1090 = vrot.lane.b32.xlu0 %v557, 68
      %v1091 = vpop.permute.xlu0 %1090
      %1092 = vrot.lane.b32.xlu0 %v559, 68
      %v1093 = vpop.permute.xlu0 %1092
      %1094 = vrot.lane.b32.xlu0 %v560, 68
      %v1095 = vpop.permute.xlu0 %1094
      %1096 = vrot.lane.b32.xlu0 %v561, 68
      %v1097 = vpop.permute.xlu0 %1096
      %1098 = vrot.lane.b32.xlu0 %v562, 68
      %v1099 = vpop.permute.xlu0 %1098
      %1100 = vrot.lane.b32.xlu0 %v563, 68
      %v1101 = vpop.permute.xlu0 %1100
      %vm1102 = vcmask 556032
      %v1103 = vsel %vm1102, %v1083, %v1085
      %v1104 = vsel %vm1102, %v1085, %v1087
      %v1105 = vsel %vm1102, %v1087, %v1089
      %v1106 = vsel %vm1102, %v1089, %v1091
      %v1107 = vsel %vm1102, %v1093, %v1095
      %v1108 = vsel %vm1102, %v1095, %v1097
      %v1109 = vsel %vm1102, %v1097, %v1099
      %v1110 = vsel %vm1102, %v1099, %v1101
      %1123 = vrot.lane.b32.xlu0 %v553, 44
      %v1124 = vpop.permute.xlu0 %1123
      %1125 = vrot.lane.b32.xlu0 %v554, 44
      %v1126 = vpop.permute.xlu0 %1125
      %1127 = vrot.lane.b32.xlu0 %v555, 44
      %v1128 = vpop.permute.xlu0 %1127
      %1129 = vrot.lane.b32.xlu0 %v556, 44
      %v1130 = vpop.permute.xlu0 %1129
      %1131 = vrot.lane.b32.xlu0 %v557, 44
      %v1132 = vpop.permute.xlu0 %1131
      %1133 = vrot.lane.b32.xlu0 %v558, 44
      %v1134 = vpop.permute.xlu0 %1133
      %1135 = vrot.lane.b32.xlu0 %v559, 44
      %v1136 = vpop.permute.xlu0 %1135
      %1137 = vrot.lane.b32.xlu0 %v560, 44
      %v1138 = vpop.permute.xlu0 %1137
      %1139 = vrot.lane.b32.xlu0 %v561, 44
      %v1140 = vpop.permute.xlu0 %1139
      %1141 = vrot.lane.b32.xlu0 %v562, 44
      %v1142 = vpop.permute.xlu0 %1141
      %1143 = vrot.lane.b32.xlu0 %v563, 44
      %v1144 = vpop.permute.xlu0 %1143
      %1145 = vrot.lane.b32.xlu0 %v564, 44
      %v1146 = vpop.permute.xlu0 %1145
      %vm1147 = vcmask 359424
      %v1148 = vsel %vm1147, %v1124, %v1126
      %v1149 = vsel %vm1147, %v1126, %v1128
      %v1150 = vsel %vm1147, %v1128, %v1130
      %v1151 = vsel %vm1147, %v1130, %v1132
      %v1152 = vsel %vm1147, %v1132, %v1134
      %v1153 = vsel %vm1147, %v1136, %v1138
      %v1154 = vsel %vm1147, %v1138, %v1140
      %v1155 = vsel %vm1147, %v1140, %v1142
      %v1156 = vsel %vm1147, %v1142, %v1144
      %v1157 = vsel %vm1147, %v1144, %v1146
      %1168 = vrot.lane.b32.xlu0 %v558, 127
      %v1169 = vpop.permute.xlu0 %1168
      %1170 = vrot.lane.b32.xlu0 %v564, 127
      %v1171 = vpop.permute.xlu0 %1170
      %v1172 = vsel %vm595, %v584, %v1169
      %v1173 = vsel %vm595, %v594, %v1171
      %1174 = vrot.lane.b32.xlu0 %v558, 126
      %v1175 = vpop.permute.xlu0 %1174
      %1176 = vrot.lane.b32.xlu0 %v564, 126
      %v1177 = vpop.permute.xlu0 %1176
      %v1178 = vsel %vm634, %v623, %v1175
      %v1179 = vsel %vm634, %v633, %v1177
      %1180 = vrot.lane.b32.xlu0 %v558, 125
      %v1181 = vpop.permute.xlu0 %1180
      %1182 = vrot.lane.b32.xlu0 %v564, 125
      %v1183 = vpop.permute.xlu0 %1182
      %v1184 = vsel %vm673, %v662, %v1181
      %v1185 = vsel %vm673, %v672, %v1183
      %1186 = vrot.lane.b32.xlu0 %v553, 101
      %v1187 = vpop.permute.xlu0 %1186
      %1188 = vrot.lane.b32.xlu0 %v554, 101
      %v1189 = vpop.permute.xlu0 %1188
      %1190 = vrot.lane.b32.xlu0 %v555, 101
      %v1191 = vpop.permute.xlu0 %1190
      %1192 = vrot.lane.b32.xlu0 %v556, 101
      %v1193 = vpop.permute.xlu0 %1192
      %1194 = vrot.lane.b32.xlu0 %v557, 101
      %v1195 = vpop.permute.xlu0 %1194
      %1196 = vrot.lane.b32.xlu0 %v558, 101
      %v1197 = vpop.permute.xlu0 %1196
      %1198 = vrot.lane.b32.xlu0 %v559, 101
      %v1199 = vpop.permute.xlu0 %1198
      %1200 = vrot.lane.b32.xlu0 %v560, 101
      %v1201 = vpop.permute.xlu0 %1200
      %1202 = vrot.lane.b32.xlu0 %v561, 101
      %v1203 = vpop.permute.xlu0 %1202
      %1204 = vrot.lane.b32.xlu0 %v562, 101
      %v1205 = vpop.permute.xlu0 %1204
      %1206 = vrot.lane.b32.xlu0 %v563, 101
      %v1207 = vpop.permute.xlu0 %1206
      %1208 = vrot.lane.b32.xlu0 %v564, 101
      %v1209 = vpop.permute.xlu0 %1208
      %vm1210 = vcmask 826368
      %v1211 = vsel %vm1210, %v1187, %v1189
      %v1212 = vsel %vm1210, %v1189, %v1191
      %v1213 = vsel %vm1210, %v1191, %v1193
      %v1214 = vsel %vm1210, %v1193, %v1195
      %v1215 = vsel %vm1210, %v1195, %v1197
      %v1216 = vsel %vm1210, %v1199, %v1201
      %v1217 = vsel %vm1210, %v1201, %v1203
      %v1218 = vsel %vm1210, %v1203, %v1205
      %v1219 = vsel %vm1210, %v1205, %v1207
      %v1220 = vsel %vm1210, %v1207, %v1209
      %1221 = vrot.lane.b32.xlu0 %v558, 100
      %v1222 = vpop.permute.xlu0 %1221
      %1223 = vrot.lane.b32.xlu0 %v564, 100
      %v1224 = vpop.permute.xlu0 %1223
      %v1225 = vsel %vm751, %v740, %v1222
      %v1226 = vsel %vm751, %v750, %v1224
      %1227 = vrot.lane.b32.xlu0 %v558, 99
      %v1228 = vpop.permute.xlu0 %1227
      %1229 = vrot.lane.b32.xlu0 %v564, 99
      %v1230 = vpop.permute.xlu0 %1229
      %v1231 = vsel %vm790, %v779, %v1228
      %v1232 = vsel %vm790, %v789, %v1230
      %1233 = vrot.lane.b32.xlu0 %v558, 98
      %v1234 = vpop.permute.xlu0 %1233
      %1235 = vrot.lane.b32.xlu0 %v564, 98
      %v1236 = vpop.permute.xlu0 %1235
      %v1237 = vsel %vm829, %v818, %v1234
      %v1238 = vsel %vm829, %v828, %v1236
      %1239 = vrot.lane.b32.xlu0 %v558, 97
      %v1240 = vpop.permute.xlu0 %1239
      %1241 = vrot.lane.b32.xlu0 %v564, 97
      %v1242 = vpop.permute.xlu0 %1241
      %v1243 = vsel %vm868, %v857, %v1240
      %v1244 = vsel %vm868, %v867, %v1242
      %1245 = vrot.lane.b32.xlu0 %v553, 43
      %v1246 = vpop.permute.xlu0 %1245
      %1247 = vrot.lane.b32.xlu0 %v554, 43
      %v1248 = vpop.permute.xlu0 %1247
      %1249 = vrot.lane.b32.xlu0 %v555, 43
      %v1250 = vpop.permute.xlu0 %1249
      %1251 = vrot.lane.b32.xlu0 %v556, 43
      %v1252 = vpop.permute.xlu0 %1251
      %1253 = vrot.lane.b32.xlu0 %v557, 43
      %v1254 = vpop.permute.xlu0 %1253
      %1255 = vrot.lane.b32.xlu0 %v558, 43
      %v1256 = vpop.permute.xlu0 %1255
      %1257 = vrot.lane.b32.xlu0 %v559, 43
      %v1258 = vpop.permute.xlu0 %1257
      %1259 = vrot.lane.b32.xlu0 %v560, 43
      %v1260 = vpop.permute.xlu0 %1259
      %1261 = vrot.lane.b32.xlu0 %v561, 43
      %v1262 = vpop.permute.xlu0 %1261
      %1263 = vrot.lane.b32.xlu0 %v562, 43
      %v1264 = vpop.permute.xlu0 %1263
      %1265 = vrot.lane.b32.xlu0 %v563, 43
      %v1266 = vpop.permute.xlu0 %1265
      %1267 = vrot.lane.b32.xlu0 %v564, 43
      %v1268 = vpop.permute.xlu0 %1267
      %1269 = vrot.lane.b32.xlu0 %v596, 43
      %v1270 = vpop.permute.xlu0 %1269
      %1271 = vrot.lane.b32.xlu0 %v597, 43
      %v1272 = vpop.permute.xlu0 %1271
      %1273 = vrot.lane.b32.xlu0 %v598, 43
      %v1274 = vpop.permute.xlu0 %1273
      %1275 = vrot.lane.b32.xlu0 %v599, 43
      %v1276 = vpop.permute.xlu0 %1275
      %1277 = vrot.lane.b32.xlu0 %v1172, 43
      %v1278 = vpop.permute.xlu0 %1277
      %1279 = vrot.lane.b32.xlu0 %v1169, 43
      %v1280 = vpop.permute.xlu0 %1279
      %1281 = vrot.lane.b32.xlu0 %v600, 43
      %v1282 = vpop.permute.xlu0 %1281
      %1283 = vrot.lane.b32.xlu0 %v601, 43
      %v1284 = vpop.permute.xlu0 %1283
      %1285 = vrot.lane.b32.xlu0 %v602, 43
      %v1286 = vpop.permute.xlu0 %1285
      %1287 = vrot.lane.b32.xlu0 %v603, 43
      %v1288 = vpop.permute.xlu0 %1287
      %1289 = vrot.lane.b32.xlu0 %v1173, 43
      %v1290 = vpop.permute.xlu0 %1289
      %1291 = vrot.lane.b32.xlu0 %v1171, 43
      %v1292 = vpop.permute.xlu0 %1291
      %1293 = vrot.lane.b32.xlu0 %v635, 43
      %v1294 = vpop.permute.xlu0 %1293
      %1295 = vrot.lane.b32.xlu0 %v636, 43
      %v1296 = vpop.permute.xlu0 %1295
      %1297 = vrot.lane.b32.xlu0 %v637, 43
      %v1298 = vpop.permute.xlu0 %1297
      %1299 = vrot.lane.b32.xlu0 %v638, 43
      %v1300 = vpop.permute.xlu0 %1299
      %1301 = vrot.lane.b32.xlu0 %v1178, 43
      %v1302 = vpop.permute.xlu0 %1301
      %1303 = vrot.lane.b32.xlu0 %v1175, 43
      %v1304 = vpop.permute.xlu0 %1303
      %1305 = vrot.lane.b32.xlu0 %v639, 43
      %v1306 = vpop.permute.xlu0 %1305
      %1307 = vrot.lane.b32.xlu0 %v640, 43
      %v1308 = vpop.permute.xlu0 %1307
      %1309 = vrot.lane.b32.xlu0 %v641, 43
      %v1310 = vpop.permute.xlu0 %1309
      %1311 = vrot.lane.b32.xlu0 %v642, 43
      %v1312 = vpop.permute.xlu0 %1311
      %1313 = vrot.lane.b32.xlu0 %v1179, 43
      %v1314 = vpop.permute.xlu0 %1313
      %1315 = vrot.lane.b32.xlu0 %v1177, 43
      %v1316 = vpop.permute.xlu0 %1315
      %1317 = vrot.lane.b32.xlu0 %v674, 43
      %v1318 = vpop.permute.xlu0 %1317
      %1319 = vrot.lane.b32.xlu0 %v675, 43
      %v1320 = vpop.permute.xlu0 %1319
      %1321 = vrot.lane.b32.xlu0 %v676, 43
      %v1322 = vpop.permute.xlu0 %1321
      %1323 = vrot.lane.b32.xlu0 %v677, 43
      %v1324 = vpop.permute.xlu0 %1323
      %1325 = vrot.lane.b32.xlu0 %v1184, 43
      %v1326 = vpop.permute.xlu0 %1325
      %1327 = vrot.lane.b32.xlu0 %v1181, 43
      %v1328 = vpop.permute.xlu0 %1327
      %1329 = vrot.lane.b32.xlu0 %v678, 43
      %v1330 = vpop.permute.xlu0 %1329
      %1331 = vrot.lane.b32.xlu0 %v679, 43
      %v1332 = vpop.permute.xlu0 %1331
      %1333 = vrot.lane.b32.xlu0 %v680, 43
      %v1334 = vpop.permute.xlu0 %1333
      %1335 = vrot.lane.b32.xlu0 %v681, 43
      %v1336 = vpop.permute.xlu0 %1335
      %1337 = vrot.lane.b32.xlu0 %v1185, 43
      %v1338 = vpop.permute.xlu0 %1337
      %1339 = vrot.lane.b32.xlu0 %v1183, 43
      %v1340 = vpop.permute.xlu0 %1339
      %1341 = vrot.lane.b32.xlu0 %v1211, 43
      %v1342 = vpop.permute.xlu0 %1341
      %1343 = vrot.lane.b32.xlu0 %v1212, 43
      %v1344 = vpop.permute.xlu0 %1343
      %1345 = vrot.lane.b32.xlu0 %v1213, 43
      %v1346 = vpop.permute.xlu0 %1345
      %1347 = vrot.lane.b32.xlu0 %v1214, 43
      %v1348 = vpop.permute.xlu0 %1347
      %1349 = vrot.lane.b32.xlu0 %v1215, 43
      %v1350 = vpop.permute.xlu0 %1349
      %1351 = vrot.lane.b32.xlu0 %v1197, 43
      %v1352 = vpop.permute.xlu0 %1351
      %1353 = vrot.lane.b32.xlu0 %v1216, 43
      %v1354 = vpop.permute.xlu0 %1353
      %1355 = vrot.lane.b32.xlu0 %v1217, 43
      %v1356 = vpop.permute.xlu0 %1355
      %1357 = vrot.lane.b32.xlu0 %v1218, 43
      %v1358 = vpop.permute.xlu0 %1357
      %1359 = vrot.lane.b32.xlu0 %v1219, 43
      %v1360 = vpop.permute.xlu0 %1359
      %1361 = vrot.lane.b32.xlu0 %v1220, 43
      %v1362 = vpop.permute.xlu0 %1361
      %1363 = vrot.lane.b32.xlu0 %v1209, 43
      %v1364 = vpop.permute.xlu0 %1363
      %1365 = vrot.lane.b32.xlu0 %v752, 43
      %v1366 = vpop.permute.xlu0 %1365
      %1367 = vrot.lane.b32.xlu0 %v753, 43
      %v1368 = vpop.permute.xlu0 %1367
      %1369 = vrot.lane.b32.xlu0 %v754, 43
      %v1370 = vpop.permute.xlu0 %1369
      %1371 = vrot.lane.b32.xlu0 %v755, 43
      %v1372 = vpop.permute.xlu0 %1371
      %1373 = vrot.lane.b32.xlu0 %v1225, 43
      %v1374 = vpop.permute.xlu0 %1373
      %1375 = vrot.lane.b32.xlu0 %v1222, 43
      %v1376 = vpop.permute.xlu0 %1375
      %1377 = vrot.lane.b32.xlu0 %v756, 43
      %v1378 = vpop.permute.xlu0 %1377
      %1379 = vrot.lane.b32.xlu0 %v757, 43
      %v1380 = vpop.permute.xlu0 %1379
      %1381 = vrot.lane.b32.xlu0 %v758, 43
      %v1382 = vpop.permute.xlu0 %1381
      %1383 = vrot.lane.b32.xlu0 %v759, 43
      %v1384 = vpop.permute.xlu0 %1383
      %1385 = vrot.lane.b32.xlu0 %v1226, 43
      %v1386 = vpop.permute.xlu0 %1385
      %1387 = vrot.lane.b32.xlu0 %v1224, 43
      %v1388 = vpop.permute.xlu0 %1387
      %1389 = vrot.lane.b32.xlu0 %v791, 43
      %v1390 = vpop.permute.xlu0 %1389
      %1391 = vrot.lane.b32.xlu0 %v792, 43
      %v1392 = vpop.permute.xlu0 %1391
      %1393 = vrot.lane.b32.xlu0 %v793, 43
      %v1394 = vpop.permute.xlu0 %1393
      %1395 = vrot.lane.b32.xlu0 %v794, 43
      %v1396 = vpop.permute.xlu0 %1395
      %1397 = vrot.lane.b32.xlu0 %v1231, 43
      %v1398 = vpop.permute.xlu0 %1397
      %1399 = vrot.lane.b32.xlu0 %v1228, 43
      %v1400 = vpop.permute.xlu0 %1399
      %1401 = vrot.lane.b32.xlu0 %v795, 43
      %v1402 = vpop.permute.xlu0 %1401
      %1403 = vrot.lane.b32.xlu0 %v796, 43
      %v1404 = vpop.permute.xlu0 %1403
      %1405 = vrot.lane.b32.xlu0 %v797, 43
      %v1406 = vpop.permute.xlu0 %1405
      %1407 = vrot.lane.b32.xlu0 %v798, 43
      %v1408 = vpop.permute.xlu0 %1407
      %1409 = vrot.lane.b32.xlu0 %v1232, 43
      %v1410 = vpop.permute.xlu0 %1409
      %1411 = vrot.lane.b32.xlu0 %v1230, 43
      %v1412 = vpop.permute.xlu0 %1411
      %1413 = vrot.lane.b32.xlu0 %v830, 43
      %v1414 = vpop.permute.xlu0 %1413
      %1415 = vrot.lane.b32.xlu0 %v831, 43
      %v1416 = vpop.permute.xlu0 %1415
      %1417 = vrot.lane.b32.xlu0 %v832, 43
      %v1418 = vpop.permute.xlu0 %1417
      %1419 = vrot.lane.b32.xlu0 %v833, 43
      %v1420 = vpop.permute.xlu0 %1419
      %1421 = vrot.lane.b32.xlu0 %v1237, 43
      %v1422 = vpop.permute.xlu0 %1421
      %1423 = vrot.lane.b32.xlu0 %v1234, 43
      %v1424 = vpop.permute.xlu0 %1423
      %1425 = vrot.lane.b32.xlu0 %v834, 43
      %v1426 = vpop.permute.xlu0 %1425
      %1427 = vrot.lane.b32.xlu0 %v835, 43
      %v1428 = vpop.permute.xlu0 %1427
      %1429 = vrot.lane.b32.xlu0 %v836, 43
      %v1430 = vpop.permute.xlu0 %1429
      %1431 = vrot.lane.b32.xlu0 %v837, 43
      %v1432 = vpop.permute.xlu0 %1431
      %1433 = vrot.lane.b32.xlu0 %v1238, 43
      %v1434 = vpop.permute.xlu0 %1433
      %1435 = vrot.lane.b32.xlu0 %v1236, 43
      %v1436 = vpop.permute.xlu0 %1435
      %1437 = vrot.lane.b32.xlu0 %v869, 43
      %v1438 = vpop.permute.xlu0 %1437
      %1439 = vrot.lane.b32.xlu0 %v870, 43
      %v1440 = vpop.permute.xlu0 %1439
      %1441 = vrot.lane.b32.xlu0 %v871, 43
      %v1442 = vpop.permute.xlu0 %1441
      %1443 = vrot.lane.b32.xlu0 %v872, 43
      %v1444 = vpop.permute.xlu0 %1443
      %1445 = vrot.lane.b32.xlu0 %v1243, 43
      %v1446 = vpop.permute.xlu0 %1445
      %1447 = vrot.lane.b32.xlu0 %v1240, 43
      %v1448 = vpop.permute.xlu0 %1447
      %1449 = vrot.lane.b32.xlu0 %v873, 43
      %v1450 = vpop.permute.xlu0 %1449
      %1451 = vrot.lane.b32.xlu0 %v874, 43
      %v1452 = vpop.permute.xlu0 %1451
      %1453 = vrot.lane.b32.xlu0 %v875, 43
      %v1454 = vpop.permute.xlu0 %1453
      %1455 = vrot.lane.b32.xlu0 %v876, 43
      %v1456 = vpop.permute.xlu0 %1455
      %1457 = vrot.lane.b32.xlu0 %v1244, 43
      %v1458 = vpop.permute.xlu0 %1457
      %1459 = vrot.lane.b32.xlu0 %v1242, 43
      %v1460 = vpop.permute.xlu0 %1459
      %vm1461 = vcmask 351232
      %v1462 = vsel %vm1461, %v1246, %v1248
      %v1463 = vsel %vm1461, %v1248, %v1250
      %v1464 = vsel %vm1461, %v1250, %v1252
      %v1465 = vsel %vm1461, %v1252, %v1254
      %v1466 = vsel %vm1461, %v1254, %v1256
      %v1467 = vsel %vm1461, %v1258, %v1260
      %v1468 = vsel %vm1461, %v1260, %v1262
      %v1469 = vsel %vm1461, %v1262, %v1264
      %v1470 = vsel %vm1461, %v1264, %v1266
      %v1471 = vsel %vm1461, %v1266, %v1268
      %v1472 = vsel %vm1461, %v1270, %v1272
      %v1473 = vsel %vm1461, %v1272, %v1274
      %v1474 = vsel %vm1461, %v1274, %v1276
      %v1475 = vsel %vm1461, %v1276, %v1278
      %v1476 = vsel %vm1461, %v1278, %v1280
      %v1477 = vsel %vm1461, %v1282, %v1284
      %v1478 = vsel %vm1461, %v1284, %v1286
      %v1479 = vsel %vm1461, %v1286, %v1288
      %v1480 = vsel %vm1461, %v1288, %v1290
      %v1481 = vsel %vm1461, %v1290, %v1292
      %v1482 = vsel %vm1461, %v1294, %v1296
      %v1483 = vsel %vm1461, %v1296, %v1298
      %v1484 = vsel %vm1461, %v1298, %v1300
      %v1485 = vsel %vm1461, %v1300, %v1302
      %v1486 = vsel %vm1461, %v1302, %v1304
      %v1487 = vsel %vm1461, %v1306, %v1308
      %v1488 = vsel %vm1461, %v1308, %v1310
      %v1489 = vsel %vm1461, %v1310, %v1312
      %v1490 = vsel %vm1461, %v1312, %v1314
      %v1491 = vsel %vm1461, %v1314, %v1316
      %v1492 = vsel %vm1461, %v1318, %v1320
      %v1493 = vsel %vm1461, %v1320, %v1322
      %v1494 = vsel %vm1461, %v1322, %v1324
      %v1495 = vsel %vm1461, %v1324, %v1326
      %v1496 = vsel %vm1461, %v1326, %v1328
      %v1497 = vsel %vm1461, %v1330, %v1332
      %v1498 = vsel %vm1461, %v1332, %v1334
      %v1499 = vsel %vm1461, %v1334, %v1336
      %v1500 = vsel %vm1461, %v1336, %v1338
      %v1501 = vsel %vm1461, %v1338, %v1340
      %v1502 = vsel %vm1461, %v1342, %v1344
      %v1503 = vsel %vm1461, %v1344, %v1346
      %v1504 = vsel %vm1461, %v1346, %v1348
      %v1505 = vsel %vm1461, %v1348, %v1350
      %v1506 = vsel %vm1461, %v1350, %v1352
      %v1507 = vsel %vm1461, %v1354, %v1356
      %v1508 = vsel %vm1461, %v1356, %v1358
      %v1509 = vsel %vm1461, %v1358, %v1360
      %v1510 = vsel %vm1461, %v1360, %v1362
      %v1511 = vsel %vm1461, %v1362, %v1364
      %v1512 = vsel %vm1461, %v1366, %v1368
      %v1513 = vsel %vm1461, %v1368, %v1370
      %v1514 = vsel %vm1461, %v1370, %v1372
      %v1515 = vsel %vm1461, %v1372, %v1374
      %v1516 = vsel %vm1461, %v1374, %v1376
      %v1517 = vsel %vm1461, %v1378, %v1380
      %v1518 = vsel %vm1461, %v1380, %v1382
      %v1519 = vsel %vm1461, %v1382, %v1384
      %v1520 = vsel %vm1461, %v1384, %v1386
      %v1521 = vsel %vm1461, %v1386, %v1388
      %v1522 = vsel %vm1461, %v1390, %v1392
      %v1523 = vsel %vm1461, %v1392, %v1394
      %v1524 = vsel %vm1461, %v1394, %v1396
      %v1525 = vsel %vm1461, %v1396, %v1398
      %v1526 = vsel %vm1461, %v1398, %v1400
      %v1527 = vsel %vm1461, %v1402, %v1404
      %v1528 = vsel %vm1461, %v1404, %v1406
      %v1529 = vsel %vm1461, %v1406, %v1408
      %v1530 = vsel %vm1461, %v1408, %v1410
      %v1531 = vsel %vm1461, %v1410, %v1412
      %v1532 = vsel %vm1461, %v1414, %v1416
      %v1533 = vsel %vm1461, %v1416, %v1418
      %v1534 = vsel %vm1461, %v1418, %v1420
      %v1535 = vsel %vm1461, %v1420, %v1422
      %v1536 = vsel %vm1461, %v1422, %v1424
      %v1537 = vsel %vm1461, %v1426, %v1428
      %v1538 = vsel %vm1461, %v1428, %v1430
      %v1539 = vsel %vm1461, %v1430, %v1432
      %v1540 = vsel %vm1461, %v1432, %v1434
      %v1541 = vsel %vm1461, %v1434, %v1436
      %v1542 = vsel %vm1461, %v1438, %v1440
      %v1543 = vsel %vm1461, %v1440, %v1442
      %v1544 = vsel %vm1461, %v1442, %v1444
      %v1545 = vsel %vm1461, %v1444, %v1446
      %v1546 = vsel %vm1461, %v1446, %v1448
      %v1547 = vsel %vm1461, %v1450, %v1452
      %v1548 = vsel %vm1461, %v1452, %v1454
      %v1549 = vsel %vm1461, %v1454, %v1456
      %v1550 = vsel %vm1461, %v1456, %v1458
      %v1551 = vsel %vm1461, %v1458, %v1460
      %v1642 = vld [vmem:[%s3] sm:$0xff]
      %v1643 = vld [vmem:[%s3 + $0x8] sm:$0xff]
      %v1644 = vld [vmem:[%s3 + $0x10] sm:$0xff]
      %v1645 = vld [vmem:[%s3 + $0x18] sm:$0xf]
      %v1646 = vld [vmem:[%s3 + $0x1c] sm:$0xff]
      %v1647 = vld [vmem:[%s3 + $0x24] sm:$0xff]
      %v1648 = vld [vmem:[%s3 + $0x2c] sm:$0xff]
      %v1649 = vld [vmem:[%s3 + $0x34] sm:$0xf]
      %v1650 = vld [vmem:[%s3 + $0x38] sm:$0xff]
      %v1651 = vld [vmem:[%s3 + $0x40] sm:$0xff]
      %v1652 = vld [vmem:[%s3 + $0x48] sm:$0xff]
      %v1653 = vld [vmem:[%s3 + $0x50] sm:$0xf]
      %v1654 = vld [vmem:[%s3 + $0x54] sm:$0xff]
      %v1655 = vld [vmem:[%s3 + $0x5c] sm:$0xff]
      %v1656 = vld [vmem:[%s3 + $0x64] sm:$0xff]
      %v1657 = vld [vmem:[%s3 + $0x6c] sm:$0xf]
      %v1658 = vld [vmem:[%s4] sm:$0xff]
      %v1659 = vld [vmem:[%s4 + $0x8] sm:$0xff]
      %v1660 = vld [vmem:[%s4 + $0x10] sm:$0xff]
      %v1661 = vld [vmem:[%s4 + $0x18] sm:$0xff]
      %1663 = vset.pattern.permute.xlu0 0
      %1664 = vperm.xlu0 %1663, %v1658
      %v1665 = vpop.permute.xlu0 %1664
      %1668 = vset.pattern.permute.xlu0 0
      %1669 = vperm.xlu0 %1668, %v1659
      %v1670 = vpop.permute.xlu0 %1669
      %1673 = vset.pattern.permute.xlu0 0
      %1674 = vperm.xlu0 %1673, %v1660
      %v1675 = vpop.permute.xlu0 %1674
      %1678 = vset.pattern.permute.xlu0 0
      %1679 = vperm.xlu0 %1678, %v1661
      %v1680 = vpop.permute.xlu0 %1679
      %v1698 = vunpack.c.l.b16 %v1642
      %v1699 = vunpack.c.h.b16 %v1642
      %v1700 = vunpack.c.l.b16 %v1643
      %v1701 = vunpack.c.h.b16 %v1643
      %v1702 = vunpack.c.l.b16 %v1644
      %v1703 = vunpack.c.h.b16 %v1644
      %v1704 = vunpack.c.l.b16 %v1645
      %v1705 = vunpack.c.l.b16 %v1646
      %v1706 = vunpack.c.h.b16 %v1646
      %v1707 = vunpack.c.l.b16 %v1647
      %v1708 = vunpack.c.h.b16 %v1647
      %v1709 = vunpack.c.l.b16 %v1648
      %v1710 = vunpack.c.h.b16 %v1648
      %v1711 = vunpack.c.l.b16 %v1649
      %v1712 = vunpack.c.l.b16 %v1650
      %v1713 = vunpack.c.h.b16 %v1650
      %v1714 = vunpack.c.l.b16 %v1651
      %v1715 = vunpack.c.h.b16 %v1651
      %v1716 = vunpack.c.l.b16 %v1652
      %v1717 = vunpack.c.h.b16 %v1652
      %v1718 = vunpack.c.l.b16 %v1653
      %v1719 = vunpack.c.l.b16 %v1654
      %v1720 = vunpack.c.h.b16 %v1654
      %v1721 = vunpack.c.l.b16 %v1655
      %v1722 = vunpack.c.h.b16 %v1655
      %v1723 = vunpack.c.l.b16 %v1656
      %v1724 = vunpack.c.h.b16 %v1656
      %v1725 = vunpack.c.l.b16 %v1657
      %v1726 = vpack.c.b16 %v1705, %v1698
      %v1727 = vpack.c.b16 %v1706, %v1699
      %v1728 = vpack.c.b16 %v1707, %v1700
      %v1729 = vpack.c.b16 %v1708, %v1701
      %v1730 = vpack.c.b16 %v1709, %v1702
      %v1731 = vpack.c.b16 %v1710, %v1703
      %v1732 = vpack.c.b16 %v1711, %v1704
      %v1733 = vpack.c.b16 %v1719, %v1712
      %v1734 = vpack.c.b16 %v1720, %v1713
      %v1735 = vpack.c.b16 %v1721, %v1714
      %v1736 = vpack.c.b16 %v1722, %v1715
      %v1737 = vpack.c.b16 %v1723, %v1716
      %v1738 = vpack.c.b16 %v1724, %v1717
      %v1739 = vpack.c.b16 %v1725, %v1718
      %v1753 = vsel %vm363, %v1732, 0
      %v1756 = vsel %vm363, %v1739, 0
      %1758 = vmatprep.subr.bf16.mxu0 %v554
      %1759 = vmatpush1.bf16.msra.mxu0 %v553
      %1760 = vmatprep.subr.bf16.mxu0 %v560
      %1761 = vmatpush1.bf16.msra.mxu0 %v559
      %1762 = vmatprep.subr.bf16.mxu0 %v597
      %1763 = vmatpush1.bf16.msra.mxu0 %v596
      %1764 = vmatprep.subr.bf16.mxu0 %v601
      %1765 = vmatpush1.bf16.msra.mxu0 %v600
      %1766 = vmatprep.subr.bf16.mxu0 %v636
      %1767 = vmatpush1.bf16.msra.mxu0 %v635
      %1768 = vmatprep.subr.bf16.mxu0 %v640
      %1769 = vmatpush1.bf16.msra.mxu0 %v639
      %1770 = vmatprep.subr.bf16.mxu0 %v675
      %1771 = vmatpush1.bf16.msra.mxu0 %v674
      %1772 = vmatprep.subr.bf16.mxu0 %v679
      %1773 = vmatpush1.bf16.msra.mxu0 %v678
      %1774 = vmatprep.subr.bf16.mxu0 %v714
      %1775 = vmatpush1.bf16.msra.mxu0 %v713
      %1776 = vmatprep.subr.bf16.mxu0 %v718
      %1777 = vmatpush1.bf16.msra.mxu0 %v717
      %1778 = vmatprep.subr.bf16.mxu0 %v753
      %1779 = vmatpush1.bf16.msra.mxu0 %v752
      %1780 = vmatprep.subr.bf16.mxu0 %v757
      %1781 = vmatpush1.bf16.msra.mxu0 %v756
      %1782 = vmatprep.subr.bf16.mxu0 %v792
      %1783 = vmatpush1.bf16.msra.mxu0 %v791
      %1784 = vmatprep.subr.bf16.mxu0 %v796
      %1785 = vmatpush1.bf16.msra.mxu0 %v795
      %1786 = vmatprep.subr.bf16.mxu0 %v831
      %1787 = vmatpush1.bf16.msra.mxu0 %v830
      %1788 = vmatprep.subr.bf16.mxu0 %v835
      %1789 = vmatpush1.bf16.msra.mxu0 %v834
      %1790 = vmatprep.mubr.bf16.mxu0 %v1727
      %1791 = vmatmul.mubr.bf16.gmra.mrb[0].mxu0 %v1726
      %v1792 = vpop.f32.mrb[0].mxu0
      %v1793 = vadd.f32 %v1665, %v1792
      %v1794 = vpop.f32.mrb[0].mxu0
      %v1795 = vadd.f32 %v1665, %v1794
      %v1796 = vpop.f32.mrb[0].mxu0
      %v1797 = vadd.f32 %v1670, %v1796
      %v1798 = vpop.f32.mrb[0].mxu0
      %v1799 = vadd.f32 %v1670, %v1798
      %1800 = vmatprep.mubr.bf16.mxu0 %v1734
      %1801 = vmatmul.mubr.bf16.gmra.mrb[0].mxu0 %v1733
      %v1802 = vpop.f32.mrb[0].mxu0
      %v1803 = vadd.f32 %v1675, %v1802
      %v1804 = vpop.f32.mrb[0].mxu0
      %v1805 = vadd.f32 %v1675, %v1804
      %v1806 = vpop.f32.mrb[0].mxu0
      %v1807 = vadd.f32 %v1680, %v1806
      %v1808 = vpop.f32.mrb[0].mxu0
      %v1809 = vadd.f32 %v1680, %v1808
      %1810 = vdwg.mxu0
      %1811 = vmatprep.subr.bf16.mxu0 %v870
      %1812 = vmatpush1.bf16.msra.mxu0 %v869
      %1813 = vmatprep.subr.bf16.mxu0 %v874
      %1814 = vmatpush1.bf16.msra.mxu0 %v873
      %1815 = vmatprep.subr.bf16.mxu0 %v909
      %1816 = vmatpush1.bf16.msra.mxu0 %v908
      %1817 = vmatprep.subr.bf16.mxu0 %v913
      %1818 = vmatpush1.bf16.msra.mxu0 %v912
      %1819 = vmatprep.subr.bf16.mxu0 %v948
      %1820 = vmatpush1.bf16.msra.mxu0 %v947
      %1821 = vmatprep.subr.bf16.mxu0 %v952
      %1822 = vmatpush1.bf16.msra.mxu0 %v951
      %1823 = vmatprep.subr.bf16.mxu0 %v987
      %1824 = vmatpush1.bf16.msra.mxu0 %v986
      %1825 = vmatprep.subr.bf16.mxu0 %v991
      %1826 = vmatpush1.bf16.msra.mxu0 %v990
      %1827 = vmatprep.subr.bf16.mxu0 %v1026
      %1828 = vmatpush1.bf16.msra.mxu0 %v1025
      %1829 = vmatprep.subr.bf16.mxu0 %v1030
      %1830 = vmatpush1.bf16.msra.mxu0 %v1029
      %1831 = vmatprep.subr.bf16.mxu0 %v1065
      %1832 = vmatpush1.bf16.msra.mxu0 %v1064
      %1833 = vmatprep.subr.bf16.mxu0 %v1069
      %1834 = vmatpush1.bf16.msra.mxu0 %v1068
      %1835 = vmatprep.subr.bf16.mxu0 %v1104
      %1836 = vmatpush1.bf16.msra.mxu0 %v1103
      %1837 = vmatprep.subr.bf16.mxu0 %v1108
      %1838 = vmatpush1.bf16.msra.mxu0 %v1107
      %1839 = vmatprep.subr.bf16.mxu0 %v1149
      %1840 = vmatpush1.bf16.msra.mxu0 %v1148
      %1841 = vmatprep.subr.bf16.mxu0 %v1154
      %1842 = vmatpush1.bf16.msra.mxu0 %v1153
      %1843 = vmatprep.mubr.bf16.mxu0 %v1729
      %1844 = vmatmul.mubr.bf16.gmra.mrb[0].mxu0 %v1728
      %v1845 = vpop.f32.mrb[0].mxu0
      %v1846 = vadd.f32 %v1793, %v1845
      %v1847 = vpop.f32.mrb[0].mxu0
      %v1848 = vadd.f32 %v1795, %v1847
      %v1849 = vpop.f32.mrb[0].mxu0
      %v1850 = vadd.f32 %v1797, %v1849
      %v1851 = vpop.f32.mrb[0].mxu0
      %v1852 = vadd.f32 %v1799, %v1851
      %1853 = vmatprep.mubr.bf16.mxu0 %v1736
      %1854 = vmatmul.mubr.bf16.gmra.mrb[0].mxu0 %v1735
      %v1855 = vpop.f32.mrb[0].mxu0
      %v1856 = vadd.f32 %v1803, %v1855
      %v1857 = vpop.f32.mrb[0].mxu0
      %v1858 = vadd.f32 %v1805, %v1857
      %v1859 = vpop.f32.mrb[0].mxu0
      %v1860 = vadd.f32 %v1807, %v1859
      %v1861 = vpop.f32.mrb[0].mxu0
      %v1862 = vadd.f32 %v1809, %v1861
      %1863 = vdwg.mxu0
      %1864 = vmatprep.subr.bf16.mxu0 %v1463
      %1865 = vmatpush1.bf16.msra.mxu0 %v1462
      %1866 = vmatprep.subr.bf16.mxu0 %v1468
      %1867 = vmatpush1.bf16.msra.mxu0 %v1467
      %1868 = vmatprep.subr.bf16.mxu0 %v1473
      %1869 = vmatpush1.bf16.msra.mxu0 %v1472
      %1870 = vmatprep.subr.bf16.mxu0 %v1478
      %1871 = vmatpush1.bf16.msra.mxu0 %v1477
      %1872 = vmatprep.subr.bf16.mxu0 %v1483
      %1873 = vmatpush1.bf16.msra.mxu0 %v1482
      %1874 = vmatprep.subr.bf16.mxu0 %v1488
      %1875 = vmatpush1.bf16.msra.mxu0 %v1487
      %1876 = vmatprep.subr.bf16.mxu0 %v1493
      %1877 = vmatpush1.bf16.msra.mxu0 %v1492
      %1878 = vmatprep.subr.bf16.mxu0 %v1498
      %1879 = vmatpush1.bf16.msra.mxu0 %v1497
      %1880 = vmatprep.subr.bf16.mxu0 %v1503
      %1881 = vmatpush1.bf16.msra.mxu0 %v1502
      %1882 = vmatprep.subr.bf16.mxu0 %v1508
      %1883 = vmatpush1.bf16.msra.mxu0 %v1507
      %1884 = vmatprep.subr.bf16.mxu0 %v1513
      %1885 = vmatpush1.bf16.msra.mxu0 %v1512
      %1886 = vmatprep.subr.bf16.mxu0 %v1518
      %1887 = vmatpush1.bf16.msra.mxu0 %v1517
      %1888 = vmatprep.subr.bf16.mxu0 %v1523
      %1889 = vmatpush1.bf16.msra.mxu0 %v1522
      %1890 = vmatprep.subr.bf16.mxu0 %v1528
      %1891 = vmatpush1.bf16.msra.mxu0 %v1527
      %1892 = vmatprep.subr.bf16.mxu0 %v1533
      %1893 = vmatpush1.bf16.msra.mxu0 %v1532
      %1894 = vmatprep.subr.bf16.mxu0 %v1538
      %1895 = vmatpush1.bf16.msra.mxu0 %v1537
      %1896 = vmatprep.mubr.bf16.mxu0 %v1731
      %1897 = vmatmul.mubr.bf16.gmra.mrb[0].mxu0 %v1730
      %v1898 = vpop.f32.mrb[0].mxu0
      %v1899 = vadd.f32 %v1846, %v1898
      %v1900 = vpop.f32.mrb[0].mxu0
      %v1901 = vadd.f32 %v1848, %v1900
      %v1902 = vpop.f32.mrb[0].mxu0
      %v1903 = vadd.f32 %v1850, %v1902
      %v1904 = vpop.f32.mrb[0].mxu0
      %v1905 = vadd.f32 %v1852, %v1904
      %1906 = vmatprep.mubr.bf16.mxu0 %v1738
      %1907 = vmatmul.mubr.bf16.gmra.mrb[0].mxu0 %v1737
      %v1908 = vpop.f32.mrb[0].mxu0
      %v1909 = vadd.f32 %v1856, %v1908
      %v1910 = vpop.f32.mrb[0].mxu0
      %v1911 = vadd.f32 %v1858, %v1910
      %v1912 = vpop.f32.mrb[0].mxu0
      %v1913 = vadd.f32 %v1860, %v1912
      %v1914 = vpop.f32.mrb[0].mxu0
      %v1915 = vadd.f32 %v1862, %v1914
      %1916 = vdwg.mxu0
      %1917 = vmatprep.subr.bf16.mxu0 %v1543
      %1918 = vmatpush1.bf16.msra.mxu0 %v1542
      %1919 = vmatprep.subr.bf16.mxu0 %v1548
      %1920 = vmatpush1.bf16.msra.mxu0 %v1547
      %1921 = vmatprep.subr.bf16.mxu0 0
      %1922 = vmatpush1.bf16.msra.mxu0 0
      %1923 = vmatprep.subr.bf16.mxu0 0
      %1924 = vmatpush1.bf16.msra.mxu0 0
      %1925 = vmatprep.subr.bf16.mxu0 0
      %1926 = vmatpush1.bf16.msra.mxu0 0
      %1927 = vmatprep.subr.bf16.mxu0 0
      %1928 = vmatpush1.bf16.msra.mxu0 0
      %1929 = vmatprep.subr.bf16.mxu0 0
      %1930 = vmatpush1.bf16.msra.mxu0 0
      %1931 = vmatprep.subr.bf16.mxu0 0
      %1932 = vmatpush1.bf16.msra.mxu0 0
      %1933 = vmatprep.subr.bf16.mxu0 0
      %1934 = vmatpush1.bf16.msra.mxu0 0
      %1935 = vmatprep.subr.bf16.mxu0 0
      %1936 = vmatpush1.bf16.msra.mxu0 0
      %1937 = vmatprep.subr.bf16.mxu0 0
      %1938 = vmatpush1.bf16.msra.mxu0 0
      %1939 = vmatprep.subr.bf16.mxu0 0
      %1940 = vmatpush1.bf16.msra.mxu0 0
      %1941 = vmatprep.subr.bf16.mxu0 0
      %1942 = vmatpush1.bf16.msra.mxu0 0
      %1943 = vmatprep.subr.bf16.mxu0 0
      %1944 = vmatpush1.bf16.msra.mxu0 0
      %1945 = vmatprep.subr.bf16.mxu0 0
      %1946 = vmatpush1.bf16.msra.mxu0 0
      %1947 = vmatprep.subr.bf16.mxu0 0
      %1948 = vmatpush1.bf16.msra.mxu0 0
      %1949 = vmatprep.mubr.bf16.mxu0 0
      %1950 = vmatmul.mubr.bf16.gmra.mrb[0].mxu0 %v1753
      %v1951 = vpop.f32.mrb[0].mxu0
      %v1952 = vadd.f32 %v1899, %v1951
      %v1953 = vpop.f32.mrb[0].mxu0
      %v1954 = vadd.f32 %v1901, %v1953
      %v1955 = vpop.f32.mrb[0].mxu0
      %v1956 = vadd.f32 %v1903, %v1955
      %v1957 = vpop.f32.mrb[0].mxu0
      %v1958 = vadd.f32 %v1905, %v1957
      %1959 = vmatprep.mubr.bf16.mxu0 0
      %1960 = vmatmul.mubr.bf16.gmra.mrb[0].mxu0 %v1756
      %v1961 = vpop.f32.mrb[0].mxu0
      %v1962 = vadd.f32 %v1909, %v1961
      %v1963 = vpop.f32.mrb[0].mxu0
      %v1964 = vadd.f32 %v1911, %v1963
      %v1965 = vpop.f32.mrb[0].mxu0
      %v1966 = vadd.f32 %v1913, %v1965
      %v1967 = vpop.f32.mrb[0].mxu0
      %v1968 = vadd.f32 %v1915, %v1967
      %1969 = vdwg.mxu0
      %1970 = vmatprep.subr.bf16.mxu0 %v556
      %1971 = vmatpush1.bf16.msra.mxu0 %v555
      %1972 = vmatprep.subr.bf16.mxu0 %v562
      %1973 = vmatpush1.bf16.msra.mxu0 %v561
      %1974 = vmatprep.subr.bf16.mxu0 %v599
      %1975 = vmatpush1.bf16.msra.mxu0 %v598
      %1976 = vmatprep.subr.bf16.mxu0 %v603
      %1977 = vmatpush1.bf16.msra.mxu0 %v602
      %1978 = vmatprep.subr.bf16.mxu0 %v638
      %1979 = vmatpush1.bf16.msra.mxu0 %v637
      %1980 = vmatprep.subr.bf16.mxu0 %v642
      %1981 = vmatpush1.bf16.msra.mxu0 %v641
      %1982 = vmatprep.subr.bf16.mxu0 %v677
      %1983 = vmatpush1.bf16.msra.mxu0 %v676
      %1984 = vmatprep.subr.bf16.mxu0 %v681
      %1985 = vmatpush1.bf16.msra.mxu0 %v680
      %1986 = vmatprep.subr.bf16.mxu0 %v716
      %1987 = vmatpush1.bf16.msra.mxu0 %v715
      %1988 = vmatprep.subr.bf16.mxu0 %v720
      %1989 = vmatpush1.bf16.msra.mxu0 %v719
      %1990 = vmatprep.subr.bf16.mxu0 %v755
      %1991 = vmatpush1.bf16.msra.mxu0 %v754
      %1992 = vmatprep.subr.bf16.mxu0 %v759
      %1993 = vmatpush1.bf16.msra.mxu0 %v758
      %1994 = vmatprep.subr.bf16.mxu0 %v794
      %1995 = vmatpush1.bf16.msra.mxu0 %v793
      %1996 = vmatprep.subr.bf16.mxu0 %v798
      %1997 = vmatpush1.bf16.msra.mxu0 %v797
      %1998 = vmatprep.subr.bf16.mxu0 %v833
      %1999 = vmatpush1.bf16.msra.mxu0 %v832
      %2000 = vmatprep.subr.bf16.mxu0 %v837
      %2001 = vmatpush1.bf16.msra.mxu0 %v836
      %2002 = vmatprep.mubr.bf16.mxu0 %v1727
      %2003 = vmatmul.mubr.bf16.gmra.mrb[0].mxu0 %v1726
      %v2004 = vpop.f32.mrb[0].mxu0
      %v2005 = vadd.f32 %v1665, %v2004
      %v2006 = vpop.f32.mrb[0].mxu0
      %v2007 = vadd.f32 %v1665, %v2006
      %v2008 = vpop.f32.mrb[0].mxu0
      %v2009 = vadd.f32 %v1670, %v2008
      %v2010 = vpop.f32.mrb[0].mxu0
      %v2011 = vadd.f32 %v1670, %v2010
      %2012 = vmatprep.mubr.bf16.mxu0 %v1734
      %2013 = vmatmul.mubr.bf16.gmra.mrb[0].mxu0 %v1733
      %v2014 = vpop.f32.mrb[0].mxu0
      %v2015 = vadd.f32 %v1675, %v2014
      %v2016 = vpop.f32.mrb[0].mxu0
      %v2017 = vadd.f32 %v1675, %v2016
      %v2018 = vpop.f32.mrb[0].mxu0
      %v2019 = vadd.f32 %v1680, %v2018
      %v2020 = vpop.f32.mrb[0].mxu0
      %v2021 = vadd.f32 %v1680, %v2020
      %2022 = vdwg.mxu0
      %2023 = vmatprep.subr.bf16.mxu0 %v872
      %2024 = vmatpush1.bf16.msra.mxu0 %v871
      %2025 = vmatprep.subr.bf16.mxu0 %v876
      %2026 = vmatpush1.bf16.msra.mxu0 %v875
      %2027 = vmatprep.subr.bf16.mxu0 %v911
      %2028 = vmatpush1.bf16.msra.mxu0 %v910
      %2029 = vmatprep.subr.bf16.mxu0 %v915
      %2030 = vmatpush1.bf16.msra.mxu0 %v914
      %2031 = vmatprep.subr.bf16.mxu0 %v950
      %2032 = vmatpush1.bf16.msra.mxu0 %v949
      %2033 = vmatprep.subr.bf16.mxu0 %v954
      %2034 = vmatpush1.bf16.msra.mxu0 %v953
      %2035 = vmatprep.subr.bf16.mxu0 %v989
      %2036 = vmatpush1.bf16.msra.mxu0 %v988
      %2037 = vmatprep.subr.bf16.mxu0 %v993
      %2038 = vmatpush1.bf16.msra.mxu0 %v992
      %2039 = vmatprep.subr.bf16.mxu0 %v1028
      %2040 = vmatpush1.bf16.msra.mxu0 %v1027
      %2041 = vmatprep.subr.bf16.mxu0 %v1032
      %2042 = vmatpush1.bf16.msra.mxu0 %v1031
      %2043 = vmatprep.subr.bf16.mxu0 %v1067
      %2044 = vmatpush1.bf16.msra.mxu0 %v1066
      %2045 = vmatprep.subr.bf16.mxu0 %v1071
      %2046 = vmatpush1.bf16.msra.mxu0 %v1070
      %2047 = vmatprep.subr.bf16.mxu0 %v1106
      %2048 = vmatpush1.bf16.msra.mxu0 %v1105
      %2049 = vmatprep.subr.bf16.mxu0 %v1110
      %2050 = vmatpush1.bf16.msra.mxu0 %v1109
      %2051 = vmatprep.subr.bf16.mxu0 %v1151
      %2052 = vmatpush1.bf16.msra.mxu0 %v1150
      %2053 = vmatprep.subr.bf16.mxu0 %v1156
      %2054 = vmatpush1.bf16.msra.mxu0 %v1155
      %2055 = vmatprep.mubr.bf16.mxu0 %v1729
      %2056 = vmatmul.mubr.bf16.gmra.mrb[0].mxu0 %v1728
      %v2057 = vpop.f32.mrb[0].mxu0
      %v2058 = vadd.f32 %v2005, %v2057
      %v2059 = vpop.f32.mrb[0].mxu0
      %v2060 = vadd.f32 %v2007, %v2059
      %v2061 = vpop.f32.mrb[0].mxu0
      %v2062 = vadd.f32 %v2009, %v2061
      %v2063 = vpop.f32.mrb[0].mxu0
      %v2064 = vadd.f32 %v2011, %v2063
      %2065 = vmatprep.mubr.bf16.mxu0 %v1736
      %2066 = vmatmul.mubr.bf16.gmra.mrb[0].mxu0 %v1735
      %v2067 = vpop.f32.mrb[0].mxu0
      %v2068 = vadd.f32 %v2015, %v2067
      %v2069 = vpop.f32.mrb[0].mxu0
      %v2070 = vadd.f32 %v2017, %v2069
      %v2071 = vpop.f32.mrb[0].mxu0
      %v2072 = vadd.f32 %v2019, %v2071
      %v2073 = vpop.f32.mrb[0].mxu0
      %v2074 = vadd.f32 %v2021, %v2073
      %2075 = vdwg.mxu0
      %2076 = vmatprep.subr.bf16.mxu0 %v1465
      %2077 = vmatpush1.bf16.msra.mxu0 %v1464
      %2078 = vmatprep.subr.bf16.mxu0 %v1470
      %2079 = vmatpush1.bf16.msra.mxu0 %v1469
      %2080 = vmatprep.subr.bf16.mxu0 %v1475
      %2081 = vmatpush1.bf16.msra.mxu0 %v1474
      %2082 = vmatprep.subr.bf16.mxu0 %v1480
      %2083 = vmatpush1.bf16.msra.mxu0 %v1479
      %2084 = vmatprep.subr.bf16.mxu0 %v1485
      %2085 = vmatpush1.bf16.msra.mxu0 %v1484
      %2086 = vmatprep.subr.bf16.mxu0 %v1490
      %2087 = vmatpush1.bf16.msra.mxu0 %v1489
      %2088 = vmatprep.subr.bf16.mxu0 %v1495
      %2089 = vmatpush1.bf16.msra.mxu0 %v1494
      %2090 = vmatprep.subr.bf16.mxu0 %v1500
      %2091 = vmatpush1.bf16.msra.mxu0 %v1499
      %2092 = vmatprep.subr.bf16.mxu0 %v1505
      %2093 = vmatpush1.bf16.msra.mxu0 %v1504
      %2094 = vmatprep.subr.bf16.mxu0 %v1510
      %2095 = vmatpush1.bf16.msra.mxu0 %v1509
      %2096 = vmatprep.subr.bf16.mxu0 %v1515
      %2097 = vmatpush1.bf16.msra.mxu0 %v1514
      %2098 = vmatprep.subr.bf16.mxu0 %v1520
      %2099 = vmatpush1.bf16.msra.mxu0 %v1519
      %2100 = vmatprep.subr.bf16.mxu0 %v1525
      %2101 = vmatpush1.bf16.msra.mxu0 %v1524
      %2102 = vmatprep.subr.bf16.mxu0 %v1530
      %2103 = vmatpush1.bf16.msra.mxu0 %v1529
      %2104 = vmatprep.subr.bf16.mxu0 %v1535
      %2105 = vmatpush1.bf16.msra.mxu0 %v1534
      %2106 = vmatprep.subr.bf16.mxu0 %v1540
      %2107 = vmatpush1.bf16.msra.mxu0 %v1539
      %2108 = vmatprep.mubr.bf16.mxu0 %v1731
      %2109 = vmatmul.mubr.bf16.gmra.mrb[0].mxu0 %v1730
      %v2110 = vpop.f32.mrb[0].mxu0
      %v2111 = vadd.f32 %v2058, %v2110
      %v2112 = vpop.f32.mrb[0].mxu0
      %v2113 = vadd.f32 %v2060, %v2112
      %v2114 = vpop.f32.mrb[0].mxu0
      %v2115 = vadd.f32 %v2062, %v2114
      %v2116 = vpop.f32.mrb[0].mxu0
      %v2117 = vadd.f32 %v2064, %v2116
      %2118 = vmatprep.mubr.bf16.mxu0 %v1738
      %2119 = vmatmul.mubr.bf16.gmra.mrb[0].mxu0 %v1737
      %v2120 = vpop.f32.mrb[0].mxu0
      %v2121 = vadd.f32 %v2068, %v2120
      %v2122 = vpop.f32.mrb[0].mxu0
      %v2123 = vadd.f32 %v2070, %v2122
      %v2124 = vpop.f32.mrb[0].mxu0
      %v2125 = vadd.f32 %v2072, %v2124
      %v2126 = vpop.f32.mrb[0].mxu0
      %v2127 = vadd.f32 %v2074, %v2126
      %2128 = vdwg.mxu0
      %2129 = vmatprep.subr.bf16.mxu0 %v1545
      %2130 = vmatpush1.bf16.msra.mxu0 %v1544
      %2131 = vmatprep.subr.bf16.mxu0 %v1550
      %2132 = vmatpush1.bf16.msra.mxu0 %v1549
      %2133 = vmatprep.subr.bf16.mxu0 0
      %2134 = vmatpush1.bf16.msra.mxu0 0
      %2135 = vmatprep.subr.bf16.mxu0 0
      %2136 = vmatpush1.bf16.msra.mxu0 0
      %2137 = vmatprep.subr.bf16.mxu0 0
      %2138 = vmatpush1.bf16.msra.mxu0 0
      %2139 = vmatprep.subr.bf16.mxu0 0
      %2140 = vmatpush1.bf16.msra.mxu0 0
      %2141 = vmatprep.subr.bf16.mxu0 0
      %2142 = vmatpush1.bf16.msra.mxu0 0
      %2143 = vmatprep.subr.bf16.mxu0 0
      %2144 = vmatpush1.bf16.msra.mxu0 0
      %2145 = vmatprep.subr.bf16.mxu0 0
      %2146 = vmatpush1.bf16.msra.mxu0 0
      %2147 = vmatprep.subr.bf16.mxu0 0
      %2148 = vmatpush1.bf16.msra.mxu0 0
      %2149 = vmatprep.subr.bf16.mxu0 0
      %2150 = vmatpush1.bf16.msra.mxu0 0
      %2151 = vmatprep.subr.bf16.mxu0 0
      %2152 = vmatpush1.bf16.msra.mxu0 0
      %2153 = vmatprep.subr.bf16.mxu0 0
      %2154 = vmatpush1.bf16.msra.mxu0 0
      %2155 = vmatprep.subr.bf16.mxu0 0
      %2156 = vmatpush1.bf16.msra.mxu0 0
      %2157 = vmatprep.subr.bf16.mxu0 0
      %2158 = vmatpush1.bf16.msra.mxu0 0
      %2159 = vmatprep.subr.bf16.mxu0 0
      %2160 = vmatpush1.bf16.msra.mxu0 0
      %2161 = vmatprep.mubr.bf16.mxu0 0
      %2162 = vmatmul.mubr.bf16.gmra.mrb[0].mxu0 %v1753
      %v2163 = vpop.f32.mrb[0].mxu0
      %v2164 = vadd.f32 %v2111, %v2163
      %v2165 = vpop.f32.mrb[0].mxu0
      %v2166 = vadd.f32 %v2113, %v2165
      %v2167 = vpop.f32.mrb[0].mxu0
      %v2168 = vadd.f32 %v2115, %v2167
      %v2169 = vpop.f32.mrb[0].mxu0
      %v2170 = vadd.f32 %v2117, %v2169
      %2171 = vmatprep.mubr.bf16.mxu0 0
      %2172 = vmatmul.mubr.bf16.gmra.mrb[0].mxu0 %v1756
      %v2173 = vpop.f32.mrb[0].mxu0
      %v2174 = vadd.f32 %v2121, %v2173
      %v2175 = vpop.f32.mrb[0].mxu0
      %v2176 = vadd.f32 %v2123, %v2175
      %v2177 = vpop.f32.mrb[0].mxu0
      %v2178 = vadd.f32 %v2125, %v2177
      %v2179 = vpop.f32.mrb[0].mxu0
      %v2180 = vadd.f32 %v2127, %v2179
      %2181 = vdwg.mxu0
      %2182 = vmatprep.subr.bf16.mxu0 0
      %2183 = vmatpush1.bf16.msra.mxu0 %v557
      %2184 = vmatprep.subr.bf16.mxu0 0
      %2185 = vmatpush1.bf16.msra.mxu0 %v563
      %2186 = vmatprep.subr.bf16.mxu0 0
      %2187 = vmatpush1.bf16.msra.mxu0 %v584
      %2188 = vmatprep.subr.bf16.mxu0 0
      %2189 = vmatpush1.bf16.msra.mxu0 %v594
      %2190 = vmatprep.subr.bf16.mxu0 0
      %2191 = vmatpush1.bf16.msra.mxu0 %v623
      %2192 = vmatprep.subr.bf16.mxu0 0
      %2193 = vmatpush1.bf16.msra.mxu0 %v633
      %2194 = vmatprep.subr.bf16.mxu0 0
      %2195 = vmatpush1.bf16.msra.mxu0 %v662
      %2196 = vmatprep.subr.bf16.mxu0 0
      %2197 = vmatpush1.bf16.msra.mxu0 %v672
      %2198 = vmatprep.subr.bf16.mxu0 0
      %2199 = vmatpush1.bf16.msra.mxu0 %v701
      %2200 = vmatprep.subr.bf16.mxu0 0
      %2201 = vmatpush1.bf16.msra.mxu0 %v711
      %2202 = vmatprep.subr.bf16.mxu0 0
      %2203 = vmatpush1.bf16.msra.mxu0 %v740
      %2204 = vmatprep.subr.bf16.mxu0 0
      %2205 = vmatpush1.bf16.msra.mxu0 %v750
      %2206 = vmatprep.subr.bf16.mxu0 0
      %2207 = vmatpush1.bf16.msra.mxu0 %v779
      %2208 = vmatprep.subr.bf16.mxu0 0
      %2209 = vmatpush1.bf16.msra.mxu0 %v789
      %2210 = vmatprep.subr.bf16.mxu0 0
      %2211 = vmatpush1.bf16.msra.mxu0 %v818
      %2212 = vmatprep.subr.bf16.mxu0 0
      %2213 = vmatpush1.bf16.msra.mxu0 %v828
      %2214 = vmatprep.mubr.bf16.mxu0 %v1727
      %2215 = vmatmul.mubr.bf16.gmra.mrb[0].mxu0 %v1726
      %v2216 = vpop.f32.mrb[0].mxu0
      %v2217 = vadd.f32 %v1665, %v2216
      %v2218 = vpop.f32.mrb[0].mxu0
      %v2219 = vpop.f32.mrb[0].mxu0
      %v2220 = vadd.f32 %v1670, %v2219
      %v2221 = vpop.f32.mrb[0].mxu0
      %2222 = vmatprep.mubr.bf16.mxu0 %v1734
      %2223 = vmatmul.mubr.bf16.gmra.mrb[0].mxu0 %v1733
      %v2224 = vpop.f32.mrb[0].mxu0
      %v2225 = vadd.f32 %v1675, %v2224
      %v2226 = vpop.f32.mrb[0].mxu0
      %v2227 = vpop.f32.mrb[0].mxu0
      %v2228 = vadd.f32 %v1680, %v2227
      %v2229 = vpop.f32.mrb[0].mxu0
      %2230 = vdwg.mxu0
      %2231 = vmatprep.subr.bf16.mxu0 0
      %2232 = vmatpush1.bf16.msra.mxu0 %v857
      %2233 = vmatprep.subr.bf16.mxu0 0
      %2234 = vmatpush1.bf16.msra.mxu0 %v867
      %2235 = vmatprep.subr.bf16.mxu0 0
      %2236 = vmatpush1.bf16.msra.mxu0 %v896
      %2237 = vmatprep.subr.bf16.mxu0 0
      %2238 = vmatpush1.bf16.msra.mxu0 %v906
      %2239 = vmatprep.subr.bf16.mxu0 0
      %2240 = vmatpush1.bf16.msra.mxu0 %v935
      %2241 = vmatprep.subr.bf16.mxu0 0
      %2242 = vmatpush1.bf16.msra.mxu0 %v945
      %2243 = vmatprep.subr.bf16.mxu0 0
      %2244 = vmatpush1.bf16.msra.mxu0 %v974
      %2245 = vmatprep.subr.bf16.mxu0 0
      %2246 = vmatpush1.bf16.msra.mxu0 %v984
      %2247 = vmatprep.subr.bf16.mxu0 0
      %2248 = vmatpush1.bf16.msra.mxu0 %v1013
      %2249 = vmatprep.subr.bf16.mxu0 0
      %2250 = vmatpush1.bf16.msra.mxu0 %v1023
      %2251 = vmatprep.subr.bf16.mxu0 0
      %2252 = vmatpush1.bf16.msra.mxu0 %v1052
      %2253 = vmatprep.subr.bf16.mxu0 0
      %2254 = vmatpush1.bf16.msra.mxu0 %v1062
      %2255 = vmatprep.subr.bf16.mxu0 0
      %2256 = vmatpush1.bf16.msra.mxu0 %v1091
      %2257 = vmatprep.subr.bf16.mxu0 0
      %2258 = vmatpush1.bf16.msra.mxu0 %v1101
      %2259 = vmatprep.subr.bf16.mxu0 0
      %2260 = vmatpush1.bf16.msra.mxu0 %v1152
      %2261 = vmatprep.subr.bf16.mxu0 0
      %2262 = vmatpush1.bf16.msra.mxu0 %v1157
      %2263 = vmatprep.mubr.bf16.mxu0 %v1729
      %2264 = vmatmul.mubr.bf16.gmra.mrb[0].mxu0 %v1728
      %v2265 = vpop.f32.mrb[0].mxu0
      %v2266 = vadd.f32 %v2217, %v2265
      %v2267 = vpop.f32.mrb[0].mxu0
      %v2268 = vpop.f32.mrb[0].mxu0
      %v2269 = vadd.f32 %v2220, %v2268
      %v2270 = vpop.f32.mrb[0].mxu0
      %2271 = vmatprep.mubr.bf16.mxu0 %v1736
      %2272 = vmatmul.mubr.bf16.gmra.mrb[0].mxu0 %v1735
      %v2273 = vpop.f32.mrb[0].mxu0
      %v2274 = vadd.f32 %v2225, %v2273
      %v2275 = vpop.f32.mrb[0].mxu0
      %v2276 = vpop.f32.mrb[0].mxu0
      %v2277 = vadd.f32 %v2228, %v2276
      %v2278 = vpop.f32.mrb[0].mxu0
      %2279 = vdwg.mxu0
      %2280 = vmatprep.subr.bf16.mxu0 0
      %2281 = vmatpush1.bf16.msra.mxu0 %v1466
      %2282 = vmatprep.subr.bf16.mxu0 0
      %2283 = vmatpush1.bf16.msra.mxu0 %v1471
      %2284 = vmatprep.subr.bf16.mxu0 0
      %2285 = vmatpush1.bf16.msra.mxu0 %v1476
      %2286 = vmatprep.subr.bf16.mxu0 0
      %2287 = vmatpush1.bf16.msra.mxu0 %v1481
      %2288 = vmatprep.subr.bf16.mxu0 0
      %2289 = vmatpush1.bf16.msra.mxu0 %v1486
      %2290 = vmatprep.subr.bf16.mxu0 0
      %2291 = vmatpush1.bf16.msra.mxu0 %v1491
      %2292 = vmatprep.subr.bf16.mxu0 0
      %2293 = vmatpush1.bf16.msra.mxu0 %v1496
      %2294 = vmatprep.subr.bf16.mxu0 0
      %2295 = vmatpush1.bf16.msra.mxu0 %v1501
      %2296 = vmatprep.subr.bf16.mxu0 0
      %2297 = vmatpush1.bf16.msra.mxu0 %v1506
      %2298 = vmatprep.subr.bf16.mxu0 0
      %2299 = vmatpush1.bf16.msra.mxu0 %v1511
      %2300 = vmatprep.subr.bf16.mxu0 0
      %2301 = vmatpush1.bf16.msra.mxu0 %v1516
      %2302 = vmatprep.subr.bf16.mxu0 0
      %2303 = vmatpush1.bf16.msra.mxu0 %v1521
      %2304 = vmatprep.subr.bf16.mxu0 0
      %2305 = vmatpush1.bf16.msra.mxu0 %v1526
      %2306 = vmatprep.subr.bf16.mxu0 0
      %2307 = vmatpush1.bf16.msra.mxu0 %v1531
      %2308 = vmatprep.subr.bf16.mxu0 0
      %2309 = vmatpush1.bf16.msra.mxu0 %v1536
      %2310 = vmatprep.subr.bf16.mxu0 0
      %2311 = vmatpush1.bf16.msra.mxu0 %v1541
      %2312 = vmatprep.mubr.bf16.mxu0 %v1731
      %2313 = vmatmul.mubr.bf16.gmra.mrb[0].mxu0 %v1730
      %v2314 = vpop.f32.mrb[0].mxu0
      %v2315 = vadd.f32 %v2266, %v2314
      %v2316 = vpop.f32.mrb[0].mxu0
      %v2317 = vpop.f32.mrb[0].mxu0
      %v2318 = vadd.f32 %v2269, %v2317
      %v2319 = vpop.f32.mrb[0].mxu0
      %2320 = vmatprep.mubr.bf16.mxu0 %v1738
      %2321 = vmatmul.mubr.bf16.gmra.mrb[0].mxu0 %v1737
      %v2322 = vpop.f32.mrb[0].mxu0
      %v2323 = vadd.f32 %v2274, %v2322
      %v2324 = vpop.f32.mrb[0].mxu0
      %v2325 = vpop.f32.mrb[0].mxu0
      %v2326 = vadd.f32 %v2277, %v2325
      %v2327 = vpop.f32.mrb[0].mxu0
      %2328 = vdwg.mxu0
      %2329 = vmatprep.subr.bf16.mxu0 0
      %2330 = vmatpush1.bf16.msra.mxu0 %v1546
      %2331 = vmatprep.subr.bf16.mxu0 0
      %2332 = vmatpush1.bf16.msra.mxu0 %v1551
      %2333 = vmatprep.subr.bf16.mxu0 0
      %2334 = vmatpush1.bf16.msra.mxu0 0
      %2335 = vmatprep.subr.bf16.mxu0 0
      %2336 = vmatpush1.bf16.msra.mxu0 0
      %2337 = vmatprep.subr.bf16.mxu0 0
      %2338 = vmatpush1.bf16.msra.mxu0 0
      %2339 = vmatprep.subr.bf16.mxu0 0
      %2340 = vmatpush1.bf16.msra.mxu0 0
      %2341 = vmatprep.subr.bf16.mxu0 0
      %2342 = vmatpush1.bf16.msra.mxu0 0
      %2343 = vmatprep.subr.bf16.mxu0 0
      %2344 = vmatpush1.bf16.msra.mxu0 0
      %2345 = vmatprep.subr.bf16.mxu0 0
      %2346 = vmatpush1.bf16.msra.mxu0 0
      %2347 = vmatprep.subr.bf16.mxu0 0
      %2348 = vmatpush1.bf16.msra.mxu0 0
      %2349 = vmatprep.subr.bf16.mxu0 0
      %2350 = vmatpush1.bf16.msra.mxu0 0
      %2351 = vmatprep.subr.bf16.mxu0 0
      %2352 = vmatpush1.bf16.msra.mxu0 0
      %2353 = vmatprep.subr.bf16.mxu0 0
      %2354 = vmatpush1.bf16.msra.mxu0 0
      %2355 = vmatprep.subr.bf16.mxu0 0
      %2356 = vmatpush1.bf16.msra.mxu0 0
      %2357 = vmatprep.subr.bf16.mxu0 0
      %2358 = vmatpush1.bf16.msra.mxu0 0
      %2359 = vmatprep.subr.bf16.mxu0 0
      %2360 = vmatpush1.bf16.msra.mxu0 0
      %2361 = vmatprep.mubr.bf16.mxu0 0
      %2362 = vmatmul.mubr.bf16.gmra.mrb[0].mxu0 %v1753
      %v2363 = vpop.f32.mrb[0].mxu0
      %v2364 = vadd.f32 %v2315, %v2363
      %v2365 = vpop.f32.mrb[0].mxu0
      %v2366 = vpop.f32.mrb[0].mxu0
      %v2367 = vadd.f32 %v2318, %v2366
      %v2368 = vpop.f32.mrb[0].mxu0
      %2369 = vmatprep.mubr.bf16.mxu0 0
      %2370 = vmatmul.mubr.bf16.gmra.mrb[0].mxu0 %v1756
      %v2371 = vpop.f32.mrb[0].mxu0
      %v2372 = vadd.f32 %v2323, %v2371
      %v2373 = vpop.f32.mrb[0].mxu0
      %v2374 = vpop.f32.mrb[0].mxu0
      %v2375 = vadd.f32 %v2326, %v2374
      %v2376 = vpop.f32.mrb[0].mxu0
      %2377 = vdwg.mxu0
      %2398 = vrot.lane.b32.xlu0 %v1952, 127
      %v2399 = vpop.permute.xlu0 %2398
      %2400 = vrot.lane.b32.xlu0 %v1954, 127
      %v2401 = vpop.permute.xlu0 %2400
      %2402 = vrot.lane.b32.xlu0 %v2164, 127
      %v2403 = vpop.permute.xlu0 %2402
      %2404 = vrot.lane.b32.xlu0 %v2166, 127
      %v2405 = vpop.permute.xlu0 %2404
      %2406 = vrot.lane.b32.xlu0 %v2364, 127
      %v2407 = vpop.permute.xlu0 %2406
      %2408 = vrot.lane.b32.xlu0 %v1956, 127
      %v2409 = vpop.permute.xlu0 %2408
      %2410 = vrot.lane.b32.xlu0 %v1958, 127
      %v2411 = vpop.permute.xlu0 %2410
      %2412 = vrot.lane.b32.xlu0 %v2168, 127
      %v2413 = vpop.permute.xlu0 %2412
      %2414 = vrot.lane.b32.xlu0 %v2170, 127
      %v2415 = vpop.permute.xlu0 %2414
      %2416 = vrot.lane.b32.xlu0 %v2367, 127
      %v2417 = vpop.permute.xlu0 %2416
      %2418 = vrot.lane.b32.xlu0 %v1962, 127
      %v2419 = vpop.permute.xlu0 %2418
      %2420 = vrot.lane.b32.xlu0 %v1964, 127
      %v2421 = vpop.permute.xlu0 %2420
      %2422 = vrot.lane.b32.xlu0 %v2174, 127
      %v2423 = vpop.permute.xlu0 %2422
      %2424 = vrot.lane.b32.xlu0 %v2176, 127
      %v2425 = vpop.permute.xlu0 %2424
      %2426 = vrot.lane.b32.xlu0 %v2372, 127
      %v2427 = vpop.permute.xlu0 %2426
      %2428 = vrot.lane.b32.xlu0 %v1966, 127
      %v2429 = vpop.permute.xlu0 %2428
      %2430 = vrot.lane.b32.xlu0 %v1968, 127
      %v2431 = vpop.permute.xlu0 %2430
      %2432 = vrot.lane.b32.xlu0 %v2178, 127
      %v2433 = vpop.permute.xlu0 %2432
      %2434 = vrot.lane.b32.xlu0 %v2180, 127
      %v2435 = vpop.permute.xlu0 %2434
      %2436 = vrot.lane.b32.xlu0 %v2375, 127
      %v2437 = vpop.permute.xlu0 %2436
      %vm2438 = vcmask 1039360
      %v2439 = vsel %vm2438, %v2399, %v2401
      %v2440 = vsel %vm2438, %v2401, %v2403
      %v2441 = vsel %vm2438, %v2403, %v2405
      %v2442 = vsel %vm2438, %v2405, %v2407
      %v2443 = vsel %vm2438, %v2409, %v2411
      %v2444 = vsel %vm2438, %v2411, %v2413
      %v2445 = vsel %vm2438, %v2413, %v2415
      %v2446 = vsel %vm2438, %v2415, %v2417
      %v2447 = vsel %vm2438, %v2419, %v2421
      %v2448 = vsel %vm2438, %v2421, %v2423
      %v2449 = vsel %vm2438, %v2423, %v2425
      %v2450 = vsel %vm2438, %v2425, %v2427
      %v2451 = vsel %vm2438, %v2429, %v2431
      %v2452 = vsel %vm2438, %v2431, %v2433
      %v2453 = vsel %vm2438, %v2433, %v2435
      %v2454 = vsel %vm2438, %v2435, %v2437
      %v2475 = vmax.f32 %v1952, %v2439
      %v2476 = vmax.f32 %v1954, %v2440
      %v2477 = vmax.f32 %v2164, %v2441
      %v2478 = vmax.f32 %v2166, %v2442
      %v2479 = vmax.f32 %v2364, %v2407
      %v2480 = vmax.f32 %v1956, %v2443
      %v2481 = vmax.f32 %v1958, %v2444
      %v2482 = vmax.f32 %v2168, %v2445
      %v2483 = vmax.f32 %v2170, %v2446
      %v2484 = vmax.f32 %v2367, %v2417
      %v2485 = vmax.f32 %v1962, %v2447
      %v2486 = vmax.f32 %v1964, %v2448
      %v2487 = vmax.f32 %v2174, %v2449
      %v2488 = vmax.f32 %v2176, %v2450
      %v2489 = vmax.f32 %v2372, %v2427
      %v2490 = vmax.f32 %v1966, %v2451
      %v2491 = vmax.f32 %v1968, %v2452
      %v2492 = vmax.f32 %v2178, %v2453
      %v2493 = vmax.f32 %v2180, %v2454
      %v2494 = vmax.f32 %v2375, %v2437
      %2515 = vrot.lane.b32.xlu0 %v2475, 100
      %v2516 = vpop.permute.xlu0 %2515
      %2517 = vrot.lane.b32.xlu0 %v2476, 100
      %v2518 = vpop.permute.xlu0 %2517
      %2519 = vrot.lane.b32.xlu0 %v2477, 100
      %v2520 = vpop.permute.xlu0 %2519
      %2521 = vrot.lane.b32.xlu0 %v2478, 100
      %v2522 = vpop.permute.xlu0 %2521
      %2523 = vrot.lane.b32.xlu0 %v2479, 100
      %v2524 = vpop.permute.xlu0 %2523
      %2525 = vrot.lane.b32.xlu0 %v2480, 100
      %v2526 = vpop.permute.xlu0 %2525
      %2527 = vrot.lane.b32.xlu0 %v2481, 100
      %v2528 = vpop.permute.xlu0 %2527
      %2529 = vrot.lane.b32.xlu0 %v2482, 100
      %v2530 = vpop.permute.xlu0 %2529
      %2531 = vrot.lane.b32.xlu0 %v2483, 100
      %v2532 = vpop.permute.xlu0 %2531
      %2533 = vrot.lane.b32.xlu0 %v2484, 100
      %v2534 = vpop.permute.xlu0 %2533
      %2535 = vrot.lane.b32.xlu0 %v2485, 100
      %v2536 = vpop.permute.xlu0 %2535
      %2537 = vrot.lane.b32.xlu0 %v2486, 100
      %v2538 = vpop.permute.xlu0 %2537
      %2539 = vrot.lane.b32.xlu0 %v2487, 100
      %v2540 = vpop.permute.xlu0 %2539
      %2541 = vrot.lane.b32.xlu0 %v2488, 100
      %v2542 = vpop.permute.xlu0 %2541
      %2543 = vrot.lane.b32.xlu0 %v2489, 100
      %v2544 = vpop.permute.xlu0 %2543
      %2545 = vrot.lane.b32.xlu0 %v2490, 100
      %v2546 = vpop.permute.xlu0 %2545
      %2547 = vrot.lane.b32.xlu0 %v2491, 100
      %v2548 = vpop.permute.xlu0 %2547
      %2549 = vrot.lane.b32.xlu0 %v2492, 100
      %v2550 = vpop.permute.xlu0 %2549
      %2551 = vrot.lane.b32.xlu0 %v2493, 100
      %v2552 = vpop.permute.xlu0 %2551
      %2553 = vrot.lane.b32.xlu0 %v2494, 100
      %v2554 = vpop.permute.xlu0 %2553
      %vm2555 = vcmask 818176
      %v2556 = vsel %vm2555, %v2516, %v2518
      %v2557 = vsel %vm2555, %v2518, %v2520
      %v2558 = vsel %vm2555, %v2520, %v2522
      %v2559 = vsel %vm2555, %v2522, %v2524
      %v2560 = vsel %vm2555, %v2526, %v2528
      %v2561 = vsel %vm2555, %v2528, %v2530
      %v2562 = vsel %vm2555, %v2530, %v2532
      %v2563 = vsel %vm2555, %v2532, %v2534
      %v2564 = vsel %vm2555, %v2536, %v2538
      %v2565 = vsel %vm2555, %v2538, %v2540
      %v2566 = vsel %vm2555, %v2540, %v2542
      %v2567 = vsel %vm2555, %v2542, %v2544
      %v2568 = vsel %vm2555, %v2546, %v2548
      %v2569 = vsel %vm2555, %v2548, %v2550
      %v2570 = vsel %vm2555, %v2550, %v2552
      %v2571 = vsel %vm2555, %v2552, %v2554
      %v2592 = vmax.f32 %v2475, %v2556
      %v2593 = vmax.f32 %v2476, %v2557
      %v2594 = vmax.f32 %v2477, %v2558
      %v2595 = vmax.f32 %v2478, %v2559
      %v2596 = vmax.f32 %v2479, %v2524
      %v2597 = vmax.f32 %v2480, %v2560
      %v2598 = vmax.f32 %v2481, %v2561
      %v2599 = vmax.f32 %v2482, %v2562
      %v2600 = vmax.f32 %v2483, %v2563
      %v2601 = vmax.f32 %v2484, %v2534
      %v2602 = vmax.f32 %v2485, %v2564
      %v2603 = vmax.f32 %v2486, %v2565
      %v2604 = vmax.f32 %v2487, %v2566
      %v2605 = vmax.f32 %v2488, %v2567
      %v2606 = vmax.f32 %v2489, %v2544
      %v2607 = vmax.f32 %v2490, %v2568
      %v2608 = vmax.f32 %v2491, %v2569
      %v2609 = vmax.f32 %v2492, %v2570
      %v2610 = vmax.f32 %v2493, %v2571
      %v2611 = vmax.f32 %v2494, %v2554
      %v2612 = vpack.c.bf16 %v2597, %v2592
      %v2613 = vpack.c.bf16 %v2598, %v2593
      %v2614 = vpack.c.bf16 %v2599, %v2594
      %v2615 = vpack.c.bf16 %v2600, %v2595
      %v2616 = vpack.c.bf16 %v2601, %v2596
      %v2617 = vpack.c.bf16 %v2607, %v2602
      %v2618 = vpack.c.bf16 %v2608, %v2603
      %v2619 = vpack.c.bf16 %v2609, %v2604
      %v2620 = vpack.c.bf16 %v2610, %v2605
      %v2621 = vpack.c.bf16 %v2611, %v2606
      %v2622 = vld [vmem:[%s5] sm:$0xf]
      %v2623 = vld [vmem:[%s5 + $0x4] sm:$0xf]
      %v2624 = vld [vmem:[%s5 + $0x8] sm:$0xf]
      %v2625 = vld [vmem:[%s5 + $0xc] sm:$0xf]
      %v2626 = vld [vmem:[%s5 + $0x10] sm:$0xf]
      %v2627 = vld [vmem:[%s5 + $0x14] sm:$0xf]
      %v2628 = vld [vmem:[%s5 + $0x18] sm:$0xf]
      %v2629 = vld [vmem:[%s5 + $0x1c] sm:$0xf]
      %v2630 = vld [vmem:[%s5 + $0x20] sm:$0xf]
      %v2631 = vld [vmem:[%s5 + $0x24] sm:$0xf]
      %v2632 = vld [vmem:[%s5 + $0x28] sm:$0xf]
      %v2633 = vld [vmem:[%s5 + $0x2c] sm:$0xf]
      %v2634 = vld [vmem:[%s5 + $0x30] sm:$0xf]
      %v2635 = vld [vmem:[%s5 + $0x34] sm:$0xf]
      %v2636 = vld [vmem:[%s5 + $0x38] sm:$0xf]
      %v2637 = vld [vmem:[%s5 + $0x3c] sm:$0xf]
      %v2638 = vld [vmem:[%s5 + $0x40] sm:$0xf]
      %v2639 = vld [vmem:[%s5 + $0x44] sm:$0xf]
      %v2640 = vld [vmem:[%s5 + $0x48] sm:$0xf]
      %v2641 = vld [vmem:[%s5 + $0x4c] sm:$0xf]
      %v2642 = vld [vmem:[%s5 + $0x50] sm:$0xf]
      %v2643 = vld [vmem:[%s5 + $0x54] sm:$0xf]
      %v2644 = vld [vmem:[%s5 + $0x58] sm:$0xf]
      %v2645 = vld [vmem:[%s5 + $0x5c] sm:$0xf]
      %v2646 = vld [vmem:[%s5 + $0x60] sm:$0xf]
      %v2647 = vld [vmem:[%s5 + $0x64] sm:$0xf]
      %v2648 = vld [vmem:[%s5 + $0x68] sm:$0xf]
      %v2649 = vld [vmem:[%s5 + $0x6c] sm:$0xf]
      %v2650 = vld [vmem:[%s5 + $0x70] sm:$0xf]
      %v2651 = vld [vmem:[%s5 + $0x74] sm:$0xf]
      %v2652 = vld [vmem:[%s5 + $0x78] sm:$0xf]
      %v2653 = vld [vmem:[%s5 + $0x7c] sm:$0xf]
      %v2654 = vld [vmem:[%s5 + $0x80] sm:$0xf]
      %v2655 = vld [vmem:[%s5 + $0x84] sm:$0xf]
      %v2656 = vld [vmem:[%s5 + $0x88] sm:$0xf]
      %v2657 = vld [vmem:[%s5 + $0x8c] sm:$0xf]
      %v2658 = vld [vmem:[%s5 + $0x90] sm:$0xf]
      %v2659 = vld [vmem:[%s5 + $0x94] sm:$0xf]
      %v2660 = vld [vmem:[%s5 + $0x98] sm:$0xf]
      %v2661 = vld [vmem:[%s5 + $0x9c] sm:$0xf]
      %v2662 = vld [vmem:[%s5 + $0xa0] sm:$0xf]
      %v2663 = vld [vmem:[%s5 + $0xa4] sm:$0xf]
      %v2664 = vld [vmem:[%s5 + $0xa8] sm:$0xf]
      %v2665 = vld [vmem:[%s5 + $0xac] sm:$0xf]
      %v2666 = vld [vmem:[%s5 + $0xb0] sm:$0xf]
      %v2667 = vld [vmem:[%s5 + $0xb4] sm:$0xf]
      %v2668 = vld [vmem:[%s5 + $0xb8] sm:$0xf]
      %v2669 = vld [vmem:[%s5 + $0xbc] sm:$0xf]
      %v2670 = vld [vmem:[%s5 + $0xc0] sm:$0xf]
      %v2671 = vld [vmem:[%s5 + $0xc4] sm:$0xf]
      %v2672 = vld [vmem:[%s5 + $0xc8] sm:$0xf]
      %v2673 = vld [vmem:[%s5 + $0xcc] sm:$0xf]
      %v2674 = vld [vmem:[%s5 + $0xd0] sm:$0xf]
      %v2675 = vld [vmem:[%s5 + $0xd4] sm:$0xf]
      %v2676 = vld [vmem:[%s5 + $0xd8] sm:$0xf]
      %v2677 = vld [vmem:[%s5 + $0xdc] sm:$0xf]
      %v2678 = vld [vmem:[%s5 + $0xe0] sm:$0xf]
      %v2679 = vld [vmem:[%s5 + $0xe4] sm:$0xf]
      %v2680 = vld [vmem:[%s5 + $0xe8] sm:$0xf]
      %v2681 = vld [vmem:[%s5 + $0xec] sm:$0xf]
      %v2682 = vld [vmem:[%s5 + $0xf0] sm:$0xf]
      %v2683 = vld [vmem:[%s5 + $0xf4] sm:$0xf]
      %v2684 = vld [vmem:[%s5 + $0xf8] sm:$0xf]
      %v2685 = vld [vmem:[%s5 + $0xfc] sm:$0xf]
      %v2686 = vld [vmem:[%s5 + $0x100] sm:$0xf]
      %v2687 = vld [vmem:[%s5 + $0x104] sm:$0x3]
      %v2754 = vunpack.c.l.b16 %v2622
      %v2755 = vunpack.c.l.b16 %v2623
      %v2756 = vunpack.c.l.b16 %v2624
      %v2757 = vunpack.c.l.b16 %v2625
      %v2758 = vunpack.c.l.b16 %v2626
      %v2759 = vunpack.c.l.b16 %v2627
      %v2760 = vunpack.c.l.b16 %v2628
      %v2761 = vunpack.c.l.b16 %v2629
      %v2762 = vunpack.c.l.b16 %v2630
      %v2763 = vunpack.c.l.b16 %v2631
      %v2764 = vunpack.c.l.b16 %v2632
      %v2765 = vunpack.c.l.b16 %v2633
      %v2766 = vunpack.c.l.b16 %v2634
      %v2767 = vunpack.c.l.b16 %v2635
      %v2768 = vunpack.c.l.b16 %v2636
      %v2769 = vunpack.c.l.b16 %v2637
      %v2770 = vunpack.c.l.b16 %v2638
      %v2771 = vunpack.c.l.b16 %v2639
      %v2772 = vunpack.c.l.b16 %v2640
      %v2773 = vunpack.c.l.b16 %v2641
      %v2774 = vunpack.c.l.b16 %v2642
      %v2775 = vunpack.c.l.b16 %v2643
      %v2776 = vunpack.c.l.b16 %v2644
      %v2777 = vunpack.c.l.b16 %v2645
      %v2778 = vunpack.c.l.b16 %v2646
      %v2779 = vunpack.c.l.b16 %v2647
      %v2780 = vunpack.c.l.b16 %v2648
      %v2781 = vunpack.c.l.b16 %v2649
      %v2782 = vunpack.c.l.b16 %v2650
      %v2783 = vunpack.c.l.b16 %v2651
      %v2784 = vunpack.c.l.b16 %v2652
      %v2785 = vunpack.c.l.b16 %v2653
      %v2786 = vunpack.c.l.b16 %v2654
      %v2787 = vunpack.c.l.b16 %v2655
      %v2788 = vunpack.c.l.b16 %v2656
      %v2789 = vunpack.c.l.b16 %v2657
      %v2790 = vunpack.c.l.b16 %v2658
      %v2791 = vunpack.c.l.b16 %v2659
      %v2792 = vunpack.c.l.b16 %v2660
      %v2793 = vunpack.c.l.b16 %v2661
      %v2794 = vunpack.c.l.b16 %v2662
      %v2795 = vunpack.c.l.b16 %v2663
      %v2796 = vunpack.c.l.b16 %v2664
      %v2797 = vunpack.c.l.b16 %v2665
      %v2798 = vunpack.c.l.b16 %v2666
      %v2799 = vunpack.c.l.b16 %v2667
      %v2800 = vunpack.c.l.b16 %v2668
      %v2801 = vunpack.c.l.b16 %v2669
      %v2802 = vunpack.c.l.b16 %v2670
      %v2803 = vunpack.c.l.b16 %v2671
      %v2804 = vunpack.c.l.b16 %v2672
      %v2805 = vunpack.c.l.b16 %v2673
      %v2806 = vunpack.c.l.b16 %v2674
      %v2807 = vunpack.c.l.b16 %v2675
      %v2808 = vunpack.c.l.b16 %v2676
      %v2809 = vunpack.c.l.b16 %v2677
      %v2810 = vunpack.c.l.b16 %v2678
      %v2811 = vunpack.c.l.b16 %v2679
      %v2812 = vunpack.c.l.b16 %v2680
      %v2813 = vunpack.c.l.b16 %v2681
      %v2814 = vunpack.c.l.b16 %v2682
      %v2815 = vunpack.c.l.b16 %v2683
      %v2816 = vunpack.c.l.b16 %v2684
      %v2817 = vunpack.c.l.b16 %v2685
      %v2818 = vunpack.c.l.b16 %v2686
      %v2819 = vunpack.c.l.b16 %v2687
      %v2820 = vpack.c.b16 %v2755, %v2754
      %v2821 = vpack.c.b16 %v2757, %v2756
      %v2822 = vpack.c.b16 %v2759, %v2758
      %v2823 = vpack.c.b16 %v2761, %v2760
      %v2824 = vpack.c.b16 %v2763, %v2762
      %v2825 = vpack.c.b16 %v2765, %v2764
      %v2826 = vpack.c.b16 %v2767, %v2766
      %v2827 = vpack.c.b16 %v2769, %v2768
      %v2828 = vpack.c.b16 %v2771, %v2770
      %v2829 = vpack.c.b16 %v2773, %v2772
      %v2830 = vpack.c.b16 %v2775, %v2774
      %v2831 = vpack.c.b16 %v2777, %v2776
      %v2832 = vpack.c.b16 %v2779, %v2778
      %v2833 = vpack.c.b16 %v2781, %v2780
      %v2834 = vpack.c.b16 %v2783, %v2782
      %v2835 = vpack.c.b16 %v2785, %v2784
      %v2836 = vpack.c.b16 %v2787, %v2786
      %v2837 = vpack.c.b16 %v2789, %v2788
      %v2838 = vpack.c.b16 %v2791, %v2790
      %v2839 = vpack.c.b16 %v2793, %v2792
      %v2840 = vpack.c.b16 %v2795, %v2794
      %v2841 = vpack.c.b16 %v2797, %v2796
      %v2842 = vpack.c.b16 %v2799, %v2798
      %v2843 = vpack.c.b16 %v2801, %v2800
      %v2844 = vpack.c.b16 %v2803, %v2802
      %v2845 = vpack.c.b16 %v2805, %v2804
      %v2846 = vpack.c.b16 %v2807, %v2806
      %v2847 = vpack.c.b16 %v2809, %v2808
      %v2848 = vpack.c.b16 %v2811, %v2810
      %v2849 = vpack.c.b16 %v2813, %v2812
      %v2850 = vpack.c.b16 %v2815, %v2814
      %v2851 = vpack.c.b16 %v2817, %v2816
      %v2852 = vpack.c.b16 %v2819, %v2818
      %vm2885 = vcmask 89088
      %v2887 = vsel %vm2885, %v2616, 0
      %v2890 = vsel %vm2885, %v2621, 0
      %vm2892 = vcmask 1044480
      %vm2893 = vcmask 1045504
      %v2894 = vsel %vm2892, 4294967295, 65535
      %v2895 = vsel %vm2893, %v2894, 0
      %v2897 = vand.u32 %v2852, %v2895
      %2899 = vmatprep.subr.bf16.mxu0 0
      %2900 = vmatpush1.bf16.msra.mxu0 %v2820
      %2901 = vmatprep.subr.bf16.mxu0 0
      %2902 = vmatpush1.bf16.msra.mxu0 %v2821
      %2903 = vmatprep.subr.bf16.mxu0 0
      %2904 = vmatpush1.bf16.msra.mxu0 %v2822
      %2905 = vmatprep.subr.bf16.mxu0 0
      %2906 = vmatpush1.bf16.msra.mxu0 %v2823
      %2907 = vmatprep.subr.bf16.mxu0 0
      %2908 = vmatpush1.bf16.msra.mxu0 %v2824
      %2909 = vmatprep.subr.bf16.mxu0 0
      %2910 = vmatpush1.bf16.msra.mxu0 %v2825
      %2911 = vmatprep.subr.bf16.mxu0 0
      %2912 = vmatpush1.bf16.msra.mxu0 %v2826
      %2913 = vmatprep.subr.bf16.mxu0 0
      %2914 = vmatpush1.bf16.msra.mxu0 %v2827
      %2915 = vmatprep.subr.bf16.mxu0 0
      %2916 = vmatpush1.bf16.msra.mxu0 %v2828
      %2917 = vmatprep.subr.bf16.mxu0 0
      %2918 = vmatpush1.bf16.msra.mxu0 %v2829
      %2919 = vmatprep.subr.bf16.mxu0 0
      %2920 = vmatpush1.bf16.msra.mxu0 %v2830
      %2921 = vmatprep.subr.bf16.mxu0 0
      %2922 = vmatpush1.bf16.msra.mxu0 %v2831
      %2923 = vmatprep.subr.bf16.mxu0 0
      %2924 = vmatpush1.bf16.msra.mxu0 %v2832
      %2925 = vmatprep.subr.bf16.mxu0 0
      %2926 = vmatpush1.bf16.msra.mxu0 %v2833
      %2927 = vmatprep.subr.bf16.mxu0 0
      %2928 = vmatpush1.bf16.msra.mxu0 %v2834
      %2929 = vmatprep.subr.bf16.mxu0 0
      %2930 = vmatpush1.bf16.msra.mxu0 %v2835
      %2931 = vmatprep.mubr.bf16.mxu0 %v2613
      %2932 = vmatmul.mubr.bf16.gmra.mrb[0].mxu0 %v2612
      %v2933 = vpop.f32.mrb[0].mxu0
      %v2934 = vadd.f32 0.0, %v2933
      %v2935 = vpop.f32.mrb[0].mxu0
      %v2936 = vpop.f32.mrb[0].mxu0
      %v2937 = vadd.f32 0.0, %v2936
      %v2938 = vpop.f32.mrb[0].mxu0
      %2939 = vmatprep.mubr.bf16.mxu0 %v2618
      %2940 = vmatmul.mubr.bf16.gmra.mrb[0].mxu0 %v2617
      %v2941 = vpop.f32.mrb[0].mxu0
      %v2942 = vadd.f32 0.0, %v2941
      %v2943 = vpop.f32.mrb[0].mxu0
      %v2944 = vpop.f32.mrb[0].mxu0
      %v2945 = vadd.f32 0.0, %v2944
      %v2946 = vpop.f32.mrb[0].mxu0
      %2947 = vdwg.mxu0
      %2948 = vmatprep.subr.bf16.mxu0 0
      %2949 = vmatpush1.bf16.msra.mxu0 %v2836
      %2950 = vmatprep.subr.bf16.mxu0 0
      %2951 = vmatpush1.bf16.msra.mxu0 %v2837
      %2952 = vmatprep.subr.bf16.mxu0 0
      %2953 = vmatpush1.bf16.msra.mxu0 %v2838
      %2954 = vmatprep.subr.bf16.mxu0 0
      %2955 = vmatpush1.bf16.msra.mxu0 %v2839
      %2956 = vmatprep.subr.bf16.mxu0 0
      %2957 = vmatpush1.bf16.msra.mxu0 %v2840
      %2958 = vmatprep.subr.bf16.mxu0 0
      %2959 = vmatpush1.bf16.msra.mxu0 %v2841
      %2960 = vmatprep.subr.bf16.mxu0 0
      %2961 = vmatpush1.bf16.msra.mxu0 %v2842
      %2962 = vmatprep.subr.bf16.mxu0 0
      %2963 = vmatpush1.bf16.msra.mxu0 %v2843
      %2964 = vmatprep.subr.bf16.mxu0 0
      %2965 = vmatpush1.bf16.msra.mxu0 %v2844
      %2966 = vmatprep.subr.bf16.mxu0 0
      %2967 = vmatpush1.bf16.msra.mxu0 %v2845
      %2968 = vmatprep.subr.bf16.mxu0 0
      %2969 = vmatpush1.bf16.msra.mxu0 %v2846
      %2970 = vmatprep.subr.bf16.mxu0 0
      %2971 = vmatpush1.bf16.msra.mxu0 %v2847
      %2972 = vmatprep.subr.bf16.mxu0 0
      %2973 = vmatpush1.bf16.msra.mxu0 %v2848
      %2974 = vmatprep.subr.bf16.mxu0 0
      %2975 = vmatpush1.bf16.msra.mxu0 %v2849
      %2976 = vmatprep.subr.bf16.mxu0 0
      %2977 = vmatpush1.bf16.msra.mxu0 %v2850
      %2978 = vmatprep.subr.bf16.mxu0 0
      %2979 = vmatpush1.bf16.msra.mxu0 %v2851
      %2980 = vmatprep.mubr.bf16.mxu0 %v2615
      %2981 = vmatmul.mubr.bf16.gmra.mrb[0].mxu0 %v2614
      %v2982 = vpop.f32.mrb[0].mxu0
      %v2983 = vadd.f32 %v2934, %v2982
      %v2984 = vpop.f32.mrb[0].mxu0
      %v2985 = vpop.f32.mrb[0].mxu0
      %v2986 = vadd.f32 %v2937, %v2985
      %v2987 = vpop.f32.mrb[0].mxu0
      %2988 = vmatprep.mubr.bf16.mxu0 %v2620
      %2989 = vmatmul.mubr.bf16.gmra.mrb[0].mxu0 %v2619
      %v2990 = vpop.f32.mrb[0].mxu0
      %v2991 = vadd.f32 %v2942, %v2990
      %v2992 = vpop.f32.mrb[0].mxu0
      %v2993 = vpop.f32.mrb[0].mxu0
      %v2994 = vadd.f32 %v2945, %v2993
      %v2995 = vpop.f32.mrb[0].mxu0
      %2996 = vdwg.mxu0
      %2997 = vmatprep.subr.bf16.mxu0 0
      %2998 = vmatpush1.bf16.msra.mxu0 %v2897
      %2999 = vmatprep.subr.bf16.mxu0 0
      %3000 = vmatpush1.bf16.msra.mxu0 0
      %3001 = vmatprep.subr.bf16.mxu0 0
      %3002 = vmatpush1.bf16.msra.mxu0 0
      %3003 = vmatprep.subr.bf16.mxu0 0
      %3004 = vmatpush1.bf16.msra.mxu0 0
      %3005 = vmatprep.subr.bf16.mxu0 0
      %3006 = vmatpush1.bf16.msra.mxu0 0
      %3007 = vmatprep.subr.bf16.mxu0 0
      %3008 = vmatpush1.bf16.msra.mxu0 0
      %3009 = vmatprep.subr.bf16.mxu0 0
      %3010 = vmatpush1.bf16.msra.mxu0 0
      %3011 = vmatprep.subr.bf16.mxu0 0
      %3012 = vmatpush1.bf16.msra.mxu0 0
      %3013 = vmatprep.subr.bf16.mxu0 0
      %3014 = vmatpush1.bf16.msra.mxu0 0
      %3015 = vmatprep.subr.bf16.mxu0 0
      %3016 = vmatpush1.bf16.msra.mxu0 0
      %3017 = vmatprep.subr.bf16.mxu0 0
      %3018 = vmatpush1.bf16.msra.mxu0 0
      %3019 = vmatprep.subr.bf16.mxu0 0
      %3020 = vmatpush1.bf16.msra.mxu0 0
      %3021 = vmatprep.subr.bf16.mxu0 0
      %3022 = vmatpush1.bf16.msra.mxu0 0
      %3023 = vmatprep.subr.bf16.mxu0 0
      %3024 = vmatpush1.bf16.msra.mxu0 0
      %3025 = vmatprep.subr.bf16.mxu0 0
      %3026 = vmatpush1.bf16.msra.mxu0 0
      %3027 = vmatprep.subr.bf16.mxu0 0
      %3028 = vmatpush1.bf16.msra.mxu0 0
      %3029 = vmatprep.mubr.bf16.mxu0 0
      %3030 = vmatmul.mubr.bf16.gmra.mrb[0].mxu0 %v2887
      %v3031 = vpop.f32.mrb[0].mxu0
      %v3032 = vadd.f32 %v2983, %v3031
      %v3033 = vpop.f32.mrb[0].mxu0
      %v3034 = vpop.f32.mrb[0].mxu0
      %v3035 = vadd.f32 %v2986, %v3034
      %v3036 = vpop.f32.mrb[0].mxu0
      %3037 = vmatprep.mubr.bf16.mxu0 0
      %3038 = vmatmul.mubr.bf16.gmra.mrb[0].mxu0 %v2890
      %v3039 = vpop.f32.mrb[0].mxu0
      %v3040 = vadd.f32 %v2991, %v3039
      %v3041 = vpop.f32.mrb[0].mxu0
      %v3042 = vpop.f32.mrb[0].mxu0
      %v3043 = vadd.f32 %v2994, %v3042
      %v3044 = vpop.f32.mrb[0].mxu0
      %3045 = vdwg.mxu0
      %v3046 = vmax.f32 %v3032, 0.0
      %v3047 = vmax.f32 %v3035, 0.0
      %v3048 = vmax.f32 %v3040, 0.0
      %v3049 = vmax.f32 %v3043, 0.0
      %v3050 = vpack.c.bf16 %v3047, %v3046
      %v3051 = vpack.c.bf16 %v3049, %v3048
      %v3054 = vunpack.c.l.b16 %v3050
      %v3055 = vunpack.c.h.b16 %v3050
      %v3056 = vunpack.c.l.b16 %v3051
      %v3057 = vunpack.c.h.b16 %v3051
      %v3058 = vpack.c.b16 %v3054, %v3054
      %v3059 = vpack.c.b16 %v3055, %v3055
      %v3060 = vpack.c.b16 %v3056, %v3056
      %v3061 = vpack.c.b16 %v3057, %v3057
      %vm3066 = vcmask 846848
      %3067 = vst.msk [vmem:[%s251] sm:$0xf] %vm3066, %v3058
      %3068 = vst.msk [vmem:[%s251 + $0x4] sm:$0xf] %vm3066, %v3059
      %3069 = vst.msk [vmem:[%s251 + $0x8] sm:$0xf] %vm3066, %v3060
      %3070 = vst.msk [vmem:[%s251 + $0xc] sm:$0xf] %vm3066, %v3061
      %p3071 = scmp.lt.s32.totalorder %s17, 1
      %s3072 = scalar_select %p3071, %s17, 1
      %s3073 = smul.addr %s3072, 4
      %s3074 = smul.addr %s3073, 4
      %s3075 = scalar_lea.vmem %s6, %s3074
      // Predicated region
      $region45: #{forward.3} parent=43 // pred_check
        %p3076 = pneg %p166
      $region46: #{forward.3} parent=43 // pred_check_branch
        %3078 = sbr.rel (%p3076) target = $region48
      $region47: #{forward.3} parent=43 // pred_region
        _
      $region48: #{forward.3} parent=43 // pred_fallthru
        _
    $region44: #{forward.3} parent=5 // pred_fallthru
      _
    %p3079 = scmp.le.s32.totalorder 2, %s12
    // Predicated region
    $region49: #{forward.3} parent=5 // pred_check
      %p3080 = pneg %p3079
    $region50: #{forward.3} parent=5 // pred_check_branch
      %3082 = sbr.rel (%p3080) target = $region52
    $region51: #{forward.3} parent=5 // pred_region
      %s3083 = ssub.s32 %s12, 2
      // Predicated region
      $region53: #{forward.3} parent=51 // pred_check
        %p3084 = pneg %p172
      $region54: #{forward.3} parent=51 // pred_check_branch
        %3086 = sbr.rel (%p3084) target = $region56
      $region55: #{forward.3} parent=51 // pred_region
        %p3087 = scmp.lt.s32.totalorder %s18, 1
        %s3088 = scalar_select %p3087, %s18, 1
        %s3089 = smul.addr %s3088, 4
        %s3090 = smul.addr %s3089, 4
        %s3091 = scalar_lea.vmem %s6, %s3090
      $region56: #{forward.3} parent=51 // pred_fallthru
        _
    $region52: #{forward.3} parent=5 // pred_fallthru
      _
  $region6: #{forward.3} parent=0 // loop_footer
    %s16 = sadd.s32 1, %s12
  $region7: #{forward.3} parent=0 // loop_footer_branch
    %11 = sbr.rel target = $region3
  $region8: #{forward.3} parent=0 // loop_exit
    _

// kernel: forward.5
$region0: #{forward.5}
  #allocation0 [shape = 'u32[]', space=smem, size = 0x4, offset = 0x4, fixed_abs, tag = 'smem constant byte address 0x4 - core index']
  #allocation1 [shape = 'u32[144,128]{1,0:T(1,128)}', space=vmem, size = 0x12000, scoped, tag = 'internal scratch']
  %s0 = inlined_call_operand.vmem [shape: bf16[2,576], index: 0, kind: input, shape index: {}]
  %s1 = inlined_call_operand.vmem [shape: bf16[576,256], index: 1, kind: input, shape index: {}]
  %s2 = inlined_call_operand.vmem [shape: f32[1,256], index: 2, kind: input, shape index: {}]
  %s3 = inlined_call_operand.vmem [shape: bf16[256,10], index: 3, kind: input, shape index: {}]
  %s4 = inlined_call_operand.vmem [shape: f32[1,10], index: 4, kind: input, shape index: {}]
  %s5 = inlined_call_operand.hbm [shape: f32[2,10], index: 5, kind: output, shape index: {}]
  %s6 = sld [smem:[#allocation0]]
  $region30: #{forward.5} parent=0
    _
  %s8 = ssub.s32 1, %s6
  %s9 = scalar_select 0, %s8, %s6
  $region1: #{forward.5} parent=0
    #allocation2 [shape = 'u8[1024]{0}', space=vmem, size = 0x400, scoped, tag = 'output window, operand 0, single buffered']
    #allocation3 [shape = 's32[1]{0}', space=sflag, size = 0x4, scoped, tag = 'scoped memory for forward.5']
    %10 = vsyncpa [#allocation3], 0
    // Predicated region
    $region2: #{forward.5} parent=1 // pred_check
      _
    $region3: #{forward.5} parent=1 // pred_check_branch
      %12 = sbr.rel (0) target = $region5
    $region4: #{forward.5} parent=1 // pred_region
      _
    $region5: #{forward.5} parent=1 // pred_fallthru
      _
    // Predicated region
    $region6: #{forward.5} parent=1 // pred_check
      _
    $region7: #{forward.5} parent=1 // pred_check_branch
      %14 = sbr.rel (0) target = $region9
    $region8: #{forward.5} parent=1 // pred_region
      _
    $region9: #{forward.5} parent=1 // pred_fallthru
      _
    // Predicated region
    $region10: #{forward.5} parent=1 // pred_check
      _
    $region11: #{forward.5} parent=1 // pred_check_branch
      %16 = sbr.rel (0) target = $region13
    $region12: #{forward.5} parent=1 // pred_region
      _
    $region13: #{forward.5} parent=1 // pred_fallthru
      _
    // Predicated region
    $region14: #{forward.5} parent=1 // pred_check
      _
    $region15: #{forward.5} parent=1 // pred_check_branch
      %18 = sbr.rel (0) target = $region17
    $region16: #{forward.5} parent=1 // pred_region
      _
    $region17: #{forward.5} parent=1 // pred_fallthru
      _
    // Predicated region
    $region18: #{forward.5} parent=1 // pred_check
      _
    $region19: #{forward.5} parent=1 // pred_check_branch
      %20 = sbr.rel (0) target = $region21
    $region20: #{forward.5} parent=1 // pred_region
      _
    $region21: #{forward.5} parent=1 // pred_fallthru
      _
    %v22 = vld [vmem:[%s0] sm:$0x1f]
    %v23 = vld [vmem:[%s1] sm:$0xff]
    %v24 = vld [vmem:[%s1 + $0x8] sm:$0xff]
    %v25 = vld [vmem:[%s1 + $0x10] sm:$0xff]
    %v26 = vld [vmem:[%s1 + $0x18] sm:$0xff]
    %v27 = vld [vmem:[%s1 + $0x20] sm:$0xff]
    %v28 = vld [vmem:[%s1 + $0x28] sm:$0xff]
    %v29 = vld [vmem:[%s1 + $0x30] sm:$0xff]
    %v30 = vld [vmem:[%s1 + $0x38] sm:$0xff]
    %v31 = vld [vmem:[%s1 + $0x40] sm:$0xff]
    %v32 = vld [vmem:[%s1 + $0x48] sm:$0xff]
    %v33 = vld [vmem:[%s1 + $0x50] sm:$0xff]
    %v34 = vld [vmem:[%s1 + $0x58] sm:$0xff]
    %v35 = vld [vmem:[%s1 + $0x60] sm:$0xff]
    %v36 = vld [vmem:[%s1 + $0x68] sm:$0xff]
    %v37 = vld [vmem:[%s1 + $0x70] sm:$0xff]
    %v38 = vld [vmem:[%s1 + $0x78] sm:$0xff]
    %v39 = vld [vmem:[%s1 + $0x80] sm:$0xff]
    %v40 = vld [vmem:[%s1 + $0x88] sm:$0xff]
    %v41 = vld [vmem:[%s1 + $0x90] sm:$0xff]
    %v42 = vld [vmem:[%s1 + $0x98] sm:$0xff]
    %v43 = vld [vmem:[%s1 + $0xa0] sm:$0xff]
    %v44 = vld [vmem:[%s1 + $0xa8] sm:$0xff]
    %v45 = vld [vmem:[%s1 + $0xb0] sm:$0xff]
    %v46 = vld [vmem:[%s1 + $0xb8] sm:$0xff]
    %v47 = vld [vmem:[%s1 + $0xc0] sm:$0xff]
    %v48 = vld [vmem:[%s1 + $0xc8] sm:$0xff]
    %v49 = vld [vmem:[%s1 + $0xd0] sm:$0xff]
    %v50 = vld [vmem:[%s1 + $0xd8] sm:$0xff]
    %v51 = vld [vmem:[%s1 + $0xe0] sm:$0xff]
    %v52 = vld [vmem:[%s1 + $0xe8] sm:$0xff]
    %v53 = vld [vmem:[%s1 + $0xf0] sm:$0xff]
    %v54 = vld [vmem:[%s1 + $0xf8] sm:$0xff]
    %v55 = vld [vmem:[%s1 + $0x100] sm:$0xff]
    %v56 = vld [vmem:[%s1 + $0x108] sm:$0xff]
    %v57 = vld [vmem:[%s1 + $0x110] sm:$0xff]
    %v58 = vld [vmem:[%s1 + $0x118] sm:$0xff]
    %v59 = vld [vmem:[%s1 + $0x120] sm:$0xff]
    %v60 = vld [vmem:[%s1 + $0x128] sm:$0xff]
    %v61 = vld [vmem:[%s1 + $0x130] sm:$0xff]
    %v62 = vld [vmem:[%s1 + $0x138] sm:$0xff]
    %v63 = vld [vmem:[%s1 + $0x140] sm:$0xff]
    %v64 = vld [vmem:[%s1 + $0x148] sm:$0xff]
    %v65 = vld [vmem:[%s1 + $0x150] sm:$0xff]
    %v66 = vld [vmem:[%s1 + $0x158] sm:$0xff]
    %v67 = vld [vmem:[%s1 + $0x160] sm:$0xff]
    %v68 = vld [vmem:[%s1 + $0x168] sm:$0xff]
    %v69 = vld [vmem:[%s1 + $0x170] sm:$0xff]
    %v70 = vld [vmem:[%s1 + $0x178] sm:$0xff]
    %v71 = vld [vmem:[%s1 + $0x180] sm:$0xff]
    %v72 = vld [vmem:[%s1 + $0x188] sm:$0xff]
    %v73 = vld [vmem:[%s1 + $0x190] sm:$0xff]
    %v74 = vld [vmem:[%s1 + $0x198] sm:$0xff]
    %v75 = vld [vmem:[%s1 + $0x1a0] sm:$0xff]
    %v76 = vld [vmem:[%s1 + $0x1a8] sm:$0xff]
    %v77 = vld [vmem:[%s1 + $0x1b0] sm:$0xff]
    %v78 = vld [vmem:[%s1 + $0x1b8] sm:$0xff]
    %v79 = vld [vmem:[%s1 + $0x1c0] sm:$0xff]
    %v80 = vld [vmem:[%s1 + $0x1c8] sm:$0xff]
    %v81 = vld [vmem:[%s1 + $0x1d0] sm:$0xff]
    %v82 = vld [vmem:[%s1 + $0x1d8] sm:$0xff]
    %v83 = vld [vmem:[%s1 + $0x1e0] sm:$0xff]
    %v84 = vld [vmem:[%s1 + $0x1e8] sm:$0xff]
    %v85 = vld [vmem:[%s1 + $0x1f0] sm:$0xff]
    %v86 = vld [vmem:[%s1 + $0x1f8] sm:$0xff]
    %v87 = vld [vmem:[%s1 + $0x200] sm:$0xff]
    %v88 = vld [vmem:[%s1 + $0x208] sm:$0xff]
    %v89 = vld [vmem:[%s1 + $0x210] sm:$0xff]
    %v90 = vld [vmem:[%s1 + $0x218] sm:$0xff]
    %v91 = vld [vmem:[%s1 + $0x220] sm:$0xff]
    %v92 = vld [vmem:[%s1 + $0x228] sm:$0xff]
    %v93 = vld [vmem:[%s1 + $0x230] sm:$0xff]
    %v94 = vld [vmem:[%s1 + $0x238] sm:$0xff]
    %v95 = vld [vmem:[%s2] sm:$0x3]
    %v97 = vlaneseq
    %v98 = vshrl.u32 %v97, 7
    %v99 = vsub.s32 0, %v98
    %v100 = vrot.slane %v95, %v99
    %v101 = vlaneseq
    %v102 = vshrl.u32 %v101, 7
    %v103 = vsub.s32 1, %v102
    %v104 = vrot.slane %v95, %v103
    %v108 = vcombine.high %v22, %v22
    %v110 = vunpack.c.l.s4 1966171168
    %v111 = vunpack.c.0.s8 %v110
    %v112 = vlaneseq
    %v113 = vshrl.u32 %v112, 7
    %v114 = vsub.s32 %v111, %v113
    %v115 = vrot.slane %v22, %v114
    %v117 = vunpack.c.l.s4 1966171168
    %v118 = vunpack.c.0.s8 %v117
    %v119 = vlaneseq
    %v120 = vshrl.u32 %v119, 7
    %v121 = vsub.s32 %v118, %v120
    %v122 = vrot.slane %v108, %v121
    %v123 = vcombine.high %v115, %v115
    %v125 = vunpack.c.l.s4 1966171168
    %v126 = vunpack.c.0.s8 %v125
    %v127 = vlaneseq
    %v128 = vshrl.u32 %v127, 7
    %v129 = vsub.s32 %v126, %v128
    %v130 = vrot.slane %v115, %v129
    %v132 = vunpack.c.l.s4 1966171168
    %v133 = vunpack.c.0.s8 %v132
    %v134 = vlaneseq
    %v135 = vshrl.u32 %v134, 7
    %v136 = vsub.s32 %v133, %v135
    %v137 = vrot.slane %v122, %v136
    %v139 = vunpack.c.l.s4 1966171168
    %v140 = vunpack.c.0.s8 %v139
    %v141 = vlaneseq
    %v142 = vshrl.u32 %v141, 7
    %v143 = vsub.s32 %v140, %v142
    %v144 = vrot.slane %v123, %v143
    %v145 = vcombine.high %v130, %v130
    %v146 = vcombine.high %v144, %v144
    %v223 = vunpack.c.l.b16 %v23
    %v224 = vunpack.c.h.b16 %v23
    %v225 = vunpack.c.l.b16 %v24
    %v226 = vunpack.c.h.b16 %v24
    %v227 = vunpack.c.l.b16 %v25
    %v228 = vunpack.c.h.b16 %v25
    %v229 = vunpack.c.l.b16 %v26
    %v230 = vunpack.c.h.b16 %v26
    %v231 = vunpack.c.l.b16 %v27
    %v232 = vunpack.c.h.b16 %v27
    %v233 = vunpack.c.l.b16 %v28
    %v234 = vunpack.c.h.b16 %v28
    %v235 = vunpack.c.l.b16 %v29
    %v236 = vunpack.c.h.b16 %v29
    %v237 = vunpack.c.l.b16 %v30
    %v238 = vunpack.c.h.b16 %v30
    %v239 = vunpack.c.l.b16 %v31
    %v240 = vunpack.c.h.b16 %v31
    %v241 = vunpack.c.l.b16 %v32
    %v242 = vunpack.c.h.b16 %v32
    %v243 = vunpack.c.l.b16 %v33
    %v244 = vunpack.c.h.b16 %v33
    %v245 = vunpack.c.l.b16 %v34
    %v246 = vunpack.c.h.b16 %v34
    %v247 = vunpack.c.l.b16 %v35
    %v248 = vunpack.c.h.b16 %v35
    %v249 = vunpack.c.l.b16 %v36
    %v250 = vunpack.c.h.b16 %v36
    %v251 = vunpack.c.l.b16 %v37
    %v252 = vunpack.c.h.b16 %v37
    %v253 = vunpack.c.l.b16 %v38
    %v254 = vunpack.c.h.b16 %v38
    %v255 = vunpack.c.l.b16 %v39
    %v256 = vunpack.c.h.b16 %v39
    %v257 = vunpack.c.l.b16 %v40
    %v258 = vunpack.c.h.b16 %v40
    %v259 = vunpack.c.l.b16 %v41
    %v260 = vunpack.c.h.b16 %v41
    %v261 = vunpack.c.l.b16 %v42
    %v262 = vunpack.c.h.b16 %v42
    %v263 = vunpack.c.l.b16 %v43
    %v264 = vunpack.c.h.b16 %v43
    %v265 = vunpack.c.l.b16 %v44
    %v266 = vunpack.c.h.b16 %v44
    %v267 = vunpack.c.l.b16 %v45
    %v268 = vunpack.c.h.b16 %v45
    %v269 = vunpack.c.l.b16 %v46
    %v270 = vunpack.c.h.b16 %v46
    %v271 = vunpack.c.l.b16 %v47
    %v272 = vunpack.c.h.b16 %v47
    %v273 = vunpack.c.l.b16 %v48
    %v274 = vunpack.c.h.b16 %v48
    %v275 = vunpack.c.l.b16 %v49
    %v276 = vunpack.c.h.b16 %v49
    %v277 = vunpack.c.l.b16 %v50
    %v278 = vunpack.c.h.b16 %v50
    %v279 = vunpack.c.l.b16 %v51
    %v280 = vunpack.c.h.b16 %v51
    %v281 = vunpack.c.l.b16 %v52
    %v282 = vunpack.c.h.b16 %v52
    %v283 = vunpack.c.l.b16 %v53
    %v284 = vunpack.c.h.b16 %v53
    %v285 = vunpack.c.l.b16 %v54
    %v286 = vunpack.c.h.b16 %v54
    %v287 = vunpack.c.l.b16 %v55
    %v288 = vunpack.c.h.b16 %v55
    %v289 = vunpack.c.l.b16 %v56
    %v290 = vunpack.c.h.b16 %v56
    %v291 = vunpack.c.l.b16 %v57
    %v292 = vunpack.c.h.b16 %v57
    %v293 = vunpack.c.l.b16 %v58
    %v294 = vunpack.c.h.b16 %v58
    %v295 = vunpack.c.l.b16 %v59
    %v296 = vunpack.c.h.b16 %v59
    %v297 = vunpack.c.l.b16 %v60
    %v298 = vunpack.c.h.b16 %v60
    %v299 = vunpack.c.l.b16 %v61
    %v300 = vunpack.c.h.b16 %v61
    %v301 = vunpack.c.l.b16 %v62
    %v302 = vunpack.c.h.b16 %v62
    %v303 = vunpack.c.l.b16 %v63
    %v304 = vunpack.c.h.b16 %v63
    %v305 = vunpack.c.l.b16 %v64
    %v306 = vunpack.c.h.b16 %v64
    %v307 = vunpack.c.l.b16 %v65
    %v308 = vunpack.c.h.b16 %v65
    %v309 = vunpack.c.l.b16 %v66
    %v310 = vunpack.c.h.b16 %v66
    %v311 = vunpack.c.l.b16 %v67
    %v312 = vunpack.c.h.b16 %v67
    %v313 = vunpack.c.l.b16 %v68
    %v314 = vunpack.c.h.b16 %v68
    %v315 = vunpack.c.l.b16 %v69
    %v316 = vunpack.c.h.b16 %v69
    %v317 = vunpack.c.l.b16 %v70
    %v318 = vunpack.c.h.b16 %v70
    %v319 = vunpack.c.l.b16 %v71
    %v320 = vunpack.c.h.b16 %v71
    %v321 = vunpack.c.l.b16 %v72
    %v322 = vunpack.c.h.b16 %v72
    %v323 = vunpack.c.l.b16 %v73
    %v324 = vunpack.c.h.b16 %v73
    %v325 = vunpack.c.l.b16 %v74
    %v326 = vunpack.c.h.b16 %v74
    %v327 = vunpack.c.l.b16 %v75
    %v328 = vunpack.c.h.b16 %v75
    %v329 = vunpack.c.l.b16 %v76
    %v330 = vunpack.c.h.b16 %v76
    %v331 = vunpack.c.l.b16 %v77
    %v332 = vunpack.c.h.b16 %v77
    %v333 = vunpack.c.l.b16 %v78
    %v334 = vunpack.c.h.b16 %v78
    %v335 = vunpack.c.l.b16 %v79
    %v336 = vunpack.c.h.b16 %v79
    %v337 = vunpack.c.l.b16 %v80
    %v338 = vunpack.c.h.b16 %v80
    %v339 = vunpack.c.l.b16 %v81
    %v340 = vunpack.c.h.b16 %v81
    %v341 = vunpack.c.l.b16 %v82
    %v342 = vunpack.c.h.b16 %v82
    %v343 = vunpack.c.l.b16 %v83
    %v344 = vunpack.c.h.b16 %v83
    %v345 = vunpack.c.l.b16 %v84
    %v346 = vunpack.c.h.b16 %v84
    %v347 = vunpack.c.l.b16 %v85
    %v348 = vunpack.c.h.b16 %v85
    %v349 = vunpack.c.l.b16 %v86
    %v350 = vunpack.c.h.b16 %v86
    %v351 = vunpack.c.l.b16 %v87
    %v352 = vunpack.c.h.b16 %v87
    %v353 = vunpack.c.l.b16 %v88
    %v354 = vunpack.c.h.b16 %v88
    %v355 = vunpack.c.l.b16 %v89
    %v356 = vunpack.c.h.b16 %v89
    %v357 = vunpack.c.l.b16 %v90
    %v358 = vunpack.c.h.b16 %v90
    %v359 = vunpack.c.l.b16 %v91
    %v360 = vunpack.c.h.b16 %v91
    %v361 = vunpack.c.l.b16 %v92
    %v362 = vunpack.c.h.b16 %v92
    %v363 = vunpack.c.l.b16 %v93
    %v364 = vunpack.c.h.b16 %v93
    %v365 = vunpack.c.l.b16 %v94
    %v366 = vunpack.c.h.b16 %v94
    %v367 = vpack.c.b16 %v225, %v223
    %v368 = vpack.c.b16 %v226, %v224
    %v369 = vpack.c.b16 %v229, %v227
    %v370 = vpack.c.b16 %v230, %v228
    %v371 = vpack.c.b16 %v233, %v231
    %v372 = vpack.c.b16 %v234, %v232
    %v373 = vpack.c.b16 %v237, %v235
    %v374 = vpack.c.b16 %v238, %v236
    %v375 = vpack.c.b16 %v241, %v239
    %v376 = vpack.c.b16 %v242, %v240
    %v377 = vpack.c.b16 %v245, %v243
    %v378 = vpack.c.b16 %v246, %v244
    %v379 = vpack.c.b16 %v249, %v247
    %v380 = vpack.c.b16 %v250, %v248
    %v381 = vpack.c.b16 %v253, %v251
    %v382 = vpack.c.b16 %v254, %v252
    %v383 = vpack.c.b16 %v257, %v255
    %v384 = vpack.c.b16 %v258, %v256
    %v385 = vpack.c.b16 %v261, %v259
    %v386 = vpack.c.b16 %v262, %v260
    %v387 = vpack.c.b16 %v265, %v263
    %v388 = vpack.c.b16 %v266, %v264
    %v389 = vpack.c.b16 %v269, %v267
    %v390 = vpack.c.b16 %v270, %v268
    %v391 = vpack.c.b16 %v273, %v271
    %v392 = vpack.c.b16 %v274, %v272
    %v393 = vpack.c.b16 %v277, %v275
    %v394 = vpack.c.b16 %v278, %v276
    %v395 = vpack.c.b16 %v281, %v279
    %v396 = vpack.c.b16 %v282, %v280
    %v397 = vpack.c.b16 %v285, %v283
    %v398 = vpack.c.b16 %v286, %v284
    %v399 = vpack.c.b16 %v289, %v287
    %v400 = vpack.c.b16 %v290, %v288
    %v401 = vpack.c.b16 %v293, %v291
    %v402 = vpack.c.b16 %v294, %v292
    %v403 = vpack.c.b16 %v297, %v295
    %v404 = vpack.c.b16 %v298, %v296
    %v405 = vpack.c.b16 %v301, %v299
    %v406 = vpack.c.b16 %v302, %v300
    %v407 = vpack.c.b16 %v305, %v303
    %v408 = vpack.c.b16 %v306, %v304
    %v409 = vpack.c.b16 %v309, %v307
    %v410 = vpack.c.b16 %v310, %v308
    %v411 = vpack.c.b16 %v313, %v311
    %v412 = vpack.c.b16 %v314, %v312
    %v413 = vpack.c.b16 %v317, %v315
    %v414 = vpack.c.b16 %v318, %v316
    %v415 = vpack.c.b16 %v321, %v319
    %v416 = vpack.c.b16 %v322, %v320
    %v417 = vpack.c.b16 %v325, %v323
    %v418 = vpack.c.b16 %v326, %v324
    %v419 = vpack.c.b16 %v329, %v327
    %v420 = vpack.c.b16 %v330, %v328
    %v421 = vpack.c.b16 %v333, %v331
    %v422 = vpack.c.b16 %v334, %v332
    %v423 = vpack.c.b16 %v337, %v335
    %v424 = vpack.c.b16 %v338, %v336
    %v425 = vpack.c.b16 %v341, %v339
    %v426 = vpack.c.b16 %v342, %v340
    %v427 = vpack.c.b16 %v345, %v343
    %v428 = vpack.c.b16 %v346, %v344
    %v429 = vpack.c.b16 %v349, %v347
    %v430 = vpack.c.b16 %v350, %v348
    %v431 = vpack.c.b16 %v353, %v351
    %v432 = vpack.c.b16 %v354, %v352
    %v433 = vpack.c.b16 %v357, %v355
    %v434 = vpack.c.b16 %v358, %v356
    %v435 = vpack.c.b16 %v361, %v359
    %v436 = vpack.c.b16 %v362, %v360
    %v437 = vpack.c.b16 %v365, %v363
    %v438 = vpack.c.b16 %v366, %v364
    %vm511 = vcmask 523264
    %v513 = vsel %vm511, %v137, 0
    %515 = vmatprep.subr.bf16.mxu0 %v368
    %516 = vmatpush1.bf16.msra.mxu0 %v367
    %517 = vmatprep.subr.bf16.mxu0 %v370
    %518 = vmatpush1.bf16.msra.mxu0 %v369
    %519 = vmatprep.subr.bf16.mxu0 %v372
    %520 = vmatpush1.bf16.msra.mxu0 %v371
    %521 = vmatprep.subr.bf16.mxu0 %v374
    %522 = vmatpush1.bf16.msra.mxu0 %v373
    %523 = vmatprep.subr.bf16.mxu0 %v376
    %524 = vmatpush1.bf16.msra.mxu0 %v375
    %525 = vmatprep.subr.bf16.mxu0 %v378
    %526 = vmatpush1.bf16.msra.mxu0 %v377
    %527 = vmatprep.subr.bf16.mxu0 %v380
    %528 = vmatpush1.bf16.msra.mxu0 %v379
    %529 = vmatprep.subr.bf16.mxu0 %v382
    %530 = vmatpush1.bf16.msra.mxu0 %v381
    %531 = vmatprep.subr.bf16.mxu0 %v384
    %532 = vmatpush1.bf16.msra.mxu0 %v383
    %533 = vmatprep.subr.bf16.mxu0 %v386
    %534 = vmatpush1.bf16.msra.mxu0 %v385
    %535 = vmatprep.subr.bf16.mxu0 %v388
    %536 = vmatpush1.bf16.msra.mxu0 %v387
    %537 = vmatprep.subr.bf16.mxu0 %v390
    %538 = vmatpush1.bf16.msra.mxu0 %v389
    %539 = vmatprep.subr.bf16.mxu0 %v392
    %540 = vmatpush1.bf16.msra.mxu0 %v391
    %541 = vmatprep.subr.bf16.mxu0 %v394
    %542 = vmatpush1.bf16.msra.mxu0 %v393
    %543 = vmatprep.subr.bf16.mxu0 %v396
    %544 = vmatpush1.bf16.msra.mxu0 %v395
    %545 = vmatprep.subr.bf16.mxu0 %v398
    %546 = vmatpush1.bf16.msra.mxu0 %v397
    %547 = vmatprep.mubr.bf16.mxu0 %v144
    %548 = vmatmul.mubr.bf16.gmra.mrb[0].mxu0 %v130
    %v549 = vpop.f32.mrb[0].mxu0
    %v550 = vadd.f32 %v100, %v549
    %v551 = vpop.f32.mrb[0].mxu0
    %v552 = vadd.f32 %v104, %v551
    %v553 = vpop.f32.mrb[0].mxu0
    %v554 = vpop.f32.mrb[0].mxu0
    %555 = vdwg.mxu0
    %556 = vmatprep.subr.bf16.mxu0 %v400
    %557 = vmatpush1.bf16.msra.mxu0 %v399
    %558 = vmatprep.subr.bf16.mxu0 %v402
    %559 = vmatpush1.bf16.msra.mxu0 %v401
    %560 = vmatprep.subr.bf16.mxu0 %v404
    %561 = vmatpush1.bf16.msra.mxu0 %v403
    %562 = vmatprep.subr.bf16.mxu0 %v406
    %563 = vmatpush1.bf16.msra.mxu0 %v405
    %564 = vmatprep.subr.bf16.mxu0 %v408
    %565 = vmatpush1.bf16.msra.mxu0 %v407
    %566 = vmatprep.subr.bf16.mxu0 %v410
    %567 = vmatpush1.bf16.msra.mxu0 %v409
    %568 = vmatprep.subr.bf16.mxu0 %v412
    %569 = vmatpush1.bf16.msra.mxu0 %v411
    %570 = vmatprep.subr.bf16.mxu0 %v414
    %571 = vmatpush1.bf16.msra.mxu0 %v413
    %572 = vmatprep.subr.bf16.mxu0 %v416
    %573 = vmatpush1.bf16.msra.mxu0 %v415
    %574 = vmatprep.subr.bf16.mxu0 %v418
    %575 = vmatpush1.bf16.msra.mxu0 %v417
    %576 = vmatprep.subr.bf16.mxu0 %v420
    %577 = vmatpush1.bf16.msra.mxu0 %v419
    %578 = vmatprep.subr.bf16.mxu0 %v422
    %579 = vmatpush1.bf16.msra.mxu0 %v421
    %580 = vmatprep.subr.bf16.mxu0 %v424
    %581 = vmatpush1.bf16.msra.mxu0 %v423
    %582 = vmatprep.subr.bf16.mxu0 %v426
    %583 = vmatpush1.bf16.msra.mxu0 %v425
    %584 = vmatprep.subr.bf16.mxu0 %v428
    %585 = vmatpush1.bf16.msra.mxu0 %v427
    %586 = vmatprep.subr.bf16.mxu0 %v430
    %587 = vmatpush1.bf16.msra.mxu0 %v429
    %588 = vmatprep.mubr.bf16.mxu0 %v146
    %589 = vmatmul.mubr.bf16.gmra.mrb[0].mxu0 %v145
    %v590 = vpop.f32.mrb[0].mxu0
    %v591 = vadd.f32 %v550, %v590
    %v592 = vpop.f32.mrb[0].mxu0
    %v593 = vadd.f32 %v552, %v592
    %v594 = vpop.f32.mrb[0].mxu0
    %v595 = vpop.f32.mrb[0].mxu0
    %596 = vdwg.mxu0
    %597 = vmatprep.subr.bf16.mxu0 %v432
    %598 = vmatpush1.bf16.msra.mxu0 %v431
    %599 = vmatprep.subr.bf16.mxu0 %v434
    %600 = vmatpush1.bf16.msra.mxu0 %v433
    %601 = vmatprep.subr.bf16.mxu0 %v436
    %602 = vmatpush1.bf16.msra.mxu0 %v435
    %603 = vmatprep.subr.bf16.mxu0 %v438
    %604 = vmatpush1.bf16.msra.mxu0 %v437
    %605 = vmatprep.subr.bf16.mxu0 0
    %606 = vmatpush1.bf16.msra.mxu0 0
    %607 = vmatprep.subr.bf16.mxu0 0
    %608 = vmatpush1.bf16.msra.mxu0 0
    %609 = vmatprep.subr.bf16.mxu0 0
    %610 = vmatpush1.bf16.msra.mxu0 0
    %611 = vmatprep.subr.bf16.mxu0 0
    %612 = vmatpush1.bf16.msra.mxu0 0
    %613 = vmatprep.subr.bf16.mxu0 0
    %614 = vmatpush1.bf16.msra.mxu0 0
    %615 = vmatprep.subr.bf16.mxu0 0
    %616 = vmatpush1.bf16.msra.mxu0 0
    %617 = vmatprep.subr.bf16.mxu0 0
    %618 = vmatpush1.bf16.msra.mxu0 0
    %619 = vmatprep.subr.bf16.mxu0 0
    %620 = vmatpush1.bf16.msra.mxu0 0
    %621 = vmatprep.subr.bf16.mxu0 0
    %622 = vmatpush1.bf16.msra.mxu0 0
    %623 = vmatprep.subr.bf16.mxu0 0
    %624 = vmatpush1.bf16.msra.mxu0 0
    %625 = vmatprep.subr.bf16.mxu0 0
    %626 = vmatpush1.bf16.msra.mxu0 0
    %627 = vmatprep.subr.bf16.mxu0 0
    %628 = vmatpush1.bf16.msra.mxu0 0
    %629 = vmatprep.mubr.bf16.mxu0 0
    %630 = vmatmul.mubr.bf16.gmra.mrb[0].mxu0 %v513
    %v631 = vpop.f32.mrb[0].mxu0
    %v632 = vadd.f32 %v591, %v631
    %v633 = vpop.f32.mrb[0].mxu0
    %v634 = vadd.f32 %v593, %v633
    %v635 = vpop.f32.mrb[0].mxu0
    %v636 = vpop.f32.mrb[0].mxu0
    %637 = vdwg.mxu0
    %v638 = vmax.f32 %v632, 0.0
    %v639 = vmax.f32 %v634, 0.0
    %v640 = vpack.c.bf16 %v638, %v638
    %v641 = vpack.c.bf16 %v639, %v639
    %v642 = vld [vmem:[%s3] sm:$0xf]
    %v643 = vld [vmem:[%s3 + $0x4] sm:$0xf]
    %v644 = vld [vmem:[%s3 + $0x8] sm:$0xf]
    %v645 = vld [vmem:[%s3 + $0xc] sm:$0xf]
    %v646 = vld [vmem:[%s3 + $0x10] sm:$0xf]
    %v647 = vld [vmem:[%s3 + $0x14] sm:$0xf]
    %v648 = vld [vmem:[%s3 + $0x18] sm:$0xf]
    %v649 = vld [vmem:[%s3 + $0x1c] sm:$0xf]
    %v650 = vld [vmem:[%s3 + $0x20] sm:$0xf]
    %v651 = vld [vmem:[%s3 + $0x24] sm:$0xf]
    %v652 = vld [vmem:[%s3 + $0x28] sm:$0xf]
    %v653 = vld [vmem:[%s3 + $0x2c] sm:$0xf]
    %v654 = vld [vmem:[%s3 + $0x30] sm:$0xf]
    %v655 = vld [vmem:[%s3 + $0x34] sm:$0xf]
    %v656 = vld [vmem:[%s3 + $0x38] sm:$0xf]
    %v657 = vld [vmem:[%s3 + $0x3c] sm:$0xf]
    %v658 = vld [vmem:[%s3 + $0x40] sm:$0xf]
    %v659 = vld [vmem:[%s3 + $0x44] sm:$0xf]
    %v660 = vld [vmem:[%s3 + $0x48] sm:$0xf]
    %v661 = vld [vmem:[%s3 + $0x4c] sm:$0xf]
    %v662 = vld [vmem:[%s3 + $0x50] sm:$0xf]
    %v663 = vld [vmem:[%s3 + $0x54] sm:$0xf]
    %v664 = vld [vmem:[%s3 + $0x58] sm:$0xf]
    %v665 = vld [vmem:[%s3 + $0x5c] sm:$0xf]
    %v666 = vld [vmem:[%s3 + $0x60] sm:$0xf]
    %v667 = vld [vmem:[%s3 + $0x64] sm:$0xf]
    %v668 = vld [vmem:[%s3 + $0x68] sm:$0xf]
    %v669 = vld [vmem:[%s3 + $0x6c] sm:$0xf]
    %v670 = vld [vmem:[%s3 + $0x70] sm:$0xf]
    %v671 = vld [vmem:[%s3 + $0x74] sm:$0xf]
    %v672 = vld [vmem:[%s3 + $0x78] sm:$0xf]
    %v673 = vld [vmem:[%s3 + $0x7c] sm:$0xf]
    %v674 = vld [vmem:[%s4] sm:$0x1]
    %v676 = vlaneseq
    %v677 = vshrl.u32 %v676, 7
    %v678 = vsub.s32 0, %v677
    %v679 = vrot.slane %v674, %v678
    %v713 = vunpack.c.l.b16 %v642
    %v714 = vunpack.c.l.b16 %v643
    %v715 = vunpack.c.l.b16 %v644
    %v716 = vunpack.c.l.b16 %v645
    %v717 = vunpack.c.l.b16 %v646
    %v718 = vunpack.c.l.b16 %v647
    %v719 = vunpack.c.l.b16 %v648
    %v720 = vunpack.c.l.b16 %v649
    %v721 = vunpack.c.l.b16 %v650
    %v722 = vunpack.c.l.b16 %v651
    %v723 = vunpack.c.l.b16 %v652
    %v724 = vunpack.c.l.b16 %v653
    %v725 = vunpack.c.l.b16 %v654
    %v726 = vunpack.c.l.b16 %v655
    %v727 = vunpack.c.l.b16 %v656
    %v728 = vunpack.c.l.b16 %v657
    %v729 = vunpack.c.l.b16 %v658
    %v730 = vunpack.c.l.b16 %v659
    %v731 = vunpack.c.l.b16 %v660
    %v732 = vunpack.c.l.b16 %v661
    %v733 = vunpack.c.l.b16 %v662
    %v734 = vunpack.c.l.b16 %v663
    %v735 = vunpack.c.l.b16 %v664
    %v736 = vunpack.c.l.b16 %v665
    %v737 = vunpack.c.l.b16 %v666
    %v738 = vunpack.c.l.b16 %v667
    %v739 = vunpack.c.l.b16 %v668
    %v740 = vunpack.c.l.b16 %v669
    %v741 = vunpack.c.l.b16 %v670
    %v742 = vunpack.c.l.b16 %v671
    %v743 = vunpack.c.l.b16 %v672
    %v744 = vunpack.c.l.b16 %v673
    %v745 = vpack.c.b16 %v714, %v713
    %v746 = vpack.c.b16 %v716, %v715
    %v747 = vpack.c.b16 %v718, %v717
    %v748 = vpack.c.b16 %v720, %v719
    %v749 = vpack.c.b16 %v722, %v721
    %v750 = vpack.c.b16 %v724, %v723
    %v751 = vpack.c.b16 %v726, %v725
    %v752 = vpack.c.b16 %v728, %v727
    %v753 = vpack.c.b16 %v730, %v729
    %v754 = vpack.c.b16 %v732, %v731
    %v755 = vpack.c.b16 %v734, %v733
    %v756 = vpack.c.b16 %v736, %v735
    %v757 = vpack.c.b16 %v738, %v737
    %v758 = vpack.c.b16 %v740, %v739
    %v759 = vpack.c.b16 %v742, %v741
    %v760 = vpack.c.b16 %v744, %v743
    %777 = vmatprep.subr.bf16.mxu0 0
    %778 = vmatpush1.bf16.msra.mxu0 %v745
    %779 = vmatprep.subr.bf16.mxu0 0
    %780 = vmatpush1.bf16.msra.mxu0 %v746
    %781 = vmatprep.subr.bf16.mxu0 0
    %782 = vmatpush1.bf16.msra.mxu0 %v747
    %783 = vmatprep.subr.bf16.mxu0 0
    %784 = vmatpush1.bf16.msra.mxu0 %v748
    %785 = vmatprep.subr.bf16.mxu0 0
    %786 = vmatpush1.bf16.msra.mxu0 %v749
    %787 = vmatprep.subr.bf16.mxu0 0
    %788 = vmatpush1.bf16.msra.mxu0 %v750
    %789 = vmatprep.subr.bf16.mxu0 0
    %790 = vmatpush1.bf16.msra.mxu0 %v751
    %791 = vmatprep.subr.bf16.mxu0 0
    %792 = vmatpush1.bf16.msra.mxu0 %v752
    %793 = vmatprep.subr.bf16.mxu0 0
    %794 = vmatpush1.bf16.msra.mxu0 %v753
    %795 = vmatprep.subr.bf16.mxu0 0
    %796 = vmatpush1.bf16.msra.mxu0 %v754
    %797 = vmatprep.subr.bf16.mxu0 0
    %798 = vmatpush1.bf16.msra.mxu0 %v755
    %799 = vmatprep.subr.bf16.mxu0 0
    %800 = vmatpush1.bf16.msra.mxu0 %v756
    %801 = vmatprep.subr.bf16.mxu0 0
    %802 = vmatpush1.bf16.msra.mxu0 %v757
    %803 = vmatprep.subr.bf16.mxu0 0
    %804 = vmatpush1.bf16.msra.mxu0 %v758
    %805 = vmatprep.subr.bf16.mxu0 0
    %806 = vmatpush1.bf16.msra.mxu0 %v759
    %807 = vmatprep.subr.bf16.mxu0 0
    %808 = vmatpush1.bf16.msra.mxu0 %v760
    %809 = vmatprep.mubr.bf16.mxu0 %v641
    %810 = vmatmul.mubr.bf16.gmra.mrb[0].mxu0 %v640
    %v811 = vpop.f32.mrb[0].mxu0
    %v812 = vadd.f32 %v679, %v811
    %v813 = vpop.f32.mrb[0].mxu0
    %v814 = vpop.f32.mrb[0].mxu0
    %v815 = vpop.f32.mrb[0].mxu0
    %816 = vdwg.mxu0
    %vm817 = vcmask 74752
    %v818 = vsel %vm817, %v812, -inf
    %819 = vmax.xlane.f32.xlu0 %v818
    %v820 = vpop.xlane.xlu0 %819
    %v821 = vsub.f32 %v812, %v820
    %v822 = vmul.f32 %v821, 1.442695
    %v823 = vpow.pop %v822
    %v824 = vsel %vm817, %v823, 0.0
    %825 = vadd.xlane.f32.xlu0 %v824
    %v826 = vpop.xlane.xlu0 %825
    %v827 = vlog2.pop %v826
    %v828 = vmul.f32 %v827, 0.6931472
    %v829 = vadd.f32 %v828, %v820
    %v830 = vsub.f32 %v812, %v829
    %831 = vst.msk [vmem:[#allocation2] sm:$0x3] %vm817, %v830
    // Predicated region
    $region22: #{forward.5} parent=1 // pred_check
      _
    $region23: #{forward.5} parent=1 // pred_check_branch
      %833 = sbr.rel (0) target = $region25
    $region24: #{forward.5} parent=1 // pred_region
      %s835 = ssub.s32 32, 32
      %836 = vsyncadd [#allocation3], %s835
      %s838 = sshll.u32 [#allocation2], 4
      %s839 = int_to_ptr.vmem [resolvable:$true] %s838
      %841 = dma.vmem_to_hbm [thread:$0]  %s839, 32, %s5, [#allocation3]
    $region25: #{forward.5} parent=1 // pred_fallthru
      _
    // Predicated region
    $region26: #{forward.5} parent=1 // pred_check
      _
    $region27: #{forward.5} parent=1 // pred_check_branch
      %843 = sbr.rel (0) target = $region29
    $region28: #{forward.5} parent=1 // pred_region
      %844 = dma.done [#allocation3], 32
    $region29: #{forward.5} parent=1 // pred_fallthru
      _
    %845 = vsyncpa [#allocation3], 1

</llo_original>
